<compile_context>
chip_gen: v5e
topology: v5e:2x2
jax: 0.10.0
libtpu: 0.0.40
codegen_flags: <defaults>
</compile_context>

<pallas_src>
import jax
import jax.numpy as jnp
from jax.experimental import pallas as pl
from jax.experimental.pallas import tpu as pltpu

# ----- small, self-consistent config (vocab chosen since `text` is undefined) -----
VOCAB = 40
VPAD = 128                         # lm_head output padded to a full lane width
N_EMBED = 160
N_HEADS = 5
HEAD_SIZE = N_EMBED // N_HEADS     # 32
BLOCK_SIZE = 16                    # max sequence length
N_LAYER = 2
FF = 4 * N_EMBED                   # 640
EPS = 1e-5                         # PyTorch LayerNorm default


# --------------------------- fused Pallas kernel ---------------------------

def _layer_norm(v, g, b):
    mu = jnp.mean(v, axis=-1, keepdims=True)
    var = jnp.mean((v - mu) ** 2, axis=-1, keepdims=True)
    return (v - mu) * jax.lax.rsqrt(var + EPS) * g + b


def fused_decoder_kernel(x_ref, wqkv_ref, projw_ref, projb_ref,
                         w1_ref, b1_ref, w2_ref, b2_ref,
                         ln1g_ref, ln1b_ref, ln2g_ref, ln2b_ref,
                         lnfg_ref, lnfb_ref, lmw_ref, lmb_ref,
                         out_ref):
    # One program = one batch element, whole model, VMEM resident.
    T = x_ref.shape[1]
    x = x_ref[0]                                              # (T, C) f32

    # Causal additive bias: built once, reused for every layer / head.
    row = jax.lax.broadcasted_iota(jnp.int32, (T, T), 0)
    col = jax.lax.broadcasted_iota(jnp.int32, (T, T), 1)
    causal_bias = jnp.where(col <= row, 0.0, -1e30).astype(jnp.float32)
    # NOTE: reference scales by C ** 0.5 with C = n_embed (not head_size).
    inv_scale = jnp.float32(1.0 / (N_EMBED ** 0.5))

    for l in range(N_LAYER):
        # ---- LN1 + causal multi-head self-attention (residual around ln1(x)) ----
        x1 = _layer_norm(x, ln1g_ref[l], ln1b_ref[l])
        qkv = jnp.dot(x1.astype(jnp.bfloat16), wqkv_ref[l],
                      preferred_element_type=jnp.float32)     # (T, 3C)
        q = qkv[:, :N_EMBED]
        k = qkv[:, N_EMBED:2 * N_EMBED]
        v = qkv[:, 2 * N_EMBED:]
        heads = []
        for h in range(N_HEADS):
            sl = slice(h * HEAD_SIZE, (h + 1) * HEAD_SIZE)
            qh = q[:, sl].astype(jnp.bfloat16)
            kh = k[:, sl].astype(jnp.bfloat16)
            vh = v[:, sl].astype(jnp.bfloat16)
            s = jnp.dot(qh, kh.T, preferred_element_type=jnp.float32) * inv_scale
            s = s + causal_bias                               # causal (tril) mask
            s = s - jnp.max(s, axis=-1, keepdims=True)
            p = jnp.exp(s)
            p = p * pl.reciprocal(jnp.sum(p, axis=-1, keepdims=True), approx=True)
            heads.append(jnp.dot(p.astype(jnp.bfloat16), vh,
                                 preferred_element_type=jnp.float32))
        attn = jnp.concatenate(heads, axis=-1)                # (T, C) lane-dense
        proj = jnp.dot(attn.astype(jnp.bfloat16), projw_ref[l],
                       preferred_element_type=jnp.float32) + projb_ref[l]
        # TODO(synk): nn.Dropout layers are identity in eval mode; not implemented.
        x = x1 + proj

        # ---- LN2 + feed-forward (residual around ln2(x)) ----
        x2 = _layer_norm(x, ln2g_ref[l], ln2b_ref[l])
        h1 = jnp.dot(x2.astype(jnp.bfloat16), w1_ref[l],
                     preferred_element_type=jnp.float32) + b1_ref[l]
        h1 = jnp.maximum(h1, 0.0)                             # ReLU
        ff = jnp.dot(h1.astype(jnp.bfloat16), w2_ref[l],
                     preferred_element_type=jnp.float32) + b2_ref[l]
        x = x2 + ff

    # ---- final LayerNorm + lm_head (output padded to 128 lanes) ----
    xf = _layer_norm(x, lnfg_ref[...], lnfb_ref[...])
    out_ref[0] = jnp.dot(xf.astype(jnp.bfloat16), lmw_ref[...],
                         preferred_element_type=jnp.float32) + lmb_ref[...]


# --------------------------- wrapper ---------------------------

def transformer_decoder(tokens, params, targets=None):
    B, T = tokens.shape
    C = N_EMBED
    # Embedding gather + positional add: single XLA fusion feeding the kernel.
    x = jnp.take(params["tok_emb"], tokens, axis=0) + params["pos_emb"][None, :T, :]

    def full(shape):
        return pl.BlockSpec(shape, lambda b, _s=shape: (0,) * len(_s))

    logits_pad = pl.pallas_call(
        fused_decoder_kernel,
        out_shape=jax.ShapeDtypeStruct((B, T, VPAD), jnp.float32),
        grid=(B,),
        in_specs=[
            pl.BlockSpec((1, T, C), lambda b: (b, 0, 0)),     # x
            full((N_LAYER, C, 3 * C)),                        # packed Wq|Wk|Wv
            full((N_LAYER, C, C)),                            # proj_w
            full((N_LAYER, 1, C)),                            # proj_b
            full((N_LAYER, C, FF)),                           # ffn w1
            full((N_LAYER, 1, FF)),                           # ffn b1
            full((N_LAYER, FF, C)),                           # ffn w2
            full((N_LAYER, 1, C)),                            # ffn b2
            full((N_LAYER, 1, C)),                            # ln1 gamma
            full((N_LAYER, 1, C)),                            # ln1 beta
            full((N_LAYER, 1, C)),                            # ln2 gamma
            full((N_LAYER, 1, C)),                            # ln2 beta
            full((1, C)),                                     # ln_f gamma
            full((1, C)),                                     # ln_f beta
            full((C, VPAD)),                                  # lm_w (zero-padded)
            full((1, VPAD)),                                  # lm_b (zero-padded)
        ],
        out_specs=pl.BlockSpec((1, T, VPAD), lambda b: (b, 0, 0)),
        compiler_params=pltpu.CompilerParams(
            dimension_semantics=("parallel",)),               # both v7x TCs get work
    )(x,
      params["wqkv"], params["proj_w"], params["proj_b"],
      params["w1"], params["b1"], params["w2"], params["b2"],
      params["ln1_g"], params["ln1_b"], params["ln2_g"], params["ln2_b"],
      params["lnf_g"], params["lnf_b"], params["lm_w_pad"], params["lm_b_pad"])

    logits = logits_pad[..., :VOCAB]
    loss = None   # targets=None path of the reference forward
    # TODO(synk): cross-entropy loss (targets != None path) not implemented.
    return logits, loss


# --------------------------- deterministic parameter init ---------------------------

def init_params(key):
    def nrm(k, shape, scale=0.02, dtype=jnp.float32):
        return (scale * jax.random.normal(k, shape)).astype(dtype)

    ks = iter(jax.random.split(key, 16))
    lm_w = nrm(next(ks), (N_EMBED, VOCAB))
    lm_b = nrm(next(ks), (VOCAB,))
    params = {
        "tok_emb": nrm(next(ks), (VOCAB, N_EMBED), 1.0),
        "pos_emb": nrm(next(ks), (BLOCK_SIZE, N_EMBED), 1.0),
        # matmul weights stored in bf16 (MXU-native); biases / LN params in f32
        "wqkv":   nrm(next(ks), (N_LAYER, N_EMBED, 3 * N_EMBED), dtype=jnp.bfloat16),
        "proj_w": nrm(next(ks), (N_LAYER, N_EMBED, N_EMBED), dtype=jnp.bfloat16),
        "proj_b": nrm(next(ks), (N_LAYER, 1, N_EMBED)),
        "w1":     nrm(next(ks), (N_LAYER, N_EMBED, FF), dtype=jnp.bfloat16),
        "b1":     nrm(next(ks), (N_LAYER, 1, FF)),
        "w2":     nrm(next(ks), (N_LAYER, FF, N_EMBED), dtype=jnp.bfloat16),
        "b2":     nrm(next(ks), (N_LAYER, 1, N_EMBED)),
        "ln1_g": jnp.ones((N_LAYER, 1, N_EMBED), jnp.float32),
        "ln1_b": jnp.zeros((N_LAYER, 1, N_EMBED), jnp.float32),
        "ln2_g": jnp.ones((N_LAYER, 1, N_EMBED), jnp.float32),
        "ln2_b": jnp.zeros((N_LAYER, 1, N_EMBED), jnp.float32),
        "lnf_g": jnp.ones((1, N_EMBED), jnp.float32),
        "lnf_b": jnp.zeros((1, N_EMBED), jnp.float32),
        # lm_head padded to 128 output lanes (zero columns), sliced back in JAX.
        "lm_w_pad": jnp.pad(lm_w, ((0, 0), (0, VPAD - VOCAB))).astype(jnp.bfloat16),
        "lm_b_pad": jnp.pad(lm_b, (0, VPAD - VOCAB)).reshape(1, VPAD),
    }
    return params


if __name__ == "__main__":
    key = jax.random.PRNGKey(0)
    pkey, dkey = jax.random.split(key)
    params = init_params(pkey)
    tokens = jax.random.randint(dkey, (2, BLOCK_SIZE), 0, VOCAB, dtype=jnp.int32)

    logits, loss = jax.jit(transformer_decoder)(tokens, params)
    jax.block_until_ready(logits)
    assert logits.shape == (2, BLOCK_SIZE, VOCAB) and loss is None
    print("KERNEL_OK")
</pallas_src>

<mosaic_0001>
module attributes {stable_mosaic.version = 11 : i64} {
  func.func @fused_decoder_kernel(%arg0: i32, %arg1: memref<1x16x160xf32, #tpu.memory_space<vmem>>, %arg2: memref<2x160x480xbf16, #tpu.memory_space<vmem>>, %arg3: memref<2x160x160xbf16, #tpu.memory_space<vmem>>, %arg4: memref<2x1x160xf32, #tpu.memory_space<vmem>>, %arg5: memref<2x160x640xbf16, #tpu.memory_space<vmem>>, %arg6: memref<2x1x640xf32, #tpu.memory_space<vmem>>, %arg7: memref<2x640x160xbf16, #tpu.memory_space<vmem>>, %arg8: memref<2x1x160xf32, #tpu.memory_space<vmem>>, %arg9: memref<2x1x160xf32, #tpu.memory_space<vmem>>, %arg10: memref<2x1x160xf32, #tpu.memory_space<vmem>>, %arg11: memref<2x1x160xf32, #tpu.memory_space<vmem>>, %arg12: memref<2x1x160xf32, #tpu.memory_space<vmem>>, %arg13: memref<1x160xf32, #tpu.memory_space<vmem>>, %arg14: memref<1x160xf32, #tpu.memory_space<vmem>>, %arg15: memref<160x128xbf16, #tpu.memory_space<vmem>>, %arg16: memref<1x128xf32, #tpu.memory_space<vmem>>, %arg17: memref<1x16x128xf32, #tpu.memory_space<vmem>>) attributes {dimension_semantics = [#tpu.dimension_semantics<parallel>], iteration_bounds = array<i64: 2>, scalar_prefetch = 0 : i64, scratch_operands = 0 : i64, tpu.core_type = #tpu.core_type<tc>, window_params = [{transform_indices = @transform_0, window_bounds = array<i64: 1, 16, 160>}, {pipeline_mode = #tpu.pipeline_mode<synchronous>, transform_indices = @transform_1, window_bounds = array<i64: 2, 160, 480>}, {pipeline_mode = #tpu.pipeline_mode<synchronous>, transform_indices = @transform_2, window_bounds = array<i64: 2, 160, 160>}, {pipeline_mode = #tpu.pipeline_mode<synchronous>, transform_indices = @transform_3, window_bounds = array<i64: 2, 1, 160>}, {pipeline_mode = #tpu.pipeline_mode<synchronous>, transform_indices = @transform_4, window_bounds = array<i64: 2, 160, 640>}, {pipeline_mode = #tpu.pipeline_mode<synchronous>, transform_indices = @transform_5, window_bounds = array<i64: 2, 1, 640>}, {pipeline_mode = #tpu.pipeline_mode<synchronous>, transform_indices = @transform_6, window_bounds = array<i64: 2, 640, 160>}, {pipeline_mode = #tpu.pipeline_mode<synchronous>, transform_indices = @transform_7, window_bounds = array<i64: 2, 1, 160>}, {pipeline_mode = #tpu.pipeline_mode<synchronous>, transform_indices = @transform_8, window_bounds = array<i64: 2, 1, 160>}, {pipeline_mode = #tpu.pipeline_mode<synchronous>, transform_indices = @transform_9, window_bounds = array<i64: 2, 1, 160>}, {pipeline_mode = #tpu.pipeline_mode<synchronous>, transform_indices = @transform_10, window_bounds = array<i64: 2, 1, 160>}, {pipeline_mode = #tpu.pipeline_mode<synchronous>, transform_indices = @transform_11, window_bounds = array<i64: 2, 1, 160>}, {pipeline_mode = #tpu.pipeline_mode<synchronous>, transform_indices = @transform_12, window_bounds = array<i64: 1, 160>}, {pipeline_mode = #tpu.pipeline_mode<synchronous>, transform_indices = @transform_13, window_bounds = array<i64: 1, 160>}, {pipeline_mode = #tpu.pipeline_mode<synchronous>, transform_indices = @transform_14, window_bounds = array<i64: 160, 128>}, {pipeline_mode = #tpu.pipeline_mode<synchronous>, transform_indices = @transform_15, window_bounds = array<i64: 1, 128>}, {transform_indices = @transform_16, window_bounds = array<i64: 1, 16, 128>}]} {
    %c0 = arith.constant 0 : index
    %c0_0 = arith.constant 0 : index
    %c0_1 = arith.constant 0 : index
    %0 = vector.load %arg1[%c0, %c0_0, %c0_1] : memref<1x16x160xf32, #tpu.memory_space<vmem>>, vector<1x16x160xf32>
    %1 = vector.shape_cast %0 : vector<1x16x160xf32> to vector<16x160xf32>
    %2 = tpu.iota {dimensions = array<i32: 0>} : vector<16x16xi32>
    %3 = tpu.iota {dimensions = array<i32: 1>} : vector<16x16xi32>
    %4 = arith.cmpi sle, %3, %2 : vector<16x16xi32>
    %cst = arith.constant 0.000000e+00 : f32
    %cst_2 = arith.constant -1.000000e+30 : f32
    %5 = vector.broadcast %cst : f32 to vector<16x16xf32>
    %6 = vector.broadcast %cst_2 : f32 to vector<16x16xf32>
    %7 = arith.select %4, %5, %6 : vector<16x16xi1>, vector<16x16xf32>
    %c0_3 = arith.constant 0 : index
    %c0_4 = arith.constant 0 : index
    %c0_5 = arith.constant 0 : index
    %8 = vector.load %arg9[%c0_3, %c0_4, %c0_5] : memref<2x1x160xf32, #tpu.memory_space<vmem>>, vector<1x1x160xf32>
    %9 = vector.shape_cast %8 : vector<1x1x160xf32> to vector<1x160xf32>
    %c0_6 = arith.constant 0 : index
    %c0_7 = arith.constant 0 : index
    %c0_8 = arith.constant 0 : index
    %10 = vector.load %arg10[%c0_6, %c0_7, %c0_8] : memref<2x1x160xf32, #tpu.memory_space<vmem>>, vector<1x1x160xf32>
    %11 = vector.shape_cast %10 : vector<1x1x160xf32> to vector<1x160xf32>
    %cst_9 = arith.constant dense<0.000000e+00> : vector<16xf32>
    %12 = vector.multi_reduction <add>, %1, %cst_9 [1] : vector<16x160xf32> to vector<16xf32>
    %13 = vector.shape_cast %12 : vector<16xf32> to vector<16x1xf32>
    %cst_10 = arith.constant 1.600000e+02 : f32
    %14 = vector.broadcast %cst_10 : f32 to vector<16x1xf32>
    %15 = arith.divf %13, %14 : vector<16x1xf32>
    %16 = vector.broadcast %15 : vector<16x1xf32> to vector<16x160xf32>
    %17 = arith.subf %1, %16 : vector<16x160xf32>
    %18 = arith.mulf %17, %17 : vector<16x160xf32>
    %cst_11 = arith.constant dense<0.000000e+00> : vector<16xf32>
    %19 = vector.multi_reduction <add>, %18, %cst_11 [1] : vector<16x160xf32> to vector<16xf32>
    %20 = vector.shape_cast %19 : vector<16xf32> to vector<16x1xf32>
    %cst_12 = arith.constant 1.600000e+02 : f32
    %21 = vector.broadcast %cst_12 : f32 to vector<16x1xf32>
    %22 = arith.divf %20, %21 : vector<16x1xf32>
    %23 = vector.broadcast %15 : vector<16x1xf32> to vector<16x160xf32>
    %24 = arith.subf %1, %23 : vector<16x160xf32>
    %cst_13 = arith.constant 9.99999974E-6 : f32
    %25 = vector.broadcast %cst_13 : f32 to vector<16x1xf32>
    %26 = arith.addf %22, %25 : vector<16x1xf32>
    %27 = math.rsqrt %26 : vector<16x1xf32>
    %28 = vector.broadcast %27 : vector<16x1xf32> to vector<16x160xf32>
    %29 = arith.mulf %24, %28 : vector<16x160xf32>
    %30 = vector.broadcast %9 : vector<1x160xf32> to vector<16x160xf32>
    %31 = arith.mulf %29, %30 : vector<16x160xf32>
    %32 = vector.broadcast %11 : vector<1x160xf32> to vector<16x160xf32>
    %33 = arith.addf %31, %32 : vector<16x160xf32>
    %34 = arith.truncf %33 : vector<16x160xf32> to vector<16x160xbf16>
    %c0_14 = arith.constant 0 : index
    %c0_15 = arith.constant 0 : index
    %c0_16 = arith.constant 0 : index
    %35 = vector.load %arg2[%c0_14, %c0_15, %c0_16] : memref<2x160x480xbf16, #tpu.memory_space<vmem>>, vector<1x160x480xbf16>
    %36 = vector.shape_cast %35 : vector<1x160x480xbf16> to vector<160x480xbf16>
    %cst_17 = arith.constant dense<0.000000e+00> : vector<16x480xf32>
    %37 = tpu.matmul %34, %36, %cst_17 {dimension_numbers = #tpu.dot_dimension_numbers<[1], [0], [0], [1], [0, 0, 1, 1], [], []>} : vector<16x160xbf16>, vector<160x480xbf16>, vector<16x480xf32> -> vector<16x480xf32>
    %38 = vector.extract_strided_slice %37 {offsets = [0, 0], sizes = [16, 160], strides = [1, 1]} : vector<16x480xf32> to vector<16x160xf32>
    %39 = vector.extract_strided_slice %37 {offsets = [0, 160], sizes = [16, 160], strides = [1, 1]} : vector<16x480xf32> to vector<16x160xf32>
    %40 = vector.extract_strided_slice %37 {offsets = [0, 320], sizes = [16, 160], strides = [1, 1]} : vector<16x480xf32> to vector<16x160xf32>
    %41 = vector.extract_strided_slice %38 {offsets = [0, 0], sizes = [16, 32], strides = [1, 1]} : vector<16x160xf32> to vector<16x32xf32>
    %42 = arith.truncf %41 : vector<16x32xf32> to vector<16x32xbf16>
    %43 = vector.extract_strided_slice %39 {offsets = [0, 0], sizes = [16, 32], strides = [1, 1]} : vector<16x160xf32> to vector<16x32xf32>
    %44 = arith.truncf %43 : vector<16x32xf32> to vector<16x32xbf16>
    %45 = vector.extract_strided_slice %40 {offsets = [0, 0], sizes = [16, 32], strides = [1, 1]} : vector<16x160xf32> to vector<16x32xf32>
    %46 = arith.truncf %45 : vector<16x32xf32> to vector<16x32xbf16>
    %47 = tpu.transpose %44, [1, 0] : vector<16x32xbf16> -> vector<32x16xbf16>
    %cst_18 = arith.constant dense<0.000000e+00> : vector<16x16xf32>
    %48 = tpu.matmul %42, %47, %cst_18 {dimension_numbers = #tpu.dot_dimension_numbers<[1], [0], [0], [1], [0, 0, 1, 1], [], []>} : vector<16x32xbf16>, vector<32x16xbf16>, vector<16x16xf32> -> vector<16x16xf32>
    %cst_19 = arith.constant 0.0790569409 : f32
    %49 = vector.broadcast %cst_19 : f32 to vector<16x16xf32>
    %50 = arith.mulf %48, %49 : vector<16x16xf32>
    %51 = arith.addf %50, %7 : vector<16x16xf32>
    %cst_20 = arith.constant dense<0xFF800000> : vector<16xf32>
    %52 = vector.multi_reduction <maximumf>, %51, %cst_20 [1] : vector<16x16xf32> to vector<16xf32>
    %53 = vector.shape_cast %52 : vector<16xf32> to vector<16x1xf32>
    %54 = vector.broadcast %53 : vector<16x1xf32> to vector<16x16xf32>
    %55 = arith.subf %51, %54 : vector<16x16xf32>
    %56 = math.exp %55 : vector<16x16xf32>
    %cst_21 = arith.constant dense<0.000000e+00> : vector<16xf32>
    %57 = vector.multi_reduction <add>, %56, %cst_21 [1] : vector<16x16xf32> to vector<16xf32>
    %58 = vector.shape_cast %57 : vector<16xf32> to vector<16x1xf32>
    %59 = tpu.reciprocal %58 {approx = true} : vector<16x1xf32> -> vector<16x1xf32>
    %60 = vector.broadcast %59 : vector<16x1xf32> to vector<16x16xf32>
    %61 = arith.mulf %56, %60 : vector<16x16xf32>
    %62 = arith.truncf %61 : vector<16x16xf32> to vector<16x16xbf16>
    %cst_22 = arith.constant dense<0.000000e+00> : vector<16x32xf32>
    %63 = tpu.matmul %62, %46, %cst_22 {dimension_numbers = #tpu.dot_dimension_numbers<[1], [0], [0], [1], [0, 0, 1, 1], [], []>} : vector<16x16xbf16>, vector<16x32xbf16>, vector<16x32xf32> -> vector<16x32xf32>
    %64 = vector.extract_strided_slice %38 {offsets = [0, 32], sizes = [16, 32], strides = [1, 1]} : vector<16x160xf32> to vector<16x32xf32>
    %65 = arith.truncf %64 : vector<16x32xf32> to vector<16x32xbf16>
    %66 = vector.extract_strided_slice %39 {offsets = [0, 32], sizes = [16, 32], strides = [1, 1]} : vector<16x160xf32> to vector<16x32xf32>
    %67 = arith.truncf %66 : vector<16x32xf32> to vector<16x32xbf16>
    %68 = vector.extract_strided_slice %40 {offsets = [0, 32], sizes = [16, 32], strides = [1, 1]} : vector<16x160xf32> to vector<16x32xf32>
    %69 = arith.truncf %68 : vector<16x32xf32> to vector<16x32xbf16>
    %70 = tpu.transpose %67, [1, 0] : vector<16x32xbf16> -> vector<32x16xbf16>
    %cst_23 = arith.constant dense<0.000000e+00> : vector<16x16xf32>
    %71 = tpu.matmul %65, %70, %cst_23 {dimension_numbers = #tpu.dot_dimension_numbers<[1], [0], [0], [1], [0, 0, 1, 1], [], []>} : vector<16x32xbf16>, vector<32x16xbf16>, vector<16x16xf32> -> vector<16x16xf32>
    %cst_24 = arith.constant 0.0790569409 : f32
    %72 = vector.broadcast %cst_24 : f32 to vector<16x16xf32>
    %73 = arith.mulf %71, %72 : vector<16x16xf32>
    %74 = arith.addf %73, %7 : vector<16x16xf32>
    %cst_25 = arith.constant dense<0xFF800000> : vector<16xf32>
    %75 = vector.multi_reduction <maximumf>, %74, %cst_25 [1] : vector<16x16xf32> to vector<16xf32>
    %76 = vector.shape_cast %75 : vector<16xf32> to vector<16x1xf32>
    %77 = vector.broadcast %76 : vector<16x1xf32> to vector<16x16xf32>
    %78 = arith.subf %74, %77 : vector<16x16xf32>
    %79 = math.exp %78 : vector<16x16xf32>
    %cst_26 = arith.constant dense<0.000000e+00> : vector<16xf32>
    %80 = vector.multi_reduction <add>, %79, %cst_26 [1] : vector<16x16xf32> to vector<16xf32>
    %81 = vector.shape_cast %80 : vector<16xf32> to vector<16x1xf32>
    %82 = tpu.reciprocal %81 {approx = true} : vector<16x1xf32> -> vector<16x1xf32>
    %83 = vector.broadcast %82 : vector<16x1xf32> to vector<16x16xf32>
    %84 = arith.mulf %79, %83 : vector<16x16xf32>
    %85 = arith.truncf %84 : vector<16x16xf32> to vector<16x16xbf16>
    %cst_27 = arith.constant dense<0.000000e+00> : vector<16x32xf32>
    %86 = tpu.matmul %85, %69, %cst_27 {dimension_numbers = #tpu.dot_dimension_numbers<[1], [0], [0], [1], [0, 0, 1, 1], [], []>} : vector<16x16xbf16>, vector<16x32xbf16>, vector<16x32xf32> -> vector<16x32xf32>
    %87 = vector.extract_strided_slice %38 {offsets = [0, 64], sizes = [16, 32], strides = [1, 1]} : vector<16x160xf32> to vector<16x32xf32>
    %88 = arith.truncf %87 : vector<16x32xf32> to vector<16x32xbf16>
    %89 = vector.extract_strided_slice %39 {offsets = [0, 64], sizes = [16, 32], strides = [1, 1]} : vector<16x160xf32> to vector<16x32xf32>
    %90 = arith.truncf %89 : vector<16x32xf32> to vector<16x32xbf16>
    %91 = vector.extract_strided_slice %40 {offsets = [0, 64], sizes = [16, 32], strides = [1, 1]} : vector<16x160xf32> to vector<16x32xf32>
    %92 = arith.truncf %91 : vector<16x32xf32> to vector<16x32xbf16>
    %93 = tpu.transpose %90, [1, 0] : vector<16x32xbf16> -> vector<32x16xbf16>
    %cst_28 = arith.constant dense<0.000000e+00> : vector<16x16xf32>
    %94 = tpu.matmul %88, %93, %cst_28 {dimension_numbers = #tpu.dot_dimension_numbers<[1], [0], [0], [1], [0, 0, 1, 1], [], []>} : vector<16x32xbf16>, vector<32x16xbf16>, vector<16x16xf32> -> vector<16x16xf32>
    %cst_29 = arith.constant 0.0790569409 : f32
    %95 = vector.broadcast %cst_29 : f32 to vector<16x16xf32>
    %96 = arith.mulf %94, %95 : vector<16x16xf32>
    %97 = arith.addf %96, %7 : vector<16x16xf32>
    %cst_30 = arith.constant dense<0xFF800000> : vector<16xf32>
    %98 = vector.multi_reduction <maximumf>, %97, %cst_30 [1] : vector<16x16xf32> to vector<16xf32>
    %99 = vector.shape_cast %98 : vector<16xf32> to vector<16x1xf32>
    %100 = vector.broadcast %99 : vector<16x1xf32> to vector<16x16xf32>
    %101 = arith.subf %97, %100 : vector<16x16xf32>
    %102 = math.exp %101 : vector<16x16xf32>
    %cst_31 = arith.constant dense<0.000000e+00> : vector<16xf32>
    %103 = vector.multi_reduction <add>, %102, %cst_31 [1] : vector<16x16xf32> to vector<16xf32>
    %104 = vector.shape_cast %103 : vector<16xf32> to vector<16x1xf32>
    %105 = tpu.reciprocal %104 {approx = true} : vector<16x1xf32> -> vector<16x1xf32>
    %106 = vector.broadcast %105 : vector<16x1xf32> to vector<16x16xf32>
    %107 = arith.mulf %102, %106 : vector<16x16xf32>
    %108 = arith.truncf %107 : vector<16x16xf32> to vector<16x16xbf16>
    %cst_32 = arith.constant dense<0.000000e+00> : vector<16x32xf32>
    %109 = tpu.matmul %108, %92, %cst_32 {dimension_numbers = #tpu.dot_dimension_numbers<[1], [0], [0], [1], [0, 0, 1, 1], [], []>} : vector<16x16xbf16>, vector<16x32xbf16>, vector<16x32xf32> -> vector<16x32xf32>
    %110 = vector.extract_strided_slice %38 {offsets = [0, 96], sizes = [16, 32], strides = [1, 1]} : vector<16x160xf32> to vector<16x32xf32>
    %111 = arith.truncf %110 : vector<16x32xf32> to vector<16x32xbf16>
    %112 = vector.extract_strided_slice %39 {offsets = [0, 96], sizes = [16, 32], strides = [1, 1]} : vector<16x160xf32> to vector<16x32xf32>
    %113 = arith.truncf %112 : vector<16x32xf32> to vector<16x32xbf16>
    %114 = vector.extract_strided_slice %40 {offsets = [0, 96], sizes = [16, 32], strides = [1, 1]} : vector<16x160xf32> to vector<16x32xf32>
    %115 = arith.truncf %114 : vector<16x32xf32> to vector<16x32xbf16>
    %116 = tpu.transpose %113, [1, 0] : vector<16x32xbf16> -> vector<32x16xbf16>
    %cst_33 = arith.constant dense<0.000000e+00> : vector<16x16xf32>
    %117 = tpu.matmul %111, %116, %cst_33 {dimension_numbers = #tpu.dot_dimension_numbers<[1], [0], [0], [1], [0, 0, 1, 1], [], []>} : vector<16x32xbf16>, vector<32x16xbf16>, vector<16x16xf32> -> vector<16x16xf32>
    %cst_34 = arith.constant 0.0790569409 : f32
    %118 = vector.broadcast %cst_34 : f32 to vector<16x16xf32>
    %119 = arith.mulf %117, %118 : vector<16x16xf32>
    %120 = arith.addf %119, %7 : vector<16x16xf32>
    %cst_35 = arith.constant dense<0xFF800000> : vector<16xf32>
    %121 = vector.multi_reduction <maximumf>, %120, %cst_35 [1] : vector<16x16xf32> to vector<16xf32>
    %122 = vector.shape_cast %121 : vector<16xf32> to vector<16x1xf32>
    %123 = vector.broadcast %122 : vector<16x1xf32> to vector<16x16xf32>
    %124 = arith.subf %120, %123 : vector<16x16xf32>
    %125 = math.exp %124 : vector<16x16xf32>
    %cst_36 = arith.constant dense<0.000000e+00> : vector<16xf32>
    %126 = vector.multi_reduction <add>, %125, %cst_36 [1] : vector<16x16xf32> to vector<16xf32>
    %127 = vector.shape_cast %126 : vector<16xf32> to vector<16x1xf32>
    %128 = tpu.reciprocal %127 {approx = true} : vector<16x1xf32> -> vector<16x1xf32>
    %129 = vector.broadcast %128 : vector<16x1xf32> to vector<16x16xf32>
    %130 = arith.mulf %125, %129 : vector<16x16xf32>
    %131 = arith.truncf %130 : vector<16x16xf32> to vector<16x16xbf16>
    %cst_37 = arith.constant dense<0.000000e+00> : vector<16x32xf32>
    %132 = tpu.matmul %131, %115, %cst_37 {dimension_numbers = #tpu.dot_dimension_numbers<[1], [0], [0], [1], [0, 0, 1, 1], [], []>} : vector<16x16xbf16>, vector<16x32xbf16>, vector<16x32xf32> -> vector<16x32xf32>
    %133 = vector.extract_strided_slice %38 {offsets = [0, 128], sizes = [16, 32], strides = [1, 1]} : vector<16x160xf32> to vector<16x32xf32>
    %134 = arith.truncf %133 : vector<16x32xf32> to vector<16x32xbf16>
    %135 = vector.extract_strided_slice %39 {offsets = [0, 128], sizes = [16, 32], strides = [1, 1]} : vector<16x160xf32> to vector<16x32xf32>
    %136 = arith.truncf %135 : vector<16x32xf32> to vector<16x32xbf16>
    %137 = vector.extract_strided_slice %40 {offsets = [0, 128], sizes = [16, 32], strides = [1, 1]} : vector<16x160xf32> to vector<16x32xf32>
    %138 = arith.truncf %137 : vector<16x32xf32> to vector<16x32xbf16>
    %139 = tpu.transpose %136, [1, 0] : vector<16x32xbf16> -> vector<32x16xbf16>
    %cst_38 = arith.constant dense<0.000000e+00> : vector<16x16xf32>
    %140 = tpu.matmul %134, %139, %cst_38 {dimension_numbers = #tpu.dot_dimension_numbers<[1], [0], [0], [1], [0, 0, 1, 1], [], []>} : vector<16x32xbf16>, vector<32x16xbf16>, vector<16x16xf32> -> vector<16x16xf32>
    %cst_39 = arith.constant 0.0790569409 : f32
    %141 = vector.broadcast %cst_39 : f32 to vector<16x16xf32>
    %142 = arith.mulf %140, %141 : vector<16x16xf32>
    %143 = arith.addf %142, %7 : vector<16x16xf32>
    %cst_40 = arith.constant dense<0xFF800000> : vector<16xf32>
    %144 = vector.multi_reduction <maximumf>, %143, %cst_40 [1] : vector<16x16xf32> to vector<16xf32>
    %145 = vector.shape_cast %144 : vector<16xf32> to vector<16x1xf32>
    %146 = vector.broadcast %145 : vector<16x1xf32> to vector<16x16xf32>
    %147 = arith.subf %143, %146 : vector<16x16xf32>
    %148 = math.exp %147 : vector<16x16xf32>
    %cst_41 = arith.constant dense<0.000000e+00> : vector<16xf32>
    %149 = vector.multi_reduction <add>, %148, %cst_41 [1] : vector<16x16xf32> to vector<16xf32>
    %150 = vector.shape_cast %149 : vector<16xf32> to vector<16x1xf32>
    %151 = tpu.reciprocal %150 {approx = true} : vector<16x1xf32> -> vector<16x1xf32>
    %152 = vector.broadcast %151 : vector<16x1xf32> to vector<16x16xf32>
    %153 = arith.mulf %148, %152 : vector<16x16xf32>
    %154 = arith.truncf %153 : vector<16x16xf32> to vector<16x16xbf16>
    %cst_42 = arith.constant dense<0.000000e+00> : vector<16x32xf32>
    %155 = tpu.matmul %154, %138, %cst_42 {dimension_numbers = #tpu.dot_dimension_numbers<[1], [0], [0], [1], [0, 0, 1, 1], [], []>} : vector<16x16xbf16>, vector<16x32xbf16>, vector<16x32xf32> -> vector<16x32xf32>
    %156 = tpu.concatenate %63, %86, %109, %132, %155 in 1 : vector<16x32xf32>, vector<16x32xf32>, vector<16x32xf32>, vector<16x32xf32>, vector<16x32xf32> -> vector<16x160xf32>
    %157 = arith.truncf %156 : vector<16x160xf32> to vector<16x160xbf16>
    %c0_43 = arith.constant 0 : index
    %c0_44 = arith.constant 0 : index
    %c0_45 = arith.constant 0 : index
    %158 = vector.load %arg3[%c0_43, %c0_44, %c0_45] : memref<2x160x160xbf16, #tpu.memory_space<vmem>>, vector<1x160x160xbf16>
    %159 = vector.shape_cast %158 : vector<1x160x160xbf16> to vector<160x160xbf16>
    %cst_46 = arith.constant dense<0.000000e+00> : vector<16x160xf32>
    %160 = tpu.matmul %157, %159, %cst_46 {dimension_numbers = #tpu.dot_dimension_numbers<[1], [0], [0], [1], [0, 0, 1, 1], [], []>} : vector<16x160xbf16>, vector<160x160xbf16>, vector<16x160xf32> -> vector<16x160xf32>
    %c0_47 = arith.constant 0 : index
    %c0_48 = arith.constant 0 : index
    %c0_49 = arith.constant 0 : index
    %161 = vector.load %arg4[%c0_47, %c0_48, %c0_49] : memref<2x1x160xf32, #tpu.memory_space<vmem>>, vector<1x1x160xf32>
    %162 = vector.shape_cast %161 : vector<1x1x160xf32> to vector<1x160xf32>
    %163 = vector.broadcast %162 : vector<1x160xf32> to vector<16x160xf32>
    %164 = arith.addf %160, %163 : vector<16x160xf32>
    %165 = arith.addf %33, %164 : vector<16x160xf32>
    %c0_50 = arith.constant 0 : index
    %c0_51 = arith.constant 0 : index
    %c0_52 = arith.constant 0 : index
    %166 = vector.load %arg11[%c0_50, %c0_51, %c0_52] : memref<2x1x160xf32, #tpu.memory_space<vmem>>, vector<1x1x160xf32>
    %167 = vector.shape_cast %166 : vector<1x1x160xf32> to vector<1x160xf32>
    %c0_53 = arith.constant 0 : index
    %c0_54 = arith.constant 0 : index
    %c0_55 = arith.constant 0 : index
    %168 = vector.load %arg12[%c0_53, %c0_54, %c0_55] : memref<2x1x160xf32, #tpu.memory_space<vmem>>, vector<1x1x160xf32>
    %169 = vector.shape_cast %168 : vector<1x1x160xf32> to vector<1x160xf32>
    %cst_56 = arith.constant dense<0.000000e+00> : vector<16xf32>
    %170 = vector.multi_reduction <add>, %165, %cst_56 [1] : vector<16x160xf32> to vector<16xf32>
    %171 = vector.shape_cast %170 : vector<16xf32> to vector<16x1xf32>
    %cst_57 = arith.constant 1.600000e+02 : f32
    %172 = vector.broadcast %cst_57 : f32 to vector<16x1xf32>
    %173 = arith.divf %171, %172 : vector<16x1xf32>
    %174 = vector.broadcast %173 : vector<16x1xf32> to vector<16x160xf32>
    %175 = arith.subf %165, %174 : vector<16x160xf32>
    %176 = arith.mulf %175, %175 : vector<16x160xf32>
    %cst_58 = arith.constant dense<0.000000e+00> : vector<16xf32>
    %177 = vector.multi_reduction <add>, %176, %cst_58 [1] : vector<16x160xf32> to vector<16xf32>
    %178 = vector.shape_cast %177 : vector<16xf32> to vector<16x1xf32>
    %cst_59 = arith.constant 1.600000e+02 : f32
    %179 = vector.broadcast %cst_59 : f32 to vector<16x1xf32>
    %180 = arith.divf %178, %179 : vector<16x1xf32>
    %181 = vector.broadcast %173 : vector<16x1xf32> to vector<16x160xf32>
    %182 = arith.subf %165, %181 : vector<16x160xf32>
    %cst_60 = arith.constant 9.99999974E-6 : f32
    %183 = vector.broadcast %cst_60 : f32 to vector<16x1xf32>
    %184 = arith.addf %180, %183 : vector<16x1xf32>
    %185 = math.rsqrt %184 : vector<16x1xf32>
    %186 = vector.broadcast %185 : vector<16x1xf32> to vector<16x160xf32>
    %187 = arith.mulf %182, %186 : vector<16x160xf32>
    %188 = vector.broadcast %167 : vector<1x160xf32> to vector<16x160xf32>
    %189 = arith.mulf %187, %188 : vector<16x160xf32>
    %190 = vector.broadcast %169 : vector<1x160xf32> to vector<16x160xf32>
    %191 = arith.addf %189, %190 : vector<16x160xf32>
    %192 = arith.truncf %191 : vector<16x160xf32> to vector<16x160xbf16>
    %c0_61 = arith.constant 0 : index
    %c0_62 = arith.constant 0 : index
    %c0_63 = arith.constant 0 : index
    %193 = vector.load %arg5[%c0_61, %c0_62, %c0_63] : memref<2x160x640xbf16, #tpu.memory_space<vmem>>, vector<1x160x640xbf16>
    %194 = vector.shape_cast %193 : vector<1x160x640xbf16> to vector<160x640xbf16>
    %cst_64 = arith.constant dense<0.000000e+00> : vector<16x640xf32>
    %195 = tpu.matmul %192, %194, %cst_64 {dimension_numbers = #tpu.dot_dimension_numbers<[1], [0], [0], [1], [0, 0, 1, 1], [], []>} : vector<16x160xbf16>, vector<160x640xbf16>, vector<16x640xf32> -> vector<16x640xf32>
    %c0_65 = arith.constant 0 : index
    %c0_66 = arith.constant 0 : index
    %c0_67 = arith.constant 0 : index
    %196 = vector.load %arg6[%c0_65, %c0_66, %c0_67] : memref<2x1x640xf32, #tpu.memory_space<vmem>>, vector<1x1x640xf32>
    %197 = vector.shape_cast %196 : vector<1x1x640xf32> to vector<1x640xf32>
    %198 = vector.broadcast %197 : vector<1x640xf32> to vector<16x640xf32>
    %199 = arith.addf %195, %198 : vector<16x640xf32>
    %cst_68 = arith.constant 0.000000e+00 : f32
    %200 = vector.broadcast %cst_68 : f32 to vector<16x640xf32>
    %201 = arith.maximumf %199, %200 : vector<16x640xf32>
    %202 = arith.truncf %201 : vector<16x640xf32> to vector<16x640xbf16>
    %c0_69 = arith.constant 0 : index
    %c0_70 = arith.constant 0 : index
    %c0_71 = arith.constant 0 : index
    %203 = vector.load %arg7[%c0_69, %c0_70, %c0_71] : memref<2x640x160xbf16, #tpu.memory_space<vmem>>, vector<1x640x160xbf16>
    %204 = vector.shape_cast %203 : vector<1x640x160xbf16> to vector<640x160xbf16>
    %cst_72 = arith.constant dense<0.000000e+00> : vector<16x160xf32>
    %205 = tpu.matmul %202, %204, %cst_72 {dimension_numbers = #tpu.dot_dimension_numbers<[1], [0], [0], [1], [0, 0, 1, 1], [], []>} : vector<16x640xbf16>, vector<640x160xbf16>, vector<16x160xf32> -> vector<16x160xf32>
    %c0_73 = arith.constant 0 : index
    %c0_74 = arith.constant 0 : index
    %c0_75 = arith.constant 0 : index
    %206 = vector.load %arg8[%c0_73, %c0_74, %c0_75] : memref<2x1x160xf32, #tpu.memory_space<vmem>>, vector<1x1x160xf32>
    %207 = vector.shape_cast %206 : vector<1x1x160xf32> to vector<1x160xf32>
    %208 = vector.broadcast %207 : vector<1x160xf32> to vector<16x160xf32>
    %209 = arith.addf %205, %208 : vector<16x160xf32>
    %210 = arith.addf %191, %209 : vector<16x160xf32>
    %c1 = arith.constant 1 : index
    %c0_76 = arith.constant 0 : index
    %c0_77 = arith.constant 0 : index
    %211 = vector.load %arg9[%c1, %c0_76, %c0_77] : memref<2x1x160xf32, #tpu.memory_space<vmem>>, vector<1x1x160xf32>
    %212 = vector.shape_cast %211 : vector<1x1x160xf32> to vector<1x160xf32>
    %c1_78 = arith.constant 1 : index
    %c0_79 = arith.constant 0 : index
    %c0_80 = arith.constant 0 : index
    %213 = vector.load %arg10[%c1_78, %c0_79, %c0_80] : memref<2x1x160xf32, #tpu.memory_space<vmem>>, vector<1x1x160xf32>
    %214 = vector.shape_cast %213 : vector<1x1x160xf32> to vector<1x160xf32>
    %cst_81 = arith.constant dense<0.000000e+00> : vector<16xf32>
    %215 = vector.multi_reduction <add>, %210, %cst_81 [1] : vector<16x160xf32> to vector<16xf32>
    %216 = vector.shape_cast %215 : vector<16xf32> to vector<16x1xf32>
    %cst_82 = arith.constant 1.600000e+02 : f32
    %217 = vector.broadcast %cst_82 : f32 to vector<16x1xf32>
    %218 = arith.divf %216, %217 : vector<16x1xf32>
    %219 = vector.broadcast %218 : vector<16x1xf32> to vector<16x160xf32>
    %220 = arith.subf %210, %219 : vector<16x160xf32>
    %221 = arith.mulf %220, %220 : vector<16x160xf32>
    %cst_83 = arith.constant dense<0.000000e+00> : vector<16xf32>
    %222 = vector.multi_reduction <add>, %221, %cst_83 [1] : vector<16x160xf32> to vector<16xf32>
    %223 = vector.shape_cast %222 : vector<16xf32> to vector<16x1xf32>
    %cst_84 = arith.constant 1.600000e+02 : f32
    %224 = vector.broadcast %cst_84 : f32 to vector<16x1xf32>
    %225 = arith.divf %223, %224 : vector<16x1xf32>
    %226 = vector.broadcast %218 : vector<16x1xf32> to vector<16x160xf32>
    %227 = arith.subf %210, %226 : vector<16x160xf32>
    %cst_85 = arith.constant 9.99999974E-6 : f32
    %228 = vector.broadcast %cst_85 : f32 to vector<16x1xf32>
    %229 = arith.addf %225, %228 : vector<16x1xf32>
    %230 = math.rsqrt %229 : vector<16x1xf32>
    %231 = vector.broadcast %230 : vector<16x1xf32> to vector<16x160xf32>
    %232 = arith.mulf %227, %231 : vector<16x160xf32>
    %233 = vector.broadcast %212 : vector<1x160xf32> to vector<16x160xf32>
    %234 = arith.mulf %232, %233 : vector<16x160xf32>
    %235 = vector.broadcast %214 : vector<1x160xf32> to vector<16x160xf32>
    %236 = arith.addf %234, %235 : vector<16x160xf32>
    %237 = arith.truncf %236 : vector<16x160xf32> to vector<16x160xbf16>
    %c1_86 = arith.constant 1 : index
    %c0_87 = arith.constant 0 : index
    %c0_88 = arith.constant 0 : index
    %238 = vector.load %arg2[%c1_86, %c0_87, %c0_88] : memref<2x160x480xbf16, #tpu.memory_space<vmem>>, vector<1x160x480xbf16>
    %239 = vector.shape_cast %238 : vector<1x160x480xbf16> to vector<160x480xbf16>
    %cst_89 = arith.constant dense<0.000000e+00> : vector<16x480xf32>
    %240 = tpu.matmul %237, %239, %cst_89 {dimension_numbers = #tpu.dot_dimension_numbers<[1], [0], [0], [1], [0, 0, 1, 1], [], []>} : vector<16x160xbf16>, vector<160x480xbf16>, vector<16x480xf32> -> vector<16x480xf32>
    %241 = vector.extract_strided_slice %240 {offsets = [0, 0], sizes = [16, 160], strides = [1, 1]} : vector<16x480xf32> to vector<16x160xf32>
    %242 = vector.extract_strided_slice %240 {offsets = [0, 160], sizes = [16, 160], strides = [1, 1]} : vector<16x480xf32> to vector<16x160xf32>
    %243 = vector.extract_strided_slice %240 {offsets = [0, 320], sizes = [16, 160], strides = [1, 1]} : vector<16x480xf32> to vector<16x160xf32>
    %244 = vector.extract_strided_slice %241 {offsets = [0, 0], sizes = [16, 32], strides = [1, 1]} : vector<16x160xf32> to vector<16x32xf32>
    %245 = arith.truncf %244 : vector<16x32xf32> to vector<16x32xbf16>
    %246 = vector.extract_strided_slice %242 {offsets = [0, 0], sizes = [16, 32], strides = [1, 1]} : vector<16x160xf32> to vector<16x32xf32>
    %247 = arith.truncf %246 : vector<16x32xf32> to vector<16x32xbf16>
    %248 = vector.extract_strided_slice %243 {offsets = [0, 0], sizes = [16, 32], strides = [1, 1]} : vector<16x160xf32> to vector<16x32xf32>
    %249 = arith.truncf %248 : vector<16x32xf32> to vector<16x32xbf16>
    %250 = tpu.transpose %247, [1, 0] : vector<16x32xbf16> -> vector<32x16xbf16>
    %cst_90 = arith.constant dense<0.000000e+00> : vector<16x16xf32>
    %251 = tpu.matmul %245, %250, %cst_90 {dimension_numbers = #tpu.dot_dimension_numbers<[1], [0], [0], [1], [0, 0, 1, 1], [], []>} : vector<16x32xbf16>, vector<32x16xbf16>, vector<16x16xf32> -> vector<16x16xf32>
    %cst_91 = arith.constant 0.0790569409 : f32
    %252 = vector.broadcast %cst_91 : f32 to vector<16x16xf32>
    %253 = arith.mulf %251, %252 : vector<16x16xf32>
    %254 = arith.addf %253, %7 : vector<16x16xf32>
    %cst_92 = arith.constant dense<0xFF800000> : vector<16xf32>
    %255 = vector.multi_reduction <maximumf>, %254, %cst_92 [1] : vector<16x16xf32> to vector<16xf32>
    %256 = vector.shape_cast %255 : vector<16xf32> to vector<16x1xf32>
    %257 = vector.broadcast %256 : vector<16x1xf32> to vector<16x16xf32>
    %258 = arith.subf %254, %257 : vector<16x16xf32>
    %259 = math.exp %258 : vector<16x16xf32>
    %cst_93 = arith.constant dense<0.000000e+00> : vector<16xf32>
    %260 = vector.multi_reduction <add>, %259, %cst_93 [1] : vector<16x16xf32> to vector<16xf32>
    %261 = vector.shape_cast %260 : vector<16xf32> to vector<16x1xf32>
    %262 = tpu.reciprocal %261 {approx = true} : vector<16x1xf32> -> vector<16x1xf32>
    %263 = vector.broadcast %262 : vector<16x1xf32> to vector<16x16xf32>
    %264 = arith.mulf %259, %263 : vector<16x16xf32>
    %265 = arith.truncf %264 : vector<16x16xf32> to vector<16x16xbf16>
    %cst_94 = arith.constant dense<0.000000e+00> : vector<16x32xf32>
    %266 = tpu.matmul %265, %249, %cst_94 {dimension_numbers = #tpu.dot_dimension_numbers<[1], [0], [0], [1], [0, 0, 1, 1], [], []>} : vector<16x16xbf16>, vector<16x32xbf16>, vector<16x32xf32> -> vector<16x32xf32>
    %267 = vector.extract_strided_slice %241 {offsets = [0, 32], sizes = [16, 32], strides = [1, 1]} : vector<16x160xf32> to vector<16x32xf32>
    %268 = arith.truncf %267 : vector<16x32xf32> to vector<16x32xbf16>
    %269 = vector.extract_strided_slice %242 {offsets = [0, 32], sizes = [16, 32], strides = [1, 1]} : vector<16x160xf32> to vector<16x32xf32>
    %270 = arith.truncf %269 : vector<16x32xf32> to vector<16x32xbf16>
    %271 = vector.extract_strided_slice %243 {offsets = [0, 32], sizes = [16, 32], strides = [1, 1]} : vector<16x160xf32> to vector<16x32xf32>
    %272 = arith.truncf %271 : vector<16x32xf32> to vector<16x32xbf16>
    %273 = tpu.transpose %270, [1, 0] : vector<16x32xbf16> -> vector<32x16xbf16>
    %cst_95 = arith.constant dense<0.000000e+00> : vector<16x16xf32>
    %274 = tpu.matmul %268, %273, %cst_95 {dimension_numbers = #tpu.dot_dimension_numbers<[1], [0], [0], [1], [0, 0, 1, 1], [], []>} : vector<16x32xbf16>, vector<32x16xbf16>, vector<16x16xf32> -> vector<16x16xf32>
    %cst_96 = arith.constant 0.0790569409 : f32
    %275 = vector.broadcast %cst_96 : f32 to vector<16x16xf32>
    %276 = arith.mulf %274, %275 : vector<16x16xf32>
    %277 = arith.addf %276, %7 : vector<16x16xf32>
    %cst_97 = arith.constant dense<0xFF800000> : vector<16xf32>
    %278 = vector.multi_reduction <maximumf>, %277, %cst_97 [1] : vector<16x16xf32> to vector<16xf32>
    %279 = vector.shape_cast %278 : vector<16xf32> to vector<16x1xf32>
    %280 = vector.broadcast %279 : vector<16x1xf32> to vector<16x16xf32>
    %281 = arith.subf %277, %280 : vector<16x16xf32>
    %282 = math.exp %281 : vector<16x16xf32>
    %cst_98 = arith.constant dense<0.000000e+00> : vector<16xf32>
    %283 = vector.multi_reduction <add>, %282, %cst_98 [1] : vector<16x16xf32> to vector<16xf32>
    %284 = vector.shape_cast %283 : vector<16xf32> to vector<16x1xf32>
    %285 = tpu.reciprocal %284 {approx = true} : vector<16x1xf32> -> vector<16x1xf32>
    %286 = vector.broadcast %285 : vector<16x1xf32> to vector<16x16xf32>
    %287 = arith.mulf %282, %286 : vector<16x16xf32>
    %288 = arith.truncf %287 : vector<16x16xf32> to vector<16x16xbf16>
    %cst_99 = arith.constant dense<0.000000e+00> : vector<16x32xf32>
    %289 = tpu.matmul %288, %272, %cst_99 {dimension_numbers = #tpu.dot_dimension_numbers<[1], [0], [0], [1], [0, 0, 1, 1], [], []>} : vector<16x16xbf16>, vector<16x32xbf16>, vector<16x32xf32> -> vector<16x32xf32>
    %290 = vector.extract_strided_slice %241 {offsets = [0, 64], sizes = [16, 32], strides = [1, 1]} : vector<16x160xf32> to vector<16x32xf32>
    %291 = arith.truncf %290 : vector<16x32xf32> to vector<16x32xbf16>
    %292 = vector.extract_strided_slice %242 {offsets = [0, 64], sizes = [16, 32], strides = [1, 1]} : vector<16x160xf32> to vector<16x32xf32>
    %293 = arith.truncf %292 : vector<16x32xf32> to vector<16x32xbf16>
    %294 = vector.extract_strided_slice %243 {offsets = [0, 64], sizes = [16, 32], strides = [1, 1]} : vector<16x160xf32> to vector<16x32xf32>
    %295 = arith.truncf %294 : vector<16x32xf32> to vector<16x32xbf16>
    %296 = tpu.transpose %293, [1, 0] : vector<16x32xbf16> -> vector<32x16xbf16>
    %cst_100 = arith.constant dense<0.000000e+00> : vector<16x16xf32>
    %297 = tpu.matmul %291, %296, %cst_100 {dimension_numbers = #tpu.dot_dimension_numbers<[1], [0], [0], [1], [0, 0, 1, 1], [], []>} : vector<16x32xbf16>, vector<32x16xbf16>, vector<16x16xf32> -> vector<16x16xf32>
    %cst_101 = arith.constant 0.0790569409 : f32
    %298 = vector.broadcast %cst_101 : f32 to vector<16x16xf32>
    %299 = arith.mulf %297, %298 : vector<16x16xf32>
    %300 = arith.addf %299, %7 : vector<16x16xf32>
    %cst_102 = arith.constant dense<0xFF800000> : vector<16xf32>
    %301 = vector.multi_reduction <maximumf>, %300, %cst_102 [1] : vector<16x16xf32> to vector<16xf32>
    %302 = vector.shape_cast %301 : vector<16xf32> to vector<16x1xf32>
    %303 = vector.broadcast %302 : vector<16x1xf32> to vector<16x16xf32>
    %304 = arith.subf %300, %303 : vector<16x16xf32>
    %305 = math.exp %304 : vector<16x16xf32>
    %cst_103 = arith.constant dense<0.000000e+00> : vector<16xf32>
    %306 = vector.multi_reduction <add>, %305, %cst_103 [1] : vector<16x16xf32> to vector<16xf32>
    %307 = vector.shape_cast %306 : vector<16xf32> to vector<16x1xf32>
    %308 = tpu.reciprocal %307 {approx = true} : vector<16x1xf32> -> vector<16x1xf32>
    %309 = vector.broadcast %308 : vector<16x1xf32> to vector<16x16xf32>
    %310 = arith.mulf %305, %309 : vector<16x16xf32>
    %311 = arith.truncf %310 : vector<16x16xf32> to vector<16x16xbf16>
    %cst_104 = arith.constant dense<0.000000e+00> : vector<16x32xf32>
    %312 = tpu.matmul %311, %295, %cst_104 {dimension_numbers = #tpu.dot_dimension_numbers<[1], [0], [0], [1], [0, 0, 1, 1], [], []>} : vector<16x16xbf16>, vector<16x32xbf16>, vector<16x32xf32> -> vector<16x32xf32>
    %313 = vector.extract_strided_slice %241 {offsets = [0, 96], sizes = [16, 32], strides = [1, 1]} : vector<16x160xf32> to vector<16x32xf32>
    %314 = arith.truncf %313 : vector<16x32xf32> to vector<16x32xbf16>
    %315 = vector.extract_strided_slice %242 {offsets = [0, 96], sizes = [16, 32], strides = [1, 1]} : vector<16x160xf32> to vector<16x32xf32>
    %316 = arith.truncf %315 : vector<16x32xf32> to vector<16x32xbf16>
    %317 = vector.extract_strided_slice %243 {offsets = [0, 96], sizes = [16, 32], strides = [1, 1]} : vector<16x160xf32> to vector<16x32xf32>
    %318 = arith.truncf %317 : vector<16x32xf32> to vector<16x32xbf16>
    %319 = tpu.transpose %316, [1, 0] : vector<16x32xbf16> -> vector<32x16xbf16>
    %cst_105 = arith.constant dense<0.000000e+00> : vector<16x16xf32>
    %320 = tpu.matmul %314, %319, %cst_105 {dimension_numbers = #tpu.dot_dimension_numbers<[1], [0], [0], [1], [0, 0, 1, 1], [], []>} : vector<16x32xbf16>, vector<32x16xbf16>, vector<16x16xf32> -> vector<16x16xf32>
    %cst_106 = arith.constant 0.0790569409 : f32
    %321 = vector.broadcast %cst_106 : f32 to vector<16x16xf32>
    %322 = arith.mulf %320, %321 : vector<16x16xf32>
    %323 = arith.addf %322, %7 : vector<16x16xf32>
    %cst_107 = arith.constant dense<0xFF800000> : vector<16xf32>
    %324 = vector.multi_reduction <maximumf>, %323, %cst_107 [1] : vector<16x16xf32> to vector<16xf32>
    %325 = vector.shape_cast %324 : vector<16xf32> to vector<16x1xf32>
    %326 = vector.broadcast %325 : vector<16x1xf32> to vector<16x16xf32>
    %327 = arith.subf %323, %326 : vector<16x16xf32>
    %328 = math.exp %327 : vector<16x16xf32>
    %cst_108 = arith.constant dense<0.000000e+00> : vector<16xf32>
    %329 = vector.multi_reduction <add>, %328, %cst_108 [1] : vector<16x16xf32> to vector<16xf32>
    %330 = vector.shape_cast %329 : vector<16xf32> to vector<16x1xf32>
    %331 = tpu.reciprocal %330 {approx = true} : vector<16x1xf32> -> vector<16x1xf32>
    %332 = vector.broadcast %331 : vector<16x1xf32> to vector<16x16xf32>
    %333 = arith.mulf %328, %332 : vector<16x16xf32>
    %334 = arith.truncf %333 : vector<16x16xf32> to vector<16x16xbf16>
    %cst_109 = arith.constant dense<0.000000e+00> : vector<16x32xf32>
    %335 = tpu.matmul %334, %318, %cst_109 {dimension_numbers = #tpu.dot_dimension_numbers<[1], [0], [0], [1], [0, 0, 1, 1], [], []>} : vector<16x16xbf16>, vector<16x32xbf16>, vector<16x32xf32> -> vector<16x32xf32>
    %336 = vector.extract_strided_slice %241 {offsets = [0, 128], sizes = [16, 32], strides = [1, 1]} : vector<16x160xf32> to vector<16x32xf32>
    %337 = arith.truncf %336 : vector<16x32xf32> to vector<16x32xbf16>
    %338 = vector.extract_strided_slice %242 {offsets = [0, 128], sizes = [16, 32], strides = [1, 1]} : vector<16x160xf32> to vector<16x32xf32>
    %339 = arith.truncf %338 : vector<16x32xf32> to vector<16x32xbf16>
    %340 = vector.extract_strided_slice %243 {offsets = [0, 128], sizes = [16, 32], strides = [1, 1]} : vector<16x160xf32> to vector<16x32xf32>
    %341 = arith.truncf %340 : vector<16x32xf32> to vector<16x32xbf16>
    %342 = tpu.transpose %339, [1, 0] : vector<16x32xbf16> -> vector<32x16xbf16>
    %cst_110 = arith.constant dense<0.000000e+00> : vector<16x16xf32>
    %343 = tpu.matmul %337, %342, %cst_110 {dimension_numbers = #tpu.dot_dimension_numbers<[1], [0], [0], [1], [0, 0, 1, 1], [], []>} : vector<16x32xbf16>, vector<32x16xbf16>, vector<16x16xf32> -> vector<16x16xf32>
    %cst_111 = arith.constant 0.0790569409 : f32
    %344 = vector.broadcast %cst_111 : f32 to vector<16x16xf32>
    %345 = arith.mulf %343, %344 : vector<16x16xf32>
    %346 = arith.addf %345, %7 : vector<16x16xf32>
    %cst_112 = arith.constant dense<0xFF800000> : vector<16xf32>
    %347 = vector.multi_reduction <maximumf>, %346, %cst_112 [1] : vector<16x16xf32> to vector<16xf32>
    %348 = vector.shape_cast %347 : vector<16xf32> to vector<16x1xf32>
    %349 = vector.broadcast %348 : vector<16x1xf32> to vector<16x16xf32>
    %350 = arith.subf %346, %349 : vector<16x16xf32>
    %351 = math.exp %350 : vector<16x16xf32>
    %cst_113 = arith.constant dense<0.000000e+00> : vector<16xf32>
    %352 = vector.multi_reduction <add>, %351, %cst_113 [1] : vector<16x16xf32> to vector<16xf32>
    %353 = vector.shape_cast %352 : vector<16xf32> to vector<16x1xf32>
    %354 = tpu.reciprocal %353 {approx = true} : vector<16x1xf32> -> vector<16x1xf32>
    %355 = vector.broadcast %354 : vector<16x1xf32> to vector<16x16xf32>
    %356 = arith.mulf %351, %355 : vector<16x16xf32>
    %357 = arith.truncf %356 : vector<16x16xf32> to vector<16x16xbf16>
    %cst_114 = arith.constant dense<0.000000e+00> : vector<16x32xf32>
    %358 = tpu.matmul %357, %341, %cst_114 {dimension_numbers = #tpu.dot_dimension_numbers<[1], [0], [0], [1], [0, 0, 1, 1], [], []>} : vector<16x16xbf16>, vector<16x32xbf16>, vector<16x32xf32> -> vector<16x32xf32>
    %359 = tpu.concatenate %266, %289, %312, %335, %358 in 1 : vector<16x32xf32>, vector<16x32xf32>, vector<16x32xf32>, vector<16x32xf32>, vector<16x32xf32> -> vector<16x160xf32>
    %360 = arith.truncf %359 : vector<16x160xf32> to vector<16x160xbf16>
    %c1_115 = arith.constant 1 : index
    %c0_116 = arith.constant 0 : index
    %c0_117 = arith.constant 0 : index
    %361 = vector.load %arg3[%c1_115, %c0_116, %c0_117] : memref<2x160x160xbf16, #tpu.memory_space<vmem>>, vector<1x160x160xbf16>
    %362 = vector.shape_cast %361 : vector<1x160x160xbf16> to vector<160x160xbf16>
    %cst_118 = arith.constant dense<0.000000e+00> : vector<16x160xf32>
    %363 = tpu.matmul %360, %362, %cst_118 {dimension_numbers = #tpu.dot_dimension_numbers<[1], [0], [0], [1], [0, 0, 1, 1], [], []>} : vector<16x160xbf16>, vector<160x160xbf16>, vector<16x160xf32> -> vector<16x160xf32>
    %c1_119 = arith.constant 1 : index
    %c0_120 = arith.constant 0 : index
    %c0_121 = arith.constant 0 : index
    %364 = vector.load %arg4[%c1_119, %c0_120, %c0_121] : memref<2x1x160xf32, #tpu.memory_space<vmem>>, vector<1x1x160xf32>
    %365 = vector.shape_cast %364 : vector<1x1x160xf32> to vector<1x160xf32>
    %366 = vector.broadcast %365 : vector<1x160xf32> to vector<16x160xf32>
    %367 = arith.addf %363, %366 : vector<16x160xf32>
    %368 = arith.addf %236, %367 : vector<16x160xf32>
    %c1_122 = arith.constant 1 : index
    %c0_123 = arith.constant 0 : index
    %c0_124 = arith.constant 0 : index
    %369 = vector.load %arg11[%c1_122, %c0_123, %c0_124] : memref<2x1x160xf32, #tpu.memory_space<vmem>>, vector<1x1x160xf32>
    %370 = vector.shape_cast %369 : vector<1x1x160xf32> to vector<1x160xf32>
    %c1_125 = arith.constant 1 : index
    %c0_126 = arith.constant 0 : index
    %c0_127 = arith.constant 0 : index
    %371 = vector.load %arg12[%c1_125, %c0_126, %c0_127] : memref<2x1x160xf32, #tpu.memory_space<vmem>>, vector<1x1x160xf32>
    %372 = vector.shape_cast %371 : vector<1x1x160xf32> to vector<1x160xf32>
    %cst_128 = arith.constant dense<0.000000e+00> : vector<16xf32>
    %373 = vector.multi_reduction <add>, %368, %cst_128 [1] : vector<16x160xf32> to vector<16xf32>
    %374 = vector.shape_cast %373 : vector<16xf32> to vector<16x1xf32>
    %cst_129 = arith.constant 1.600000e+02 : f32
    %375 = vector.broadcast %cst_129 : f32 to vector<16x1xf32>
    %376 = arith.divf %374, %375 : vector<16x1xf32>
    %377 = vector.broadcast %376 : vector<16x1xf32> to vector<16x160xf32>
    %378 = arith.subf %368, %377 : vector<16x160xf32>
    %379 = arith.mulf %378, %378 : vector<16x160xf32>
    %cst_130 = arith.constant dense<0.000000e+00> : vector<16xf32>
    %380 = vector.multi_reduction <add>, %379, %cst_130 [1] : vector<16x160xf32> to vector<16xf32>
    %381 = vector.shape_cast %380 : vector<16xf32> to vector<16x1xf32>
    %cst_131 = arith.constant 1.600000e+02 : f32
    %382 = vector.broadcast %cst_131 : f32 to vector<16x1xf32>
    %383 = arith.divf %381, %382 : vector<16x1xf32>
    %384 = vector.broadcast %376 : vector<16x1xf32> to vector<16x160xf32>
    %385 = arith.subf %368, %384 : vector<16x160xf32>
    %cst_132 = arith.constant 9.99999974E-6 : f32
    %386 = vector.broadcast %cst_132 : f32 to vector<16x1xf32>
    %387 = arith.addf %383, %386 : vector<16x1xf32>
    %388 = math.rsqrt %387 : vector<16x1xf32>
    %389 = vector.broadcast %388 : vector<16x1xf32> to vector<16x160xf32>
    %390 = arith.mulf %385, %389 : vector<16x160xf32>
    %391 = vector.broadcast %370 : vector<1x160xf32> to vector<16x160xf32>
    %392 = arith.mulf %390, %391 : vector<16x160xf32>
    %393 = vector.broadcast %372 : vector<1x160xf32> to vector<16x160xf32>
    %394 = arith.addf %392, %393 : vector<16x160xf32>
    %395 = arith.truncf %394 : vector<16x160xf32> to vector<16x160xbf16>
    %c1_133 = arith.constant 1 : index
    %c0_134 = arith.constant 0 : index
    %c0_135 = arith.constant 0 : index
    %396 = vector.load %arg5[%c1_133, %c0_134, %c0_135] : memref<2x160x640xbf16, #tpu.memory_space<vmem>>, vector<1x160x640xbf16>
    %397 = vector.shape_cast %396 : vector<1x160x640xbf16> to vector<160x640xbf16>
    %cst_136 = arith.constant dense<0.000000e+00> : vector<16x640xf32>
    %398 = tpu.matmul %395, %397, %cst_136 {dimension_numbers = #tpu.dot_dimension_numbers<[1], [0], [0], [1], [0, 0, 1, 1], [], []>} : vector<16x160xbf16>, vector<160x640xbf16>, vector<16x640xf32> -> vector<16x640xf32>
    %c1_137 = arith.constant 1 : index
    %c0_138 = arith.constant 0 : index
    %c0_139 = arith.constant 0 : index
    %399 = vector.load %arg6[%c1_137, %c0_138, %c0_139] : memref<2x1x640xf32, #tpu.memory_space<vmem>>, vector<1x1x640xf32>
    %400 = vector.shape_cast %399 : vector<1x1x640xf32> to vector<1x640xf32>
    %401 = vector.broadcast %400 : vector<1x640xf32> to vector<16x640xf32>
    %402 = arith.addf %398, %401 : vector<16x640xf32>
    %cst_140 = arith.constant 0.000000e+00 : f32
    %403 = vector.broadcast %cst_140 : f32 to vector<16x640xf32>
    %404 = arith.maximumf %402, %403 : vector<16x640xf32>
    %405 = arith.truncf %404 : vector<16x640xf32> to vector<16x640xbf16>
    %c1_141 = arith.constant 1 : index
    %c0_142 = arith.constant 0 : index
    %c0_143 = arith.constant 0 : index
    %406 = vector.load %arg7[%c1_141, %c0_142, %c0_143] : memref<2x640x160xbf16, #tpu.memory_space<vmem>>, vector<1x640x160xbf16>
    %407 = vector.shape_cast %406 : vector<1x640x160xbf16> to vector<640x160xbf16>
    %cst_144 = arith.constant dense<0.000000e+00> : vector<16x160xf32>
    %408 = tpu.matmul %405, %407, %cst_144 {dimension_numbers = #tpu.dot_dimension_numbers<[1], [0], [0], [1], [0, 0, 1, 1], [], []>} : vector<16x640xbf16>, vector<640x160xbf16>, vector<16x160xf32> -> vector<16x160xf32>
    %c1_145 = arith.constant 1 : index
    %c0_146 = arith.constant 0 : index
    %c0_147 = arith.constant 0 : index
    %409 = vector.load %arg8[%c1_145, %c0_146, %c0_147] : memref<2x1x160xf32, #tpu.memory_space<vmem>>, vector<1x1x160xf32>
    %410 = vector.shape_cast %409 : vector<1x1x160xf32> to vector<1x160xf32>
    %411 = vector.broadcast %410 : vector<1x160xf32> to vector<16x160xf32>
    %412 = arith.addf %408, %411 : vector<16x160xf32>
    %413 = arith.addf %394, %412 : vector<16x160xf32>
    %c0_148 = arith.constant 0 : index
    %c0_149 = arith.constant 0 : index
    %414 = vector.load %arg13[%c0_148, %c0_149] : memref<1x160xf32, #tpu.memory_space<vmem>>, vector<1x160xf32>
    %c0_150 = arith.constant 0 : index
    %c0_151 = arith.constant 0 : index
    %415 = vector.load %arg14[%c0_150, %c0_151] : memref<1x160xf32, #tpu.memory_space<vmem>>, vector<1x160xf32>
    %cst_152 = arith.constant dense<0.000000e+00> : vector<16xf32>
    %416 = vector.multi_reduction <add>, %413, %cst_152 [1] : vector<16x160xf32> to vector<16xf32>
    %417 = vector.shape_cast %416 : vector<16xf32> to vector<16x1xf32>
    %cst_153 = arith.constant 1.600000e+02 : f32
    %418 = vector.broadcast %cst_153 : f32 to vector<16x1xf32>
    %419 = arith.divf %417, %418 : vector<16x1xf32>
    %420 = vector.broadcast %419 : vector<16x1xf32> to vector<16x160xf32>
    %421 = arith.subf %413, %420 : vector<16x160xf32>
    %422 = arith.mulf %421, %421 : vector<16x160xf32>
    %cst_154 = arith.constant dense<0.000000e+00> : vector<16xf32>
    %423 = vector.multi_reduction <add>, %422, %cst_154 [1] : vector<16x160xf32> to vector<16xf32>
    %424 = vector.shape_cast %423 : vector<16xf32> to vector<16x1xf32>
    %cst_155 = arith.constant 1.600000e+02 : f32
    %425 = vector.broadcast %cst_155 : f32 to vector<16x1xf32>
    %426 = arith.divf %424, %425 : vector<16x1xf32>
    %427 = vector.broadcast %419 : vector<16x1xf32> to vector<16x160xf32>
    %428 = arith.subf %413, %427 : vector<16x160xf32>
    %cst_156 = arith.constant 9.99999974E-6 : f32
    %429 = vector.broadcast %cst_156 : f32 to vector<16x1xf32>
    %430 = arith.addf %426, %429 : vector<16x1xf32>
    %431 = math.rsqrt %430 : vector<16x1xf32>
    %432 = vector.broadcast %431 : vector<16x1xf32> to vector<16x160xf32>
    %433 = arith.mulf %428, %432 : vector<16x160xf32>
    %434 = vector.broadcast %414 : vector<1x160xf32> to vector<16x160xf32>
    %435 = arith.mulf %433, %434 : vector<16x160xf32>
    %436 = vector.broadcast %415 : vector<1x160xf32> to vector<16x160xf32>
    %437 = arith.addf %435, %436 : vector<16x160xf32>
    %438 = arith.truncf %437 : vector<16x160xf32> to vector<16x160xbf16>
    %c0_157 = arith.constant 0 : index
    %c0_158 = arith.constant 0 : index
    %439 = vector.load %arg15[%c0_157, %c0_158] : memref<160x128xbf16, #tpu.memory_space<vmem>>, vector<160x128xbf16>
    %cst_159 = arith.constant dense<0.000000e+00> : vector<16x128xf32>
    %440 = tpu.matmul %438, %439, %cst_159 {dimension_numbers = #tpu.dot_dimension_numbers<[1], [0], [0], [1], [0, 0, 1, 1], [], []>} : vector<16x160xbf16>, vector<160x128xbf16>, vector<16x128xf32> -> vector<16x128xf32>
    %c0_160 = arith.constant 0 : index
    %c0_161 = arith.constant 0 : index
    %441 = vector.load %arg16[%c0_160, %c0_161] : memref<1x128xf32, #tpu.memory_space<vmem>>, vector<1x128xf32>
    %442 = vector.broadcast %441 : vector<1x128xf32> to vector<16x128xf32>
    %443 = arith.addf %440, %442 : vector<16x128xf32>
    %c0_162 = arith.constant 0 : index
    %c0_163 = arith.constant 0 : index
    %c0_164 = arith.constant 0 : index
    %444 = vector.load %arg17[%c0_162, %c0_163, %c0_164] : memref<1x16x128xf32, #tpu.memory_space<vmem>>, vector<1x16x128xf32>
    %445 = vector.shape_cast %444 : vector<1x16x128xf32> to vector<16x128xf32>
    %446 = vector.shape_cast %443 : vector<16x128xf32> to vector<1x16x128xf32>
    tpu.vector_store %arg17[%c0_162, %c0_163, %c0_164], %446 {strides = array<i32>} : memref<1x16x128xf32, #tpu.memory_space<vmem>>, vector<1x16x128xf32>,
    return
  }
  func.func @transform_0(%arg0: i32) -> (i32, i32, i32) {
    %c0_i32 = arith.constant 0 : i32
    %c0_i32_0 = arith.constant 0 : i32
    %c0_i32_1 = arith.constant 0 : i32
    return %arg0, %c0_i32, %c0_i32_0 : i32, i32, i32
  }
  func.func @transform_1(%arg0: i32) -> (i32, i32, i32) {
    %c0_i32 = arith.constant 0 : i32
    %c0_i32_0 = arith.constant 0 : i32
    %c0_i32_1 = arith.constant 0 : i32
    %c0_i32_2 = arith.constant 0 : i32
    return %c0_i32, %c0_i32_0, %c0_i32_1 : i32, i32, i32
  }
  func.func @transform_2(%arg0: i32) -> (i32, i32, i32) {
    %c0_i32 = arith.constant 0 : i32
    %c0_i32_0 = arith.constant 0 : i32
    %c0_i32_1 = arith.constant 0 : i32
    %c0_i32_2 = arith.constant 0 : i32
    return %c0_i32, %c0_i32_0, %c0_i32_1 : i32, i32, i32
  }
  func.func @transform_3(%arg0: i32) -> (i32, i32, i32) {
    %c0_i32 = arith.constant 0 : i32
    %c0_i32_0 = arith.constant 0 : i32
    %c0_i32_1 = arith.constant 0 : i32
    %c0_i32_2 = arith.constant 0 : i32
    return %c0_i32, %c0_i32_0, %c0_i32_1 : i32, i32, i32
  }
  func.func @transform_4(%arg0: i32) -> (i32, i32, i32) {
    %c0_i32 = arith.constant 0 : i32
    %c0_i32_0 = arith.constant 0 : i32
    %c0_i32_1 = arith.constant 0 : i32
    %c0_i32_2 = arith.constant 0 : i32
    return %c0_i32, %c0_i32_0, %c0_i32_1 : i32, i32, i32
  }
  func.func @transform_5(%arg0: i32) -> (i32, i32, i32) {
    %c0_i32 = arith.constant 0 : i32
    %c0_i32_0 = arith.constant 0 : i32
    %c0_i32_1 = arith.constant 0 : i32
    %c0_i32_2 = arith.constant 0 : i32
    return %c0_i32, %c0_i32_0, %c0_i32_1 : i32, i32, i32
  }
  func.func @transform_6(%arg0: i32) -> (i32, i32, i32) {
    %c0_i32 = arith.constant 0 : i32
    %c0_i32_0 = arith.constant 0 : i32
    %c0_i32_1 = arith.constant 0 : i32
    %c0_i32_2 = arith.constant 0 : i32
    return %c0_i32, %c0_i32_0, %c0_i32_1 : i32, i32, i32
  }
  func.func @transform_7(%arg0: i32) -> (i32, i32, i32) {
    %c0_i32 = arith.constant 0 : i32
    %c0_i32_0 = arith.constant 0 : i32
    %c0_i32_1 = arith.constant 0 : i32
    %c0_i32_2 = arith.constant 0 : i32
    return %c0_i32, %c0_i32_0, %c0_i32_1 : i32, i32, i32
  }
  func.func @transform_8(%arg0: i32) -> (i32, i32, i32) {
    %c0_i32 = arith.constant 0 : i32
    %c0_i32_0 = arith.constant 0 : i32
    %c0_i32_1 = arith.constant 0 : i32
    %c0_i32_2 = arith.constant 0 : i32
    return %c0_i32, %c0_i32_0, %c0_i32_1 : i32, i32, i32
  }
  func.func @transform_9(%arg0: i32) -> (i32, i32, i32) {
    %c0_i32 = arith.constant 0 : i32
    %c0_i32_0 = arith.constant 0 : i32
    %c0_i32_1 = arith.constant 0 : i32
    %c0_i32_2 = arith.constant 0 : i32
    return %c0_i32, %c0_i32_0, %c0_i32_1 : i32, i32, i32
  }
  func.func @transform_10(%arg0: i32) -> (i32, i32, i32) {
    %c0_i32 = arith.constant 0 : i32
    %c0_i32_0 = arith.constant 0 : i32
    %c0_i32_1 = arith.constant 0 : i32
    %c0_i32_2 = arith.constant 0 : i32
    return %c0_i32, %c0_i32_0, %c0_i32_1 : i32, i32, i32
  }
  func.func @transform_11(%arg0: i32) -> (i32, i32, i32) {
    %c0_i32 = arith.constant 0 : i32
    %c0_i32_0 = arith.constant 0 : i32
    %c0_i32_1 = arith.constant 0 : i32
    %c0_i32_2 = arith.constant 0 : i32
    return %c0_i32, %c0_i32_0, %c0_i32_1 : i32, i32, i32
  }
  func.func @transform_12(%arg0: i32) -> (i32, i32) {
    %c0_i32 = arith.constant 0 : i32
    %c0_i32_0 = arith.constant 0 : i32
    %c0_i32_1 = arith.constant 0 : i32
    return %c0_i32, %c0_i32_0 : i32, i32
  }
  func.func @transform_13(%arg0: i32) -> (i32, i32) {
    %c0_i32 = arith.constant 0 : i32
    %c0_i32_0 = arith.constant 0 : i32
    %c0_i32_1 = arith.constant 0 : i32
    return %c0_i32, %c0_i32_0 : i32, i32
  }
  func.func @transform_14(%arg0: i32) -> (i32, i32) {
    %c0_i32 = arith.constant 0 : i32
    %c0_i32_0 = arith.constant 0 : i32
    %c0_i32_1 = arith.constant 0 : i32
    return %c0_i32, %c0_i32_0 : i32, i32
  }
  func.func @transform_15(%arg0: i32) -> (i32, i32) {
    %c0_i32 = arith.constant 0 : i32
    %c0_i32_0 = arith.constant 0 : i32
    %c0_i32_1 = arith.constant 0 : i32
    return %c0_i32, %c0_i32_0 : i32, i32
  }
  func.func @transform_16(%arg0: i32) -> (i32, i32, i32) {
    %c0_i32 = arith.constant 0 : i32
    %c0_i32_0 = arith.constant 0 : i32
    %c0_i32_1 = arith.constant 0 : i32
    return %arg0, %c0_i32, %c0_i32_0 : i32, i32, i32
  }
}

</mosaic_0001>

<llo_original>
// kernel: transformer_decoder.1
$region0: #{transformer_decoder.1}
  #allocation0 [shape = 'u32[]', space=smem, size = 0x4, offset = 0x4, fixed_abs, tag = 'smem constant byte address 0x4 - core index']
  #allocation1 [shape = 'u32[72,128]{1,0:T(1,128)}', space=vmem, size = 0x9000, scoped, tag = 'internal scratch']
  %s0 = inlined_call_operand.vmem [shape: f32[2,16,160], index: 0, kind: input, shape index: {}]
  %s1 = inlined_call_operand.vmem [shape: bf16[2,160,480], index: 1, kind: input, shape index: {}]
  %s2 = inlined_call_operand.vmem [shape: bf16[2,160,160], index: 2, kind: input, shape index: {}]
  %s3 = inlined_call_operand.vmem [shape: f32[2,1,160], index: 3, kind: input, shape index: {}]
  %s4 = inlined_call_operand.vmem [shape: bf16[2,160,640], index: 4, kind: input, shape index: {}]
  %s5 = inlined_call_operand.vmem [shape: f32[2,1,640], index: 5, kind: input, shape index: {}]
  %s6 = inlined_call_operand.vmem [shape: bf16[2,640,160], index: 6, kind: input, shape index: {}]
  %s7 = inlined_call_operand.vmem [shape: f32[2,1,160], index: 7, kind: input, shape index: {}]
  %s8 = inlined_call_operand.vmem [shape: f32[2,1,160], index: 8, kind: input, shape index: {}]
  %s9 = inlined_call_operand.vmem [shape: f32[2,1,160], index: 9, kind: input, shape index: {}]
  %s10 = inlined_call_operand.vmem [shape: f32[2,1,160], index: 10, kind: input, shape index: {}]
  %s11 = inlined_call_operand.vmem [shape: f32[2,1,160], index: 11, kind: input, shape index: {}]
  %s12 = inlined_call_operand.vmem [shape: f32[1,160], index: 12, kind: input, shape index: {}]
  %s13 = inlined_call_operand.vmem [shape: f32[1,160], index: 13, kind: input, shape index: {}]
  %s14 = inlined_call_operand.vmem [shape: bf16[160,128], index: 14, kind: input, shape index: {}]
  %s15 = inlined_call_operand.vmem [shape: f32[1,128], index: 15, kind: input, shape index: {}]
  %s16 = inlined_call_operand.hbm [shape: f32[2,16,128], index: 16, kind: output, shape index: {}]
  %s17 = sld [smem:[#allocation0]]
  $region97: #{transformer_decoder.1} parent=0
    _
  %s19 = ssub.s32 1, %s17
  %s20 = scalar_select 0, %s19, %s17
  $region1: #{transformer_decoder.1} parent=0
    #allocation2 [shape = 'u8[16384]{0}', space=vmem, size = 0x4000, scoped, tag = 'output window, operand 0']
    #allocation3 [shape = 's32[2]{0}', space=sflag, size = 0x8, scoped, tag = 'scoped memory for transformer_decoder.1']
    %21 = vsyncpa [#allocation3], 0
    %s22 = scalar_lea.sflag [#allocation3], 1
    %23 = vsyncpa %s22, 0
    loop: start=0, step=1, limit=4
    $region2: #{transformer_decoder.1} parent=1 // loop_pre_header
      _
    $region3: #{transformer_decoder.1} parent=1 // loop_header
      %s25 = sphi 0, %s29
      %p26 = scmp.ge.s32.totalorder %s25, 4
      %s35 = sphi 0, %s37
      %s38 = sphi 0, %s35
      %s39 = sphi 0, %s38
      %s55 = sphi 0, %s39
      %s59 = sphi 0, %s59
      %s61 = sphi 0, %s59
      %s62 = sphi 0, %s61
      %s76 = sphi 0, %s62
      %s80 = sphi 0, %s80
      %s82 = sphi 0, %s80
      %s83 = sphi 0, %s82
      %s97 = sphi 0, %s83
      %s101 = sphi 0, %s101
      %s103 = sphi 0, %s101
      %s104 = sphi 0, %s103
      %s118 = sphi 0, %s104
      %s122 = sphi 0, %s122
      %s124 = sphi 0, %s122
      %s125 = sphi 0, %s124
      %s139 = sphi 0, %s125
      %s143 = sphi 0, %s143
      %s145 = sphi 0, %s143
      %s146 = sphi 0, %s145
      %s160 = sphi 0, %s146
      %s164 = sphi 0, %s164
      %s166 = sphi 0, %s164
      %s167 = sphi 0, %s166
      %s181 = sphi 0, %s167
      %s185 = sphi 0, %s185
      %s187 = sphi 0, %s185
      %s188 = sphi 0, %s187
      %s202 = sphi 0, %s188
      %s206 = sphi 0, %s206
      %s208 = sphi 0, %s206
      %s209 = sphi 0, %s208
      %s223 = sphi 0, %s209
      %s227 = sphi 0, %s227
      %s229 = sphi 0, %s227
      %s230 = sphi 0, %s229
      %s244 = sphi 0, %s230
      %s248 = sphi 0, %s248
      %s250 = sphi 0, %s248
      %s251 = sphi 0, %s250
      %s265 = sphi 0, %s251
      %s269 = sphi 0, %s269
      %s271 = sphi 0, %s269
      %s272 = sphi 0, %s271
      %s286 = sphi 0, %s272
      %s290 = sphi 0, %s290
      %s292 = sphi 0, %s290
      %s293 = sphi 0, %s292
      %s307 = sphi 0, %s293
      %s311 = sphi 0, %s311
      %s313 = sphi 0, %s311
      %s314 = sphi 0, %s313
      %s328 = sphi 0, %s314
      %s332 = sphi 0, %s332
      %s334 = sphi 0, %s332
      %s335 = sphi 0, %s334
      %s349 = sphi 0, %s335
      %s353 = sphi 0, %s353
      %s355 = sphi 0, %s353
      %s356 = sphi 0, %s355
      %s370 = sphi 0, %s356
      %s376 = sphi 0, %s378
      %s379 = sphi 0, %s376
      %s380 = sphi 0, %s379
      %s396 = sphi 0, %s380
    $region4: #{transformer_decoder.1} parent=1 // loop_header_branch
      %28 = sbr.rel (%p26) target = $region8
    $region5: #{transformer_decoder.1} parent=1 // loop_body
      %s30 = ssub.s32 %s25, 1
      %s31 = ssub.s32 %s25, 2
      %s32 = sadd.s32 %s25, 1
      %s33 = ssub.s32 %s25, %s32
      %p34 = scmp.eq.s32.totalorder %s33, 0
      %s36 = sadd.s32 %s35, 1
      %s37 = scalar_select %p34, %s35, %s36
      %p40 = pneg %p34
      %p41 = scmp.eq.s32.totalorder %s25, 1
      %p42 = por %p40, %p41
      %p43 = scmp.ne.s32.totalorder %s35, %s38
      %p44 = scmp.eq.s32.totalorder %s25, 0
      %p45 = por %p43, %p44
      %p46 = scmp.ne.s32.totalorder %s35, %s38
      %p47 = scmp.eq.s32.totalorder %s30, 1
      %p48 = por %p46, %p47
      %p49 = scmp.ne.s32.totalorder %s38, %s39
      %p50 = scmp.eq.s32.totalorder %s30, 0
      %p51 = por %p49, %p50
      %p52 = scmp.ne.s32.totalorder %s38, %s39
      %p53 = scmp.eq.s32.totalorder %s31, 1
      %p54 = por %p52, %p53
      %p56 = scmp.ne.s32.totalorder %s39, %s55
      %p57 = scmp.eq.s32.totalorder %s31, 0
      %p58 = por %p56, %p57
      %s60 = sadd.s32 %s59, 1
      %p63 = scmp.eq.s32.totalorder %s25, 1
      %p64 = scmp.ne.s32.totalorder %s59, %s61
      %p65 = scmp.eq.s32.totalorder %s25, 0
      %p66 = por %p64, %p65
      %p67 = scmp.ne.s32.totalorder %s59, %s61
      %p68 = scmp.eq.s32.totalorder %s30, 1
      %p69 = por %p67, %p68
      %p70 = scmp.ne.s32.totalorder %s61, %s62
      %p71 = scmp.eq.s32.totalorder %s30, 0
      %p72 = por %p70, %p71
      %p73 = scmp.ne.s32.totalorder %s61, %s62
      %p74 = scmp.eq.s32.totalorder %s31, 1
      %p75 = por %p73, %p74
      %p77 = scmp.ne.s32.totalorder %s62, %s76
      %p78 = scmp.eq.s32.totalorder %s31, 0
      %p79 = por %p77, %p78
      %s81 = sadd.s32 %s80, 1
      %p84 = scmp.eq.s32.totalorder %s25, 1
      %p85 = scmp.ne.s32.totalorder %s80, %s82
      %p86 = scmp.eq.s32.totalorder %s25, 0
      %p87 = por %p85, %p86
      %p88 = scmp.ne.s32.totalorder %s80, %s82
      %p89 = scmp.eq.s32.totalorder %s30, 1
      %p90 = por %p88, %p89
      %p91 = scmp.ne.s32.totalorder %s82, %s83
      %p92 = scmp.eq.s32.totalorder %s30, 0
      %p93 = por %p91, %p92
      %p94 = scmp.ne.s32.totalorder %s82, %s83
      %p95 = scmp.eq.s32.totalorder %s31, 1
      %p96 = por %p94, %p95
      %p98 = scmp.ne.s32.totalorder %s83, %s97
      %p99 = scmp.eq.s32.totalorder %s31, 0
      %p100 = por %p98, %p99
      %s102 = sadd.s32 %s101, 1
      %p105 = scmp.eq.s32.totalorder %s25, 1
      %p106 = scmp.ne.s32.totalorder %s101, %s103
      %p107 = scmp.eq.s32.totalorder %s25, 0
      %p108 = por %p106, %p107
      %p109 = scmp.ne.s32.totalorder %s101, %s103
      %p110 = scmp.eq.s32.totalorder %s30, 1
      %p111 = por %p109, %p110
      %p112 = scmp.ne.s32.totalorder %s103, %s104
      %p113 = scmp.eq.s32.totalorder %s30, 0
      %p114 = por %p112, %p113
      %p115 = scmp.ne.s32.totalorder %s103, %s104
      %p116 = scmp.eq.s32.totalorder %s31, 1
      %p117 = por %p115, %p116
      %p119 = scmp.ne.s32.totalorder %s104, %s118
      %p120 = scmp.eq.s32.totalorder %s31, 0
      %p121 = por %p119, %p120
      %s123 = sadd.s32 %s122, 1
      %p126 = scmp.eq.s32.totalorder %s25, 1
      %p127 = scmp.ne.s32.totalorder %s122, %s124
      %p128 = scmp.eq.s32.totalorder %s25, 0
      %p129 = por %p127, %p128
      %p130 = scmp.ne.s32.totalorder %s122, %s124
      %p131 = scmp.eq.s32.totalorder %s30, 1
      %p132 = por %p130, %p131
      %p133 = scmp.ne.s32.totalorder %s124, %s125
      %p134 = scmp.eq.s32.totalorder %s30, 0
      %p135 = por %p133, %p134
      %p136 = scmp.ne.s32.totalorder %s124, %s125
      %p137 = scmp.eq.s32.totalorder %s31, 1
      %p138 = por %p136, %p137
      %p140 = scmp.ne.s32.totalorder %s125, %s139
      %p141 = scmp.eq.s32.totalorder %s31, 0
      %p142 = por %p140, %p141
      %s144 = sadd.s32 %s143, 1
      %p147 = scmp.eq.s32.totalorder %s25, 1
      %p148 = scmp.ne.s32.totalorder %s143, %s145
      %p149 = scmp.eq.s32.totalorder %s25, 0
      %p150 = por %p148, %p149
      %p151 = scmp.ne.s32.totalorder %s143, %s145
      %p152 = scmp.eq.s32.totalorder %s30, 1
      %p153 = por %p151, %p152
      %p154 = scmp.ne.s32.totalorder %s145, %s146
      %p155 = scmp.eq.s32.totalorder %s30, 0
      %p156 = por %p154, %p155
      %p157 = scmp.ne.s32.totalorder %s145, %s146
      %p158 = scmp.eq.s32.totalorder %s31, 1
      %p159 = por %p157, %p158
      %p161 = scmp.ne.s32.totalorder %s146, %s160
      %p162 = scmp.eq.s32.totalorder %s31, 0
      %p163 = por %p161, %p162
      %s165 = sadd.s32 %s164, 1
      %p168 = scmp.eq.s32.totalorder %s25, 1
      %p169 = scmp.ne.s32.totalorder %s164, %s166
      %p170 = scmp.eq.s32.totalorder %s25, 0
      %p171 = por %p169, %p170
      %p172 = scmp.ne.s32.totalorder %s164, %s166
      %p173 = scmp.eq.s32.totalorder %s30, 1
      %p174 = por %p172, %p173
      %p175 = scmp.ne.s32.totalorder %s166, %s167
      %p176 = scmp.eq.s32.totalorder %s30, 0
      %p177 = por %p175, %p176
      %p178 = scmp.ne.s32.totalorder %s166, %s167
      %p179 = scmp.eq.s32.totalorder %s31, 1
      %p180 = por %p178, %p179
      %p182 = scmp.ne.s32.totalorder %s167, %s181
      %p183 = scmp.eq.s32.totalorder %s31, 0
      %p184 = por %p182, %p183
      %s186 = sadd.s32 %s185, 1
      %p189 = scmp.eq.s32.totalorder %s25, 1
      %p190 = scmp.ne.s32.totalorder %s185, %s187
      %p191 = scmp.eq.s32.totalorder %s25, 0
      %p192 = por %p190, %p191
      %p193 = scmp.ne.s32.totalorder %s185, %s187
      %p194 = scmp.eq.s32.totalorder %s30, 1
      %p195 = por %p193, %p194
      %p196 = scmp.ne.s32.totalorder %s187, %s188
      %p197 = scmp.eq.s32.totalorder %s30, 0
      %p198 = por %p196, %p197
      %p199 = scmp.ne.s32.totalorder %s187, %s188
      %p200 = scmp.eq.s32.totalorder %s31, 1
      %p201 = por %p199, %p200
      %p203 = scmp.ne.s32.totalorder %s188, %s202
      %p204 = scmp.eq.s32.totalorder %s31, 0
      %p205 = por %p203, %p204
      %s207 = sadd.s32 %s206, 1
      %p210 = scmp.eq.s32.totalorder %s25, 1
      %p211 = scmp.ne.s32.totalorder %s206, %s208
      %p212 = scmp.eq.s32.totalorder %s25, 0
      %p213 = por %p211, %p212
      %p214 = scmp.ne.s32.totalorder %s206, %s208
      %p215 = scmp.eq.s32.totalorder %s30, 1
      %p216 = por %p214, %p215
      %p217 = scmp.ne.s32.totalorder %s208, %s209
      %p218 = scmp.eq.s32.totalorder %s30, 0
      %p219 = por %p217, %p218
      %p220 = scmp.ne.s32.totalorder %s208, %s209
      %p221 = scmp.eq.s32.totalorder %s31, 1
      %p222 = por %p220, %p221
      %p224 = scmp.ne.s32.totalorder %s209, %s223
      %p225 = scmp.eq.s32.totalorder %s31, 0
      %p226 = por %p224, %p225
      %s228 = sadd.s32 %s227, 1
      %p231 = scmp.eq.s32.totalorder %s25, 1
      %p232 = scmp.ne.s32.totalorder %s227, %s229
      %p233 = scmp.eq.s32.totalorder %s25, 0
      %p234 = por %p232, %p233
      %p235 = scmp.ne.s32.totalorder %s227, %s229
      %p236 = scmp.eq.s32.totalorder %s30, 1
      %p237 = por %p235, %p236
      %p238 = scmp.ne.s32.totalorder %s229, %s230
      %p239 = scmp.eq.s32.totalorder %s30, 0
      %p240 = por %p238, %p239
      %p241 = scmp.ne.s32.totalorder %s229, %s230
      %p242 = scmp.eq.s32.totalorder %s31, 1
      %p243 = por %p241, %p242
      %p245 = scmp.ne.s32.totalorder %s230, %s244
      %p246 = scmp.eq.s32.totalorder %s31, 0
      %p247 = por %p245, %p246
      %s249 = sadd.s32 %s248, 1
      %p252 = scmp.eq.s32.totalorder %s25, 1
      %p253 = scmp.ne.s32.totalorder %s248, %s250
      %p254 = scmp.eq.s32.totalorder %s25, 0
      %p255 = por %p253, %p254
      %p256 = scmp.ne.s32.totalorder %s248, %s250
      %p257 = scmp.eq.s32.totalorder %s30, 1
      %p258 = por %p256, %p257
      %p259 = scmp.ne.s32.totalorder %s250, %s251
      %p260 = scmp.eq.s32.totalorder %s30, 0
      %p261 = por %p259, %p260
      %p262 = scmp.ne.s32.totalorder %s250, %s251
      %p263 = scmp.eq.s32.totalorder %s31, 1
      %p264 = por %p262, %p263
      %p266 = scmp.ne.s32.totalorder %s251, %s265
      %p267 = scmp.eq.s32.totalorder %s31, 0
      %p268 = por %p266, %p267
      %s270 = sadd.s32 %s269, 1
      %p273 = scmp.eq.s32.totalorder %s25, 1
      %p274 = scmp.ne.s32.totalorder %s269, %s271
      %p275 = scmp.eq.s32.totalorder %s25, 0
      %p276 = por %p274, %p275
      %p277 = scmp.ne.s32.totalorder %s269, %s271
      %p278 = scmp.eq.s32.totalorder %s30, 1
      %p279 = por %p277, %p278
      %p280 = scmp.ne.s32.totalorder %s271, %s272
      %p281 = scmp.eq.s32.totalorder %s30, 0
      %p282 = por %p280, %p281
      %p283 = scmp.ne.s32.totalorder %s271, %s272
      %p284 = scmp.eq.s32.totalorder %s31, 1
      %p285 = por %p283, %p284
      %p287 = scmp.ne.s32.totalorder %s272, %s286
      %p288 = scmp.eq.s32.totalorder %s31, 0
      %p289 = por %p287, %p288
      %s291 = sadd.s32 %s290, 1
      %p294 = scmp.eq.s32.totalorder %s25, 1
      %p295 = scmp.ne.s32.totalorder %s290, %s292
      %p296 = scmp.eq.s32.totalorder %s25, 0
      %p297 = por %p295, %p296
      %p298 = scmp.ne.s32.totalorder %s290, %s292
      %p299 = scmp.eq.s32.totalorder %s30, 1
      %p300 = por %p298, %p299
      %p301 = scmp.ne.s32.totalorder %s292, %s293
      %p302 = scmp.eq.s32.totalorder %s30, 0
      %p303 = por %p301, %p302
      %p304 = scmp.ne.s32.totalorder %s292, %s293
      %p305 = scmp.eq.s32.totalorder %s31, 1
      %p306 = por %p304, %p305
      %p308 = scmp.ne.s32.totalorder %s293, %s307
      %p309 = scmp.eq.s32.totalorder %s31, 0
      %p310 = por %p308, %p309
      %s312 = sadd.s32 %s311, 1
      %p315 = scmp.eq.s32.totalorder %s25, 1
      %p316 = scmp.ne.s32.totalorder %s311, %s313
      %p317 = scmp.eq.s32.totalorder %s25, 0
      %p318 = por %p316, %p317
      %p319 = scmp.ne.s32.totalorder %s311, %s313
      %p320 = scmp.eq.s32.totalorder %s30, 1
      %p321 = por %p319, %p320
      %p322 = scmp.ne.s32.totalorder %s313, %s314
      %p323 = scmp.eq.s32.totalorder %s30, 0
      %p324 = por %p322, %p323
      %p325 = scmp.ne.s32.totalorder %s313, %s314
      %p326 = scmp.eq.s32.totalorder %s31, 1
      %p327 = por %p325, %p326
      %p329 = scmp.ne.s32.totalorder %s314, %s328
      %p330 = scmp.eq.s32.totalorder %s31, 0
      %p331 = por %p329, %p330
      %s333 = sadd.s32 %s332, 1
      %p336 = scmp.eq.s32.totalorder %s25, 1
      %p337 = scmp.ne.s32.totalorder %s332, %s334
      %p338 = scmp.eq.s32.totalorder %s25, 0
      %p339 = por %p337, %p338
      %p340 = scmp.ne.s32.totalorder %s332, %s334
      %p341 = scmp.eq.s32.totalorder %s30, 1
      %p342 = por %p340, %p341
      %p343 = scmp.ne.s32.totalorder %s334, %s335
      %p344 = scmp.eq.s32.totalorder %s30, 0
      %p345 = por %p343, %p344
      %p346 = scmp.ne.s32.totalorder %s334, %s335
      %p347 = scmp.eq.s32.totalorder %s31, 1
      %p348 = por %p346, %p347
      %p350 = scmp.ne.s32.totalorder %s335, %s349
      %p351 = scmp.eq.s32.totalorder %s31, 0
      %p352 = por %p350, %p351
      %s354 = sadd.s32 %s353, 1
      %p357 = scmp.eq.s32.totalorder %s25, 1
      %p358 = scmp.ne.s32.totalorder %s353, %s355
      %p359 = scmp.eq.s32.totalorder %s25, 0
      %p360 = por %p358, %p359
      %p361 = scmp.ne.s32.totalorder %s353, %s355
      %p362 = scmp.eq.s32.totalorder %s30, 1
      %p363 = por %p361, %p362
      %p364 = scmp.ne.s32.totalorder %s355, %s356
      %p365 = scmp.eq.s32.totalorder %s30, 0
      %p366 = por %p364, %p365
      %p367 = scmp.ne.s32.totalorder %s355, %s356
      %p368 = scmp.eq.s32.totalorder %s31, 1
      %p369 = por %p367, %p368
      %p371 = scmp.ne.s32.totalorder %s356, %s370
      %p372 = scmp.eq.s32.totalorder %s31, 0
      %p373 = por %p371, %p372
      %s374 = ssub.s32 %s25, %s32
      %p375 = scmp.eq.s32.totalorder %s374, 0
      %s377 = sadd.s32 %s376, 1
      %s378 = scalar_select %p375, %s376, %s377
      %p381 = pneg %p375
      %p382 = scmp.eq.s32.totalorder %s25, 1
      %p383 = por %p381, %p382
      %p384 = scmp.ne.s32.totalorder %s376, %s379
      %p385 = scmp.eq.s32.totalorder %s25, 0
      %p386 = por %p384, %p385
      %p387 = scmp.ne.s32.totalorder %s376, %s379
      %p388 = scmp.eq.s32.totalorder %s30, 1
      %p389 = por %p387, %p388
      %p390 = scmp.ne.s32.totalorder %s379, %s380
      %p391 = scmp.eq.s32.totalorder %s30, 0
      %p392 = por %p390, %p391
      %p393 = scmp.ne.s32.totalorder %s379, %s380
      %p394 = scmp.eq.s32.totalorder %s31, 1
      %p395 = por %p393, %p394
      %p397 = scmp.ne.s32.totalorder %s380, %s396
      %p398 = scmp.eq.s32.totalorder %s31, 0
      %p399 = por %p397, %p398
      %p400 = scmp.le.s32.totalorder 1, %s25
      %p401 = scmp.lt.s32.totalorder %s25, 3
      %p402 = pnand %p400, %p401
      %p403 = pneg %p402
      // Predicated region
      $region9: #{transformer_decoder.1} parent=5 // pred_check
        _
      $region10: #{transformer_decoder.1} parent=5 // pred_check_branch
        %405 = sbr.rel (%p402) target = $region12
      $region11: #{transformer_decoder.1} parent=5 // pred_region
        %s406 = ssub.s32 %s25, 1
        // Predicated region
        $region13: #{transformer_decoder.1} parent=11 // pred_check
          %p407 = pneg %p72
        $region14: #{transformer_decoder.1} parent=11 // pred_check_branch
          %409 = sbr.rel (%p407) target = $region16
        $region15: #{transformer_decoder.1} parent=11 // pred_region
          _
        $region16: #{transformer_decoder.1} parent=11 // pred_fallthru
          _
        // Predicated region
        $region17: #{transformer_decoder.1} parent=11 // pred_check
          %p410 = pneg %p93
        $region18: #{transformer_decoder.1} parent=11 // pred_check_branch
          %412 = sbr.rel (%p410) target = $region20
        $region19: #{transformer_decoder.1} parent=11 // pred_region
          _
        $region20: #{transformer_decoder.1} parent=11 // pred_fallthru
          _
        // Predicated region
        $region21: #{transformer_decoder.1} parent=11 // pred_check
          %p413 = pneg %p114
        $region22: #{transformer_decoder.1} parent=11 // pred_check_branch
          %415 = sbr.rel (%p413) target = $region24
        $region23: #{transformer_decoder.1} parent=11 // pred_region
          _
        $region24: #{transformer_decoder.1} parent=11 // pred_fallthru
          _
        // Predicated region
        $region25: #{transformer_decoder.1} parent=11 // pred_check
          %p416 = pneg %p135
        $region26: #{transformer_decoder.1} parent=11 // pred_check_branch
          %418 = sbr.rel (%p416) target = $region28
        $region27: #{transformer_decoder.1} parent=11 // pred_region
          _
        $region28: #{transformer_decoder.1} parent=11 // pred_fallthru
          _
        // Predicated region
        $region29: #{transformer_decoder.1} parent=11 // pred_check
          %p419 = pneg %p156
        $region30: #{transformer_decoder.1} parent=11 // pred_check_branch
          %421 = sbr.rel (%p419) target = $region32
        $region31: #{transformer_decoder.1} parent=11 // pred_region
          _
        $region32: #{transformer_decoder.1} parent=11 // pred_fallthru
          _
        // Predicated region
        $region33: #{transformer_decoder.1} parent=11 // pred_check
          %p422 = pneg %p177
        $region34: #{transformer_decoder.1} parent=11 // pred_check_branch
          %424 = sbr.rel (%p422) target = $region36
        $region35: #{transformer_decoder.1} parent=11 // pred_region
          _
        $region36: #{transformer_decoder.1} parent=11 // pred_fallthru
          _
        // Predicated region
        $region37: #{transformer_decoder.1} parent=11 // pred_check
          %p425 = pneg %p198
        $region38: #{transformer_decoder.1} parent=11 // pred_check_branch
          %427 = sbr.rel (%p425) target = $region40
        $region39: #{transformer_decoder.1} parent=11 // pred_region
          _
        $region40: #{transformer_decoder.1} parent=11 // pred_fallthru
          _
        // Predicated region
        $region41: #{transformer_decoder.1} parent=11 // pred_check
          %p428 = pneg %p219
        $region42: #{transformer_decoder.1} parent=11 // pred_check_branch
          %430 = sbr.rel (%p428) target = $region44
        $region43: #{transformer_decoder.1} parent=11 // pred_region
          _
        $region44: #{transformer_decoder.1} parent=11 // pred_fallthru
          _
        // Predicated region
        $region45: #{transformer_decoder.1} parent=11 // pred_check
          %p431 = pneg %p240
        $region46: #{transformer_decoder.1} parent=11 // pred_check_branch
          %433 = sbr.rel (%p431) target = $region48
        $region47: #{transformer_decoder.1} parent=11 // pred_region
          _
        $region48: #{transformer_decoder.1} parent=11 // pred_fallthru
          _
        // Predicated region
        $region49: #{transformer_decoder.1} parent=11 // pred_check
          %p434 = pneg %p261
        $region50: #{transformer_decoder.1} parent=11 // pred_check_branch
          %436 = sbr.rel (%p434) target = $region52
        $region51: #{transformer_decoder.1} parent=11 // pred_region
          _
        $region52: #{transformer_decoder.1} parent=11 // pred_fallthru
          _
        // Predicated region
        $region53: #{transformer_decoder.1} parent=11 // pred_check
          %p437 = pneg %p282
        $region54: #{transformer_decoder.1} parent=11 // pred_check_branch
          %439 = sbr.rel (%p437) target = $region56
        $region55: #{transformer_decoder.1} parent=11 // pred_region
          _
        $region56: #{transformer_decoder.1} parent=11 // pred_fallthru
          _
        // Predicated region
        $region57: #{transformer_decoder.1} parent=11 // pred_check
          %p440 = pneg %p303
        $region58: #{transformer_decoder.1} parent=11 // pred_check_branch
          %442 = sbr.rel (%p440) target = $region60
        $region59: #{transformer_decoder.1} parent=11 // pred_region
          _
        $region60: #{transformer_decoder.1} parent=11 // pred_fallthru
          _
        // Predicated region
        $region61: #{transformer_decoder.1} parent=11 // pred_check
          %p443 = pneg %p324
        $region62: #{transformer_decoder.1} parent=11 // pred_check_branch
          %445 = sbr.rel (%p443) target = $region64
        $region63: #{transformer_decoder.1} parent=11 // pred_region
          _
        $region64: #{transformer_decoder.1} parent=11 // pred_fallthru
          _
        // Predicated region
        $region65: #{transformer_decoder.1} parent=11 // pred_check
          %p446 = pneg %p345
        $region66: #{transformer_decoder.1} parent=11 // pred_check_branch
          %448 = sbr.rel (%p446) target = $region68
        $region67: #{transformer_decoder.1} parent=11 // pred_region
          _
        $region68: #{transformer_decoder.1} parent=11 // pred_fallthru
          _
        // Predicated region
        $region69: #{transformer_decoder.1} parent=11 // pred_check
          %p449 = pneg %p366
        $region70: #{transformer_decoder.1} parent=11 // pred_check_branch
          %451 = sbr.rel (%p449) target = $region72
        $region71: #{transformer_decoder.1} parent=11 // pred_region
          _
        $region72: #{transformer_decoder.1} parent=11 // pred_fallthru
          _
      $region12: #{transformer_decoder.1} parent=5 // pred_fallthru
        _
      %p452 = scmp.lt.s32.totalorder %s25, 2
      // Predicated region
      $region73: #{transformer_decoder.1} parent=5 // pred_check
        %p453 = pneg %p452
      $region74: #{transformer_decoder.1} parent=5 // pred_check_branch
        %455 = sbr.rel (%p453) target = $region76
      $region75: #{transformer_decoder.1} parent=5 // pred_region
        // Predicated region
        $region77: #{transformer_decoder.1} parent=75 // pred_check
          %p456 = pneg %p45
        $region78: #{transformer_decoder.1} parent=75 // pred_check_branch
          %458 = sbr.rel (%p456) target = $region80
        $region79: #{transformer_decoder.1} parent=75 // pred_region
          %p459 = scmp.lt.s32.totalorder %s25, 1
          %s460 = scalar_select %p459, %s25, 1
          %s461 = smul.addr %s460, 4
          %s462 = smul.addr %s461, 8
          %s463 = scalar_lea.vmem %s0, %s462
        $region80: #{transformer_decoder.1} parent=75 // pred_fallthru
          _
      $region76: #{transformer_decoder.1} parent=5 // pred_fallthru
        _
      %p464 = scmp.le.s32.totalorder 1, %s25
      %p465 = scmp.lt.s32.totalorder %s25, 3
      %p466 = pnand %p464, %p465
      %p467 = pneg %p466
      // Predicated region
      $region81: #{transformer_decoder.1} parent=5 // pred_check
        _
      $region82: #{transformer_decoder.1} parent=5 // pred_check_branch
        %469 = sbr.rel (%p466) target = $region84
      $region83: #{transformer_decoder.1} parent=5 // pred_region
        %s470 = ssub.s32 %s25, 1
        %p471 = scmp.lt.s32.totalorder %s30, 1
        %s472 = scalar_select %p471, %s30, 1
        %s473 = smul.addr %s472, 4
        %s474 = smul.addr %s473, 8
        %s475 = scalar_lea.vmem %s0, %s474
        %p476 = pneg %p51
        %p477 = pneg %p48
        %p478 = pneg %p72
        %p479 = pneg %p69
        %p480 = pneg %p93
        %p481 = pneg %p90
        %p482 = pneg %p114
        %p483 = pneg %p111
        %p484 = pneg %p135
        %p485 = pneg %p132
        %p486 = pneg %p156
        %p487 = pneg %p153
        %p488 = pneg %p177
        %p489 = pneg %p174
        %p490 = pneg %p198
        %p491 = pneg %p195
        %p492 = pneg %p219
        %p493 = pneg %p216
        %p494 = pneg %p240
        %p495 = pneg %p237
        %p496 = pneg %p261
        %p497 = pneg %p258
        %p498 = pneg %p282
        %p499 = pneg %p279
        %p500 = pneg %p303
        %p501 = pneg %p300
        %p502 = pneg %p324
        %p503 = pneg %p321
        %p504 = pneg %p345
        %p505 = pneg %p342
        %p506 = pneg %p366
        %p507 = pneg %p363
        %p508 = pneg %p392
        %p509 = pneg %p389
        %s510 = sand.u32 %s379, 1
        %s511 = scalar_lea.sflag [#allocation3], %s510
        %s512 = sand.u32 %s379, 1
        %s513 = smul.addr %s512, 16
        %s514 = scalar_lea.vmem [#allocation2], %s513
        %p515 = scmp.lt.s32.totalorder %s30, 1
        %s516 = scalar_select %p515, %s30, 1
        %s517 = smul.addr %s516, 4
        %s518 = smul.addr %s517, 8
        %s519 = scalar_lea.vmem %s0, %s518
        %v521 = vld [vmem:[%s519] sm:$0xff]
        %v522 = vld [vmem:[%s519 + $0x8] sm:$0xff]
        %v523 = vld [vmem:[%s519 + $0x10] sm:$0xff]
        %v524 = vld [vmem:[%s519 + $0x18] sm:$0xff]
        %v525 = vlaneseq
        %v526 = vshrl.u32 %v525, 7
        %v527 = vadd.s32 %v526, 8
        %v528 = vlaneseq
        %v529 = vand.u32 %v528, 127
        %vm530 = vcmp.le.s32.totalorder %v529, %v526
        %vm531 = vcmp.le.s32.totalorder %v529, %v527
        %v532 = vsel %vm530, 0.0, -1e+30
        %v533 = vsel %vm531, 0.0, -1e+30
        %v534 = vld [vmem:[%s8] sm:$0x3]
        %v535 = vld [vmem:[%s9] sm:$0x3]
        %vm536 = vcmask 261120
        %v537 = vsel %vm536, %v522, 0.0
        %v538 = vadd.f32 %v521, %v537
        %539 = vadd.xlane.f32.xlu0 %v538
        %v540 = vpop.xlane.xlu0 %539
        %v541 = vsel %vm536, %v524, 0.0
        %v542 = vadd.f32 %v523, %v541
        %543 = vadd.xlane.f32.xlu0 %v542
        %v544 = vpop.xlane.xlu0 %543
        %v545 = vrcp.pop 160.0
        %v546 = vmul.f32 160.0, %v545
        %v547 = vsub.f32 1.0, %v546
        %v548 = vmul.f32 %v545, %v547
        %v549 = vadd.f32 %v545, %v548
        %vm550 = vweird.f32 %v545
        %v551 = vsel %vm550, %v545, %v549
        %v552 = vmul.f32 %v540, %v551
        %v553 = vmul.f32 %v544, %v551
        %v554 = vsub.f32 %v521, %v552
        %v555 = vsub.f32 %v522, %v552
        %v556 = vsub.f32 %v523, %v553
        %v557 = vsub.f32 %v524, %v553
        %v558 = vmul.f32 %v554, %v554
        %v559 = vmul.f32 %v555, %v555
        %v560 = vmul.f32 %v556, %v556
        %v561 = vmul.f32 %v557, %v557
        %v562 = vsel %vm536, %v559, 0.0
        %v563 = vadd.f32 %v558, %v562
        %564 = vadd.xlane.f32.xlu0 %v563
        %v565 = vpop.xlane.xlu0 %564
        %v566 = vsel %vm536, %v561, 0.0
        %v567 = vadd.f32 %v560, %v566
        %568 = vadd.xlane.f32.xlu0 %v567
        %v569 = vpop.xlane.xlu0 %568
        %v570 = vmul.f32 %v565, %v551
        %v571 = vmul.f32 %v569, %v551
        %v572 = vadd.f32 %v570, 1e-05
        %v573 = vadd.f32 %v571, 1e-05
        %v574 = vrsqrt.pop %v572
        %v575 = vmul.f32 %v574, %v572
        %v576 = vmul.f32 %v575, %v574
        %v577 = vmul.f32 0.5, %v576
        %v578 = vsub.f32 1.5, %v577
        %v579 = vmul.f32 %v574, %v578
        %vm580 = vweird.f32 %v572
        %vm581 = vweird.f32 %v574
        %vm582 = vmor %vm580, %vm581
        %v583 = vsel %vm582, %v574, %v579
        %v584 = vrsqrt.pop %v573
        %v585 = vmul.f32 %v584, %v573
        %v586 = vmul.f32 %v585, %v584
        %v587 = vmul.f32 0.5, %v586
        %v588 = vsub.f32 1.5, %v587
        %v589 = vmul.f32 %v584, %v588
        %vm590 = vweird.f32 %v573
        %vm591 = vweird.f32 %v584
        %vm592 = vmor %vm590, %vm591
        %v593 = vsel %vm592, %v584, %v589
        %v594 = vmul.f32 %v554, %v583
        %v595 = vmul.f32 %v555, %v583
        %v596 = vmul.f32 %v556, %v593
        %v597 = vmul.f32 %v557, %v593
        %v599 = vperm.slane %v534, 0
        %v600 = vperm.slane %v534, 1
        %v603 = vmul.f32 %v594, %v599
        %v604 = vmul.f32 %v595, %v600
        %v605 = vmul.f32 %v596, %v599
        %v606 = vmul.f32 %v597, %v600
        %v608 = vperm.slane %v535, 0
        %v609 = vperm.slane %v535, 1
        %v612 = vadd.f32 %v603, %v608
        %v613 = vadd.f32 %v604, %v609
        %v614 = vadd.f32 %v605, %v608
        %v615 = vadd.f32 %v606, %v609
        %v616 = vpack.c.bf16 %v614, %v612
        %v617 = vpack.c.bf16 %v615, %v613
        %v618 = vld [vmem:[%s1] sm:$0xff]
        %v619 = vld [vmem:[%s1 + $0x8] sm:$0xff]
        %v620 = vld [vmem:[%s1 + $0x10] sm:$0xff]
        %v621 = vld [vmem:[%s1 + $0x18] sm:$0xff]
        %v622 = vld [vmem:[%s1 + $0x20] sm:$0xff]
        %v623 = vld [vmem:[%s1 + $0x28] sm:$0xff]
        %v624 = vld [vmem:[%s1 + $0x30] sm:$0xff]
        %v625 = vld [vmem:[%s1 + $0x38] sm:$0xff]
        %v626 = vld [vmem:[%s1 + $0x40] sm:$0xff]
        %v627 = vld [vmem:[%s1 + $0x48] sm:$0xff]
        %v628 = vld [vmem:[%s1 + $0x50] sm:$0xff]
        %v629 = vld [vmem:[%s1 + $0x58] sm:$0xff]
        %v630 = vld [vmem:[%s1 + $0x60] sm:$0xff]
        %v631 = vld [vmem:[%s1 + $0x68] sm:$0xff]
        %v632 = vld [vmem:[%s1 + $0x70] sm:$0xff]
        %v633 = vld [vmem:[%s1 + $0x78] sm:$0xff]
        %v634 = vld [vmem:[%s1 + $0x80] sm:$0xff]
        %v635 = vld [vmem:[%s1 + $0x88] sm:$0xff]
        %v636 = vld [vmem:[%s1 + $0x90] sm:$0xff]
        %v637 = vld [vmem:[%s1 + $0x98] sm:$0xff]
        %v638 = vld [vmem:[%s1 + $0xa0] sm:$0xff]
        %v639 = vld [vmem:[%s1 + $0xa8] sm:$0xff]
        %v640 = vld [vmem:[%s1 + $0xb0] sm:$0xff]
        %v641 = vld [vmem:[%s1 + $0xb8] sm:$0xff]
        %v642 = vld [vmem:[%s1 + $0xc0] sm:$0xff]
        %v643 = vld [vmem:[%s1 + $0xc8] sm:$0xff]
        %v644 = vld [vmem:[%s1 + $0xd0] sm:$0xff]
        %v645 = vld [vmem:[%s1 + $0xd8] sm:$0xff]
        %v646 = vld [vmem:[%s1 + $0xe0] sm:$0xff]
        %v647 = vld [vmem:[%s1 + $0xe8] sm:$0xff]
        %v648 = vld [vmem:[%s1 + $0xf0] sm:$0xff]
        %v649 = vld [vmem:[%s1 + $0xf8] sm:$0xff]
        %v650 = vld [vmem:[%s1 + $0x100] sm:$0xff]
        %v651 = vld [vmem:[%s1 + $0x108] sm:$0xff]
        %v652 = vld [vmem:[%s1 + $0x110] sm:$0xff]
        %v653 = vld [vmem:[%s1 + $0x118] sm:$0xff]
        %v654 = vld [vmem:[%s1 + $0x120] sm:$0xff]
        %v655 = vld [vmem:[%s1 + $0x128] sm:$0xff]
        %v656 = vld [vmem:[%s1 + $0x130] sm:$0xff]
        %v657 = vld [vmem:[%s1 + $0x138] sm:$0xff]
        %v698 = vunpack.c.l.b16 %v618
        %v699 = vunpack.c.h.b16 %v618
        %v700 = vunpack.c.l.b16 %v619
        %v701 = vunpack.c.h.b16 %v619
        %v702 = vunpack.c.l.b16 %v620
        %v703 = vunpack.c.h.b16 %v620
        %v704 = vunpack.c.l.b16 %v621
        %v705 = vunpack.c.h.b16 %v621
        %v706 = vunpack.c.l.b16 %v622
        %v707 = vunpack.c.h.b16 %v622
        %v708 = vunpack.c.l.b16 %v623
        %v709 = vunpack.c.h.b16 %v623
        %v710 = vunpack.c.l.b16 %v624
        %v711 = vunpack.c.h.b16 %v624
        %v712 = vunpack.c.l.b16 %v625
        %v713 = vunpack.c.h.b16 %v625
        %v714 = vunpack.c.l.b16 %v626
        %v715 = vunpack.c.h.b16 %v626
        %v716 = vunpack.c.l.b16 %v627
        %v717 = vunpack.c.h.b16 %v627
        %v718 = vunpack.c.l.b16 %v628
        %v719 = vunpack.c.h.b16 %v628
        %v720 = vunpack.c.l.b16 %v629
        %v721 = vunpack.c.h.b16 %v629
        %v722 = vunpack.c.l.b16 %v630
        %v723 = vunpack.c.h.b16 %v630
        %v724 = vunpack.c.l.b16 %v631
        %v725 = vunpack.c.h.b16 %v631
        %v726 = vunpack.c.l.b16 %v632
        %v727 = vunpack.c.h.b16 %v632
        %v728 = vunpack.c.l.b16 %v633
        %v729 = vunpack.c.h.b16 %v633
        %v730 = vunpack.c.l.b16 %v634
        %v731 = vunpack.c.h.b16 %v634
        %v732 = vunpack.c.l.b16 %v635
        %v733 = vunpack.c.h.b16 %v635
        %v734 = vunpack.c.l.b16 %v636
        %v735 = vunpack.c.h.b16 %v636
        %v736 = vunpack.c.l.b16 %v637
        %v737 = vunpack.c.h.b16 %v637
        %v738 = vunpack.c.l.b16 %v638
        %v739 = vunpack.c.h.b16 %v638
        %v740 = vunpack.c.l.b16 %v639
        %v741 = vunpack.c.h.b16 %v639
        %v742 = vunpack.c.l.b16 %v640
        %v743 = vunpack.c.h.b16 %v640
        %v744 = vunpack.c.l.b16 %v641
        %v745 = vunpack.c.h.b16 %v641
        %v746 = vunpack.c.l.b16 %v642
        %v747 = vunpack.c.h.b16 %v642
        %v748 = vunpack.c.l.b16 %v643
        %v749 = vunpack.c.h.b16 %v643
        %v750 = vunpack.c.l.b16 %v644
        %v751 = vunpack.c.h.b16 %v644
        %v752 = vunpack.c.l.b16 %v645
        %v753 = vunpack.c.h.b16 %v645
        %v754 = vunpack.c.l.b16 %v646
        %v755 = vunpack.c.h.b16 %v646
        %v756 = vunpack.c.l.b16 %v647
        %v757 = vunpack.c.h.b16 %v647
        %v758 = vunpack.c.l.b16 %v648
        %v759 = vunpack.c.h.b16 %v648
        %v760 = vunpack.c.l.b16 %v649
        %v761 = vunpack.c.h.b16 %v649
        %v762 = vunpack.c.l.b16 %v650
        %v763 = vunpack.c.h.b16 %v650
        %v764 = vunpack.c.l.b16 %v651
        %v765 = vunpack.c.h.b16 %v651
        %v766 = vunpack.c.l.b16 %v652
        %v767 = vunpack.c.h.b16 %v652
        %v768 = vunpack.c.l.b16 %v653
        %v769 = vunpack.c.h.b16 %v653
        %v770 = vunpack.c.l.b16 %v654
        %v771 = vunpack.c.h.b16 %v654
        %v772 = vunpack.c.l.b16 %v655
        %v773 = vunpack.c.h.b16 %v655
        %v774 = vunpack.c.l.b16 %v656
        %v775 = vunpack.c.h.b16 %v656
        %v776 = vunpack.c.l.b16 %v657
        %v777 = vunpack.c.h.b16 %v657
        %v778 = vpack.c.b16 %v702, %v698
        %v779 = vpack.c.b16 %v703, %v699
        %v780 = vpack.c.b16 %v704, %v700
        %v781 = vpack.c.b16 %v705, %v701
        %v782 = vpack.c.b16 %v710, %v706
        %v783 = vpack.c.b16 %v711, %v707
        %v784 = vpack.c.b16 %v712, %v708
        %v785 = vpack.c.b16 %v713, %v709
        %v786 = vpack.c.b16 %v718, %v714
        %v787 = vpack.c.b16 %v719, %v715
        %v788 = vpack.c.b16 %v720, %v716
        %v789 = vpack.c.b16 %v721, %v717
        %v790 = vpack.c.b16 %v726, %v722
        %v791 = vpack.c.b16 %v727, %v723
        %v792 = vpack.c.b16 %v728, %v724
        %v793 = vpack.c.b16 %v729, %v725
        %v794 = vpack.c.b16 %v734, %v730
        %v795 = vpack.c.b16 %v735, %v731
        %v796 = vpack.c.b16 %v736, %v732
        %v797 = vpack.c.b16 %v737, %v733
        %v798 = vpack.c.b16 %v742, %v738
        %v799 = vpack.c.b16 %v743, %v739
        %v800 = vpack.c.b16 %v744, %v740
        %v801 = vpack.c.b16 %v745, %v741
        %v802 = vpack.c.b16 %v750, %v746
        %v803 = vpack.c.b16 %v751, %v747
        %v804 = vpack.c.b16 %v752, %v748
        %v805 = vpack.c.b16 %v753, %v749
        %v806 = vpack.c.b16 %v758, %v754
        %v807 = vpack.c.b16 %v759, %v755
        %v808 = vpack.c.b16 %v760, %v756
        %v809 = vpack.c.b16 %v761, %v757
        %v810 = vpack.c.b16 %v766, %v762
        %v811 = vpack.c.b16 %v767, %v763
        %v812 = vpack.c.b16 %v768, %v764
        %v813 = vpack.c.b16 %v769, %v765
        %v814 = vpack.c.b16 %v774, %v770
        %v815 = vpack.c.b16 %v775, %v771
        %v816 = vpack.c.b16 %v776, %v772
        %v817 = vpack.c.b16 %v777, %v773
        %v859 = vsel %vm536, %v617, 0
        %861 = vmatpush.bf16.msra.mxu0 %v806
        %862 = vmatpush.bf16.msra.mxu0 %v802
        %863 = vmatpush.bf16.msra.mxu0 %v798
        %864 = vmatpush.bf16.msra.mxu0 %v794
        %865 = vmatpush.bf16.msra.mxu0 %v790
        %866 = vmatpush.bf16.msra.mxu0 %v786
        %867 = vmatpush.bf16.msra.mxu0 %v782
        %868 = vmatpush.bf16.msra.mxu0 %v778
        %869 = vmatmul.bf16.gmra.mxu0 %v616
        %v870 = vpop.f32.mrf.mxu0
        %v871 = vadd.f32 0.0, %v870
        %v872 = vpop.f32.mrf.mxu0
        %v873 = vadd.f32 0.0, %v872
        %874 = vdwg.mxu0
        %875 = vmatpush.bf16.msra.mxu0 0
        %876 = vmatpush.bf16.msra.mxu0 0
        %877 = vmatpush.bf16.msra.mxu0 0
        %878 = vmatpush.bf16.msra.mxu0 0
        %879 = vmatpush.bf16.msra.mxu0 0
        %880 = vmatpush.bf16.msra.mxu0 0
        %881 = vmatpush.bf16.msra.mxu0 %v814
        %882 = vmatpush.bf16.msra.mxu0 %v810
        %883 = vmatmul.bf16.gmra.mxu0 %v859
        %v884 = vpop.f32.mrf.mxu0
        %v885 = vadd.f32 %v871, %v884
        %v886 = vpop.f32.mrf.mxu0
        %v887 = vadd.f32 %v873, %v886
        %888 = vdwg.mxu0
        %889 = vmatpush.bf16.msra.mxu0 %v807
        %890 = vmatpush.bf16.msra.mxu0 %v803
        %891 = vmatpush.bf16.msra.mxu0 %v799
        %892 = vmatpush.bf16.msra.mxu0 %v795
        %893 = vmatpush.bf16.msra.mxu0 %v791
        %894 = vmatpush.bf16.msra.mxu0 %v787
        %895 = vmatpush.bf16.msra.mxu0 %v783
        %896 = vmatpush.bf16.msra.mxu0 %v779
        %897 = vmatmul.bf16.gmra.mxu0 %v616
        %v898 = vpop.f32.mrf.mxu0
        %v899 = vadd.f32 0.0, %v898
        %v900 = vpop.f32.mrf.mxu0
        %v901 = vadd.f32 0.0, %v900
        %902 = vdwg.mxu0
        %903 = vmatpush.bf16.msra.mxu0 0
        %904 = vmatpush.bf16.msra.mxu0 0
        %905 = vmatpush.bf16.msra.mxu0 0
        %906 = vmatpush.bf16.msra.mxu0 0
        %907 = vmatpush.bf16.msra.mxu0 0
        %908 = vmatpush.bf16.msra.mxu0 0
        %909 = vmatpush.bf16.msra.mxu0 %v815
        %910 = vmatpush.bf16.msra.mxu0 %v811
        %911 = vmatmul.bf16.gmra.mxu0 %v859
        %v912 = vpop.f32.mrf.mxu0
        %v913 = vadd.f32 %v899, %v912
        %v914 = vpop.f32.mrf.mxu0
        %v915 = vadd.f32 %v901, %v914
        %916 = vdwg.mxu0
        %917 = vmatpush.bf16.msra.mxu0 %v808
        %918 = vmatpush.bf16.msra.mxu0 %v804
        %919 = vmatpush.bf16.msra.mxu0 %v800
        %920 = vmatpush.bf16.msra.mxu0 %v796
        %921 = vmatpush.bf16.msra.mxu0 %v792
        %922 = vmatpush.bf16.msra.mxu0 %v788
        %923 = vmatpush.bf16.msra.mxu0 %v784
        %924 = vmatpush.bf16.msra.mxu0 %v780
        %925 = vmatmul.bf16.gmra.mxu0 %v616
        %v926 = vpop.f32.mrf.mxu0
        %v927 = vadd.f32 0.0, %v926
        %v928 = vpop.f32.mrf.mxu0
        %v929 = vadd.f32 0.0, %v928
        %930 = vdwg.mxu0
        %931 = vmatpush.bf16.msra.mxu0 0
        %932 = vmatpush.bf16.msra.mxu0 0
        %933 = vmatpush.bf16.msra.mxu0 0
        %934 = vmatpush.bf16.msra.mxu0 0
        %935 = vmatpush.bf16.msra.mxu0 0
        %936 = vmatpush.bf16.msra.mxu0 0
        %937 = vmatpush.bf16.msra.mxu0 %v816
        %938 = vmatpush.bf16.msra.mxu0 %v812
        %939 = vmatmul.bf16.gmra.mxu0 %v859
        %v940 = vpop.f32.mrf.mxu0
        %v941 = vadd.f32 %v927, %v940
        %v942 = vpop.f32.mrf.mxu0
        %v943 = vadd.f32 %v929, %v942
        %944 = vdwg.mxu0
        %945 = vmatpush.bf16.msra.mxu0 %v809
        %946 = vmatpush.bf16.msra.mxu0 %v805
        %947 = vmatpush.bf16.msra.mxu0 %v801
        %948 = vmatpush.bf16.msra.mxu0 %v797
        %949 = vmatpush.bf16.msra.mxu0 %v793
        %950 = vmatpush.bf16.msra.mxu0 %v789
        %951 = vmatpush.bf16.msra.mxu0 %v785
        %952 = vmatpush.bf16.msra.mxu0 %v781
        %953 = vmatmul.bf16.gmra.mxu0 %v616
        %v954 = vpop.f32.mrf.mxu0
        %v955 = vadd.f32 0.0, %v954
        %v956 = vpop.f32.mrf.mxu0
        %v957 = vadd.f32 0.0, %v956
        %958 = vdwg.mxu0
        %959 = vmatpush.bf16.msra.mxu0 0
        %960 = vmatpush.bf16.msra.mxu0 0
        %961 = vmatpush.bf16.msra.mxu0 0
        %962 = vmatpush.bf16.msra.mxu0 0
        %963 = vmatpush.bf16.msra.mxu0 0
        %964 = vmatpush.bf16.msra.mxu0 0
        %965 = vmatpush.bf16.msra.mxu0 %v817
        %966 = vmatpush.bf16.msra.mxu0 %v813
        %967 = vmatmul.bf16.gmra.mxu0 %v859
        %v968 = vpop.f32.mrf.mxu0
        %v969 = vadd.f32 %v955, %v968
        %v970 = vpop.f32.mrf.mxu0
        %v971 = vadd.f32 %v957, %v970
        %972 = vdwg.mxu0
        %v973 = vpack.c.bf16 %v887, %v885
        %v974 = vpack.c.bf16 %v915, %v913
        %v975 = vpack.c.bf16 %v943, %v941
        %977 = vrot.lane.b32.xlu0 %v974, 96
        %v978 = vpop.permute.xlu0 %977
        %v980 = vsel %vm536, %v973, 0
        %v983 = vsel %vm536, %v978, 0
        %985 = vmatpush.bf16.xpose.msra.mxu0 0
        %986 = vmatpush.bf16.xpose.msra.mxu0 0
        %987 = vmatpush.bf16.xpose.msra.mxu0 0
        %988 = vmatpush.bf16.xpose.msra.mxu0 0
        %989 = vmatpush.bf16.xpose.msra.mxu0 0
        %990 = vmatpush.bf16.xpose.msra.mxu0 0
        %991 = vmatpush.bf16.xpose.msra.mxu0 0
        %992 = vmatpush.bf16.xpose.msra.mxu0 %v983
        %993 = vmatmul.bf16.gmra.mxu0 %v980
        %v994 = vpop.f32.mrf.mxu0
        %v995 = vadd.f32 0.0, %v994
        %v996 = vpop.f32.mrf.mxu0
        %v997 = vadd.f32 0.0, %v996
        %998 = vdwg.mxu0
        %v999 = vmul.f32 %v995, 0.07905694
        %v1000 = vmul.f32 %v997, 0.07905694
        %v1001 = vadd.f32 %v999, %v532
        %v1002 = vadd.f32 %v1000, %v533
        %vm1003 = vcmask 130048
        %v1004 = vsel %vm1003, %v1001, -inf
        %1005 = vmax.xlane.f32.xlu0 %v1004
        %v1006 = vpop.xlane.xlu0 %1005
        %v1007 = vsel %vm1003, %v1002, -inf
        %1008 = vmax.xlane.f32.xlu0 %v1007
        %v1009 = vpop.xlane.xlu0 %1008
        %v1010 = vsub.f32 %v1001, %v1006
        %v1011 = vsub.f32 %v1002, %v1009
        %v1012 = vmul.f32 %v1010, 1.442695
        %v1013 = vpow.pop %v1012
        %v1014 = vmul.f32 %v1011, 1.442695
        %v1015 = vpow.pop %v1014
        %v1016 = vsel %vm1003, %v1013, 0.0
        %1017 = vadd.xlane.f32.xlu0 %v1016
        %v1018 = vpop.xlane.xlu0 %1017
        %v1019 = vsel %vm1003, %v1015, 0.0
        %1020 = vadd.xlane.f32.xlu0 %v1019
        %v1021 = vpop.xlane.xlu0 %1020
        %v1022 = vrcp.pop %v1018
        %v1023 = vrcp.pop %v1021
        %v1024 = vmul.f32 %v1013, %v1022
        %v1025 = vmul.f32 %v1015, %v1023
        %v1026 = vpack.c.bf16 %v1025, %v1024
        %1028 = vrot.lane.b32.xlu0 %v975, 64
        %v1029 = vpop.permute.xlu0 %1028
        %v1032 = vsel %vm1003, %v1026, 0
        %1034 = vmatpush.bf16.msra.mxu0 0
        %1035 = vmatpush.bf16.msra.mxu0 0
        %1036 = vmatpush.bf16.msra.mxu0 0
        %1037 = vmatpush.bf16.msra.mxu0 0
        %1038 = vmatpush.bf16.msra.mxu0 0
        %1039 = vmatpush.bf16.msra.mxu0 0
        %1040 = vmatpush.bf16.msra.mxu0 0
        %1041 = vmatpush.bf16.msra.mxu0 %v1029
        %1042 = vmatmul.bf16.gmra.mxu0 %v1032
        %v1043 = vpop.f32.mrf.mxu0
        %v1044 = vadd.f32 0.0, %v1043
        %v1045 = vpop.f32.mrf.mxu0
        %v1046 = vadd.f32 0.0, %v1045
        %1047 = vdwg.mxu0
        %1049 = vrot.lane.b32.xlu0 %v973, 96
        %v1050 = vpop.permute.xlu0 %1049
        %1051 = vrot.lane.b32.xlu0 %v974, 64
        %v1052 = vpop.permute.xlu0 %1051
        %v1054 = vsel %vm536, %v1050, 0
        %v1057 = vsel %vm536, %v1052, 0
        %1059 = vmatpush.bf16.xpose.msra.mxu0 0
        %1060 = vmatpush.bf16.xpose.msra.mxu0 0
        %1061 = vmatpush.bf16.xpose.msra.mxu0 0
        %1062 = vmatpush.bf16.xpose.msra.mxu0 0
        %1063 = vmatpush.bf16.xpose.msra.mxu0 0
        %1064 = vmatpush.bf16.xpose.msra.mxu0 0
        %1065 = vmatpush.bf16.xpose.msra.mxu0 0
        %1066 = vmatpush.bf16.xpose.msra.mxu0 %v1057
        %1067 = vmatmul.bf16.gmra.mxu0 %v1054
        %v1068 = vpop.f32.mrf.mxu0
        %v1069 = vadd.f32 0.0, %v1068
        %v1070 = vpop.f32.mrf.mxu0
        %v1071 = vadd.f32 0.0, %v1070
        %1072 = vdwg.mxu0
        %v1073 = vmul.f32 %v1069, 0.07905694
        %v1074 = vmul.f32 %v1071, 0.07905694
        %v1075 = vadd.f32 %v1073, %v532
        %v1076 = vadd.f32 %v1074, %v533
        %v1077 = vsel %vm1003, %v1075, -inf
        %1078 = vmax.xlane.f32.xlu0 %v1077
        %v1079 = vpop.xlane.xlu0 %1078
        %v1080 = vsel %vm1003, %v1076, -inf
        %1081 = vmax.xlane.f32.xlu0 %v1080
        %v1082 = vpop.xlane.xlu0 %1081
        %v1083 = vsub.f32 %v1075, %v1079
        %v1084 = vsub.f32 %v1076, %v1082
        %v1085 = vmul.f32 %v1083, 1.442695
        %v1086 = vpow.pop %v1085
        %v1087 = vmul.f32 %v1084, 1.442695
        %v1088 = vpow.pop %v1087
        %v1089 = vsel %vm1003, %v1086, 0.0
        %1090 = vadd.xlane.f32.xlu0 %v1089
        %v1091 = vpop.xlane.xlu0 %1090
        %v1092 = vsel %vm1003, %v1088, 0.0
        %1093 = vadd.xlane.f32.xlu0 %v1092
        %v1094 = vpop.xlane.xlu0 %1093
        %v1095 = vrcp.pop %v1091
        %v1096 = vrcp.pop %v1094
        %v1097 = vmul.f32 %v1086, %v1095
        %v1098 = vmul.f32 %v1088, %v1096
        %v1099 = vpack.c.bf16 %v1098, %v1097
        %1100 = vrot.lane.b32.xlu0 %v975, 32
        %v1101 = vpop.permute.xlu0 %1100
        %v1104 = vsel %vm1003, %v1099, 0
        %1106 = vmatpush.bf16.msra.mxu0 0
        %1107 = vmatpush.bf16.msra.mxu0 0
        %1108 = vmatpush.bf16.msra.mxu0 0
        %1109 = vmatpush.bf16.msra.mxu0 0
        %1110 = vmatpush.bf16.msra.mxu0 0
        %1111 = vmatpush.bf16.msra.mxu0 0
        %1112 = vmatpush.bf16.msra.mxu0 0
        %1113 = vmatpush.bf16.msra.mxu0 %v1101
        %1114 = vmatmul.bf16.gmra.mxu0 %v1104
        %v1115 = vpop.f32.mrf.mxu0
        %v1116 = vadd.f32 0.0, %v1115
        %v1117 = vpop.f32.mrf.mxu0
        %v1118 = vadd.f32 0.0, %v1117
        %1119 = vdwg.mxu0
        %v1120 = vpack.c.bf16 %v971, %v969
        %1121 = vrot.lane.b32.xlu0 %v973, 64
        %v1122 = vpop.permute.xlu0 %1121
        %1123 = vrot.lane.b32.xlu0 %v974, 32
        %v1124 = vpop.permute.xlu0 %1123
        %v1126 = vsel %vm536, %v1122, 0
        %v1129 = vsel %vm536, %v1124, 0
        %1131 = vmatpush.bf16.xpose.msra.mxu0 0
        %1132 = vmatpush.bf16.xpose.msra.mxu0 0
        %1133 = vmatpush.bf16.xpose.msra.mxu0 0
        %1134 = vmatpush.bf16.xpose.msra.mxu0 0
        %1135 = vmatpush.bf16.xpose.msra.mxu0 0
        %1136 = vmatpush.bf16.xpose.msra.mxu0 0
        %1137 = vmatpush.bf16.xpose.msra.mxu0 0
        %1138 = vmatpush.bf16.xpose.msra.mxu0 %v1129
        %1139 = vmatmul.bf16.gmra.mxu0 %v1126
        %v1140 = vpop.f32.mrf.mxu0
        %v1141 = vadd.f32 0.0, %v1140
        %v1142 = vpop.f32.mrf.mxu0
        %v1143 = vadd.f32 0.0, %v1142
        %1144 = vdwg.mxu0
        %v1145 = vmul.f32 %v1141, 0.07905694
        %v1146 = vmul.f32 %v1143, 0.07905694
        %v1147 = vadd.f32 %v1145, %v532
        %v1148 = vadd.f32 %v1146, %v533
        %v1149 = vsel %vm1003, %v1147, -inf
        %1150 = vmax.xlane.f32.xlu0 %v1149
        %v1151 = vpop.xlane.xlu0 %1150
        %v1152 = vsel %vm1003, %v1148, -inf
        %1153 = vmax.xlane.f32.xlu0 %v1152
        %v1154 = vpop.xlane.xlu0 %1153
        %v1155 = vsub.f32 %v1147, %v1151
        %v1156 = vsub.f32 %v1148, %v1154
        %v1157 = vmul.f32 %v1155, 1.442695
        %v1158 = vpow.pop %v1157
        %v1159 = vmul.f32 %v1156, 1.442695
        %v1160 = vpow.pop %v1159
        %v1161 = vsel %vm1003, %v1158, 0.0
        %1162 = vadd.xlane.f32.xlu0 %v1161
        %v1163 = vpop.xlane.xlu0 %1162
        %v1164 = vsel %vm1003, %v1160, 0.0
        %1165 = vadd.xlane.f32.xlu0 %v1164
        %v1166 = vpop.xlane.xlu0 %1165
        %v1167 = vrcp.pop %v1163
        %v1168 = vrcp.pop %v1166
        %v1169 = vmul.f32 %v1158, %v1167
        %v1170 = vmul.f32 %v1160, %v1168
        %v1171 = vpack.c.bf16 %v1170, %v1169
        %v1173 = vsel %vm1003, %v1171, 0
        %1175 = vmatpush.bf16.msra.mxu0 0
        %1176 = vmatpush.bf16.msra.mxu0 0
        %1177 = vmatpush.bf16.msra.mxu0 0
        %1178 = vmatpush.bf16.msra.mxu0 0
        %1179 = vmatpush.bf16.msra.mxu0 0
        %1180 = vmatpush.bf16.msra.mxu0 0
        %1181 = vmatpush.bf16.msra.mxu0 0
        %1182 = vmatpush.bf16.msra.mxu0 %v1120
        %1183 = vmatmul.bf16.gmra.mxu0 %v1173
        %v1184 = vpop.f32.mrf.mxu0
        %v1185 = vadd.f32 0.0, %v1184
        %v1186 = vpop.f32.mrf.mxu0
        %v1187 = vadd.f32 0.0, %v1186
        %1188 = vdwg.mxu0
        %1189 = vrot.lane.b32.xlu0 %v973, 32
        %v1190 = vpop.permute.xlu0 %1189
        %v1192 = vsel %vm536, %v1190, 0
        %v1195 = vsel %vm536, %v975, 0
        %1197 = vmatpush.bf16.xpose.msra.mxu0 0
        %1198 = vmatpush.bf16.xpose.msra.mxu0 0
        %1199 = vmatpush.bf16.xpose.msra.mxu0 0
        %1200 = vmatpush.bf16.xpose.msra.mxu0 0
        %1201 = vmatpush.bf16.xpose.msra.mxu0 0
        %1202 = vmatpush.bf16.xpose.msra.mxu0 0
        %1203 = vmatpush.bf16.xpose.msra.mxu0 0
        %1204 = vmatpush.bf16.xpose.msra.mxu0 %v1195
        %1205 = vmatmul.bf16.gmra.mxu0 %v1192
        %v1206 = vpop.f32.mrf.mxu0
        %v1207 = vadd.f32 0.0, %v1206
        %v1208 = vpop.f32.mrf.mxu0
        %v1209 = vadd.f32 0.0, %v1208
        %1210 = vdwg.mxu0
        %v1211 = vmul.f32 %v1207, 0.07905694
        %v1212 = vmul.f32 %v1209, 0.07905694
        %v1213 = vadd.f32 %v1211, %v532
        %v1214 = vadd.f32 %v1212, %v533
        %v1215 = vsel %vm1003, %v1213, -inf
        %1216 = vmax.xlane.f32.xlu0 %v1215
        %v1217 = vpop.xlane.xlu0 %1216
        %v1218 = vsel %vm1003, %v1214, -inf
        %1219 = vmax.xlane.f32.xlu0 %v1218
        %v1220 = vpop.xlane.xlu0 %1219
        %v1221 = vsub.f32 %v1213, %v1217
        %v1222 = vsub.f32 %v1214, %v1220
        %v1223 = vmul.f32 %v1221, 1.442695
        %v1224 = vpow.pop %v1223
        %v1225 = vmul.f32 %v1222, 1.442695
        %v1226 = vpow.pop %v1225
        %v1227 = vsel %vm1003, %v1224, 0.0
        %1228 = vadd.xlane.f32.xlu0 %v1227
        %v1229 = vpop.xlane.xlu0 %1228
        %v1230 = vsel %vm1003, %v1226, 0.0
        %1231 = vadd.xlane.f32.xlu0 %v1230
        %v1232 = vpop.xlane.xlu0 %1231
        %v1233 = vrcp.pop %v1229
        %v1234 = vrcp.pop %v1232
        %v1235 = vmul.f32 %v1224, %v1233
        %v1236 = vmul.f32 %v1226, %v1234
        %v1237 = vpack.c.bf16 %v1236, %v1235
        %1239 = vrot.lane.b32.xlu0 %v1120, 96
        %v1240 = vpop.permute.xlu0 %1239
        %v1243 = vsel %vm1003, %v1237, 0
        %1245 = vmatpush.bf16.msra.mxu0 0
        %1246 = vmatpush.bf16.msra.mxu0 0
        %1247 = vmatpush.bf16.msra.mxu0 0
        %1248 = vmatpush.bf16.msra.mxu0 0
        %1249 = vmatpush.bf16.msra.mxu0 0
        %1250 = vmatpush.bf16.msra.mxu0 0
        %1251 = vmatpush.bf16.msra.mxu0 0
        %1252 = vmatpush.bf16.msra.mxu0 %v1240
        %1253 = vmatmul.bf16.gmra.mxu0 %v1243
        %v1254 = vpop.f32.mrf.mxu0
        %v1255 = vadd.f32 0.0, %v1254
        %v1256 = vpop.f32.mrf.mxu0
        %v1257 = vadd.f32 0.0, %v1256
        %1258 = vdwg.mxu0
        %1259 = vrot.lane.b32.xlu0 %v975, 96
        %v1260 = vpop.permute.xlu0 %1259
        %v1262 = vsel %vm536, %v974, 0
        %v1265 = vsel %vm536, %v1260, 0
        %1267 = vmatpush.bf16.xpose.msra.mxu0 0
        %1268 = vmatpush.bf16.xpose.msra.mxu0 0
        %1269 = vmatpush.bf16.xpose.msra.mxu0 0
        %1270 = vmatpush.bf16.xpose.msra.mxu0 0
        %1271 = vmatpush.bf16.xpose.msra.mxu0 0
        %1272 = vmatpush.bf16.xpose.msra.mxu0 0
        %1273 = vmatpush.bf16.xpose.msra.mxu0 0
        %1274 = vmatpush.bf16.xpose.msra.mxu0 %v1265
        %1275 = vmatmul.bf16.gmra.mxu0 %v1262
        %v1276 = vpop.f32.mrf.mxu0
        %v1277 = vadd.f32 0.0, %v1276
        %v1278 = vpop.f32.mrf.mxu0
        %v1279 = vadd.f32 0.0, %v1278
        %1280 = vdwg.mxu0
        %v1281 = vmul.f32 %v1277, 0.07905694
        %v1282 = vmul.f32 %v1279, 0.07905694
        %v1283 = vadd.f32 %v1281, %v532
        %v1284 = vadd.f32 %v1282, %v533
        %v1285 = vsel %vm1003, %v1283, -inf
        %1286 = vmax.xlane.f32.xlu0 %v1285
        %v1287 = vpop.xlane.xlu0 %1286
        %v1288 = vsel %vm1003, %v1284, -inf
        %1289 = vmax.xlane.f32.xlu0 %v1288
        %v1290 = vpop.xlane.xlu0 %1289
        %v1291 = vsub.f32 %v1283, %v1287
        %v1292 = vsub.f32 %v1284, %v1290
        %v1293 = vmul.f32 %v1291, 1.442695
        %v1294 = vpow.pop %v1293
        %v1295 = vmul.f32 %v1292, 1.442695
        %v1296 = vpow.pop %v1295
        %v1297 = vsel %vm1003, %v1294, 0.0
        %1298 = vadd.xlane.f32.xlu0 %v1297
        %v1299 = vpop.xlane.xlu0 %1298
        %v1300 = vsel %vm1003, %v1296, 0.0
        %1301 = vadd.xlane.f32.xlu0 %v1300
        %v1302 = vpop.xlane.xlu0 %1301
        %v1303 = vrcp.pop %v1299
        %v1304 = vrcp.pop %v1302
        %v1305 = vmul.f32 %v1294, %v1303
        %v1306 = vmul.f32 %v1296, %v1304
        %v1307 = vpack.c.bf16 %v1306, %v1305
        %1308 = vrot.lane.b32.xlu0 %v1120, 64
        %v1309 = vpop.permute.xlu0 %1308
        %v1312 = vsel %vm1003, %v1307, 0
        %1314 = vmatpush.bf16.msra.mxu0 0
        %1315 = vmatpush.bf16.msra.mxu0 0
        %1316 = vmatpush.bf16.msra.mxu0 0
        %1317 = vmatpush.bf16.msra.mxu0 0
        %1318 = vmatpush.bf16.msra.mxu0 0
        %1319 = vmatpush.bf16.msra.mxu0 0
        %1320 = vmatpush.bf16.msra.mxu0 0
        %1321 = vmatpush.bf16.msra.mxu0 %v1309
        %1322 = vmatmul.bf16.gmra.mxu0 %v1312
        %v1323 = vpop.f32.mrf.mxu0
        %v1324 = vadd.f32 0.0, %v1323
        %v1325 = vpop.f32.mrf.mxu0
        %v1326 = vadd.f32 0.0, %v1325
        %1327 = vdwg.mxu0
        %1330 = vrot.lane.b32.xlu0 %v1116, 32
        %v1331 = vpop.permute.xlu0 %1330
        %1332 = vrot.lane.b32.xlu0 %v1118, 32
        %v1333 = vpop.permute.xlu0 %1332
        %1338 = vrot.lane.b32.xlu0 %v1185, 64
        %v1339 = vpop.permute.xlu0 %1338
        %1340 = vrot.lane.b32.xlu0 %v1187, 64
        %v1341 = vpop.permute.xlu0 %1340
        %1346 = vrot.lane.b32.xlu0 %v1255, 96
        %v1347 = vpop.permute.xlu0 %1346
        %1348 = vrot.lane.b32.xlu0 %v1257, 96
        %v1349 = vpop.permute.xlu0 %1348
        %v1352 = vsel %vm536, %v1044, %v1331
        %v1353 = vsel %vm536, %v1046, %v1333
        %vm1354 = vcmask 523264
        %v1355 = vsel %vm1354, %v1352, %v1339
        %v1356 = vsel %vm1354, %v1353, %v1341
        %vm1357 = vcmask 785408
        %v1358 = vsel %vm1357, %v1355, %v1347
        %v1359 = vsel %vm1357, %v1356, %v1349
        %v1360 = vpack.c.bf16 %v1359, %v1358
        %v1361 = vpack.c.bf16 %v1326, %v1324
        %v1362 = vld [vmem:[%s2] sm:$0xff]
        %v1363 = vld [vmem:[%s2 + $0x8] sm:$0xff]
        %v1364 = vld [vmem:[%s2 + $0x10] sm:$0xff]
        %v1365 = vld [vmem:[%s2 + $0x18] sm:$0xff]
        %v1366 = vld [vmem:[%s2 + $0x20] sm:$0xff]
        %v1367 = vld [vmem:[%s2 + $0x28] sm:$0xff]
        %v1368 = vld [vmem:[%s2 + $0x30] sm:$0xff]
        %v1369 = vld [vmem:[%s2 + $0x38] sm:$0xff]
        %v1370 = vld [vmem:[%s2 + $0x40] sm:$0xff]
        %v1371 = vld [vmem:[%s2 + $0x48] sm:$0xff]
        %v1372 = vld [vmem:[%s2 + $0x50] sm:$0xff]
        %v1373 = vld [vmem:[%s2 + $0x58] sm:$0xff]
        %v1374 = vld [vmem:[%s2 + $0x60] sm:$0xff]
        %v1375 = vld [vmem:[%s2 + $0x68] sm:$0xff]
        %v1376 = vld [vmem:[%s2 + $0x70] sm:$0xff]
        %v1377 = vld [vmem:[%s2 + $0x78] sm:$0xff]
        %v1378 = vld [vmem:[%s2 + $0x80] sm:$0xff]
        %v1379 = vld [vmem:[%s2 + $0x88] sm:$0xff]
        %v1380 = vld [vmem:[%s2 + $0x90] sm:$0xff]
        %v1381 = vld [vmem:[%s2 + $0x98] sm:$0xff]
        %v1382 = vld [vmem:[%s3] sm:$0x3]
        %v1384 = vperm.slane %v1382, 0
        %v1385 = vperm.slane %v1382, 1
        %v1408 = vunpack.c.l.b16 %v1362
        %v1409 = vunpack.c.h.b16 %v1362
        %v1410 = vunpack.c.l.b16 %v1363
        %v1411 = vunpack.c.h.b16 %v1363
        %v1412 = vunpack.c.l.b16 %v1364
        %v1413 = vunpack.c.h.b16 %v1364
        %v1414 = vunpack.c.l.b16 %v1365
        %v1415 = vunpack.c.h.b16 %v1365
        %v1416 = vunpack.c.l.b16 %v1366
        %v1417 = vunpack.c.h.b16 %v1366
        %v1418 = vunpack.c.l.b16 %v1367
        %v1419 = vunpack.c.h.b16 %v1367
        %v1420 = vunpack.c.l.b16 %v1368
        %v1421 = vunpack.c.h.b16 %v1368
        %v1422 = vunpack.c.l.b16 %v1369
        %v1423 = vunpack.c.h.b16 %v1369
        %v1424 = vunpack.c.l.b16 %v1370
        %v1425 = vunpack.c.h.b16 %v1370
        %v1426 = vunpack.c.l.b16 %v1371
        %v1427 = vunpack.c.h.b16 %v1371
        %v1428 = vunpack.c.l.b16 %v1372
        %v1429 = vunpack.c.h.b16 %v1372
        %v1430 = vunpack.c.l.b16 %v1373
        %v1431 = vunpack.c.h.b16 %v1373
        %v1432 = vunpack.c.l.b16 %v1374
        %v1433 = vunpack.c.h.b16 %v1374
        %v1434 = vunpack.c.l.b16 %v1375
        %v1435 = vunpack.c.h.b16 %v1375
        %v1436 = vunpack.c.l.b16 %v1376
        %v1437 = vunpack.c.h.b16 %v1376
        %v1438 = vunpack.c.l.b16 %v1377
        %v1439 = vunpack.c.h.b16 %v1377
        %v1440 = vunpack.c.l.b16 %v1378
        %v1441 = vunpack.c.h.b16 %v1378
        %v1442 = vunpack.c.l.b16 %v1379
        %v1443 = vunpack.c.h.b16 %v1379
        %v1444 = vunpack.c.l.b16 %v1380
        %v1445 = vunpack.c.h.b16 %v1380
        %v1446 = vunpack.c.l.b16 %v1381
        %v1447 = vunpack.c.h.b16 %v1381
        %v1448 = vpack.c.b16 %v1410, %v1408
        %v1449 = vpack.c.b16 %v1411, %v1409
        %v1450 = vpack.c.b16 %v1414, %v1412
        %v1451 = vpack.c.b16 %v1415, %v1413
        %v1452 = vpack.c.b16 %v1418, %v1416
        %v1453 = vpack.c.b16 %v1419, %v1417
        %v1454 = vpack.c.b16 %v1422, %v1420
        %v1455 = vpack.c.b16 %v1423, %v1421
        %v1456 = vpack.c.b16 %v1426, %v1424
        %v1457 = vpack.c.b16 %v1427, %v1425
        %v1458 = vpack.c.b16 %v1430, %v1428
        %v1459 = vpack.c.b16 %v1431, %v1429
        %v1460 = vpack.c.b16 %v1434, %v1432
        %v1461 = vpack.c.b16 %v1435, %v1433
        %v1462 = vpack.c.b16 %v1438, %v1436
        %v1463 = vpack.c.b16 %v1439, %v1437
        %v1464 = vpack.c.b16 %v1442, %v1440
        %v1465 = vpack.c.b16 %v1443, %v1441
        %v1466 = vpack.c.b16 %v1446, %v1444
        %v1467 = vpack.c.b16 %v1447, %v1445
        %v1489 = vsel %vm536, %v1361, 0
        %1491 = vmatpush.bf16.msra.mxu0 %v1462
        %1492 = vmatpush.bf16.msra.mxu0 %v1460
        %1493 = vmatpush.bf16.msra.mxu0 %v1458
        %1494 = vmatpush.bf16.msra.mxu0 %v1456
        %1495 = vmatpush.bf16.msra.mxu0 %v1454
        %1496 = vmatpush.bf16.msra.mxu0 %v1452
        %1497 = vmatpush.bf16.msra.mxu0 %v1450
        %1498 = vmatpush.bf16.msra.mxu0 %v1448
        %1499 = vmatmul.bf16.gmra.mxu0 %v1360
        %v1500 = vpop.f32.mrf.mxu0
        %v1501 = vadd.f32 %v1384, %v1500
        %v1502 = vpop.f32.mrf.mxu0
        %v1503 = vadd.f32 %v1384, %v1502
        %1504 = vdwg.mxu0
        %1505 = vmatpush.bf16.msra.mxu0 0
        %1506 = vmatpush.bf16.msra.mxu0 0
        %1507 = vmatpush.bf16.msra.mxu0 0
        %1508 = vmatpush.bf16.msra.mxu0 0
        %1509 = vmatpush.bf16.msra.mxu0 0
        %1510 = vmatpush.bf16.msra.mxu0 0
        %1511 = vmatpush.bf16.msra.mxu0 %v1466
        %1512 = vmatpush.bf16.msra.mxu0 %v1464
        %1513 = vmatmul.bf16.gmra.mxu0 %v1489
        %v1514 = vpop.f32.mrf.mxu0
        %v1515 = vadd.f32 %v1501, %v1514
        %v1516 = vpop.f32.mrf.mxu0
        %v1517 = vadd.f32 %v1503, %v1516
        %1518 = vdwg.mxu0
        %1519 = vmatpush.bf16.msra.mxu0 %v1463
        %1520 = vmatpush.bf16.msra.mxu0 %v1461
        %1521 = vmatpush.bf16.msra.mxu0 %v1459
        %1522 = vmatpush.bf16.msra.mxu0 %v1457
        %1523 = vmatpush.bf16.msra.mxu0 %v1455
        %1524 = vmatpush.bf16.msra.mxu0 %v1453
        %1525 = vmatpush.bf16.msra.mxu0 %v1451
        %1526 = vmatpush.bf16.msra.mxu0 %v1449
        %1527 = vmatmul.bf16.gmra.mxu0 %v1360
        %v1528 = vpop.f32.mrf.mxu0
        %v1529 = vadd.f32 %v1385, %v1528
        %v1530 = vpop.f32.mrf.mxu0
        %v1531 = vadd.f32 %v1385, %v1530
        %1532 = vdwg.mxu0
        %1533 = vmatpush.bf16.msra.mxu0 0
        %1534 = vmatpush.bf16.msra.mxu0 0
        %1535 = vmatpush.bf16.msra.mxu0 0
        %1536 = vmatpush.bf16.msra.mxu0 0
        %1537 = vmatpush.bf16.msra.mxu0 0
        %1538 = vmatpush.bf16.msra.mxu0 0
        %1539 = vmatpush.bf16.msra.mxu0 %v1467
        %1540 = vmatpush.bf16.msra.mxu0 %v1465
        %1541 = vmatmul.bf16.gmra.mxu0 %v1489
        %v1542 = vpop.f32.mrf.mxu0
        %v1543 = vadd.f32 %v1529, %v1542
        %v1544 = vpop.f32.mrf.mxu0
        %v1545 = vadd.f32 %v1531, %v1544
        %1546 = vdwg.mxu0
        %v1547 = vadd.f32 %v612, %v1515
        %v1548 = vadd.f32 %v613, %v1543
        %v1549 = vadd.f32 %v614, %v1517
        %v1550 = vadd.f32 %v615, %v1545
        %v1551 = vld [vmem:[%s10] sm:$0x3]
        %v1552 = vld [vmem:[%s11] sm:$0x3]
        %v1553 = vsel %vm536, %v1548, 0.0
        %v1554 = vadd.f32 %v1547, %v1553
        %1555 = vadd.xlane.f32.xlu0 %v1554
        %v1556 = vpop.xlane.xlu0 %1555
        %v1557 = vsel %vm536, %v1550, 0.0
        %v1558 = vadd.f32 %v1549, %v1557
        %1559 = vadd.xlane.f32.xlu0 %v1558
        %v1560 = vpop.xlane.xlu0 %1559
        %v1561 = vmul.f32 %v1556, %v551
        %v1562 = vmul.f32 %v1560, %v551
        %v1563 = vsub.f32 %v1547, %v1561
        %v1564 = vsub.f32 %v1548, %v1561
        %v1565 = vsub.f32 %v1549, %v1562
        %v1566 = vsub.f32 %v1550, %v1562
        %v1567 = vmul.f32 %v1563, %v1563
        %v1568 = vmul.f32 %v1564, %v1564
        %v1569 = vmul.f32 %v1565, %v1565
        %v1570 = vmul.f32 %v1566, %v1566
        %v1571 = vsel %vm536, %v1568, 0.0
        %v1572 = vadd.f32 %v1567, %v1571
        %1573 = vadd.xlane.f32.xlu0 %v1572
        %v1574 = vpop.xlane.xlu0 %1573
        %v1575 = vsel %vm536, %v1570, 0.0
        %v1576 = vadd.f32 %v1569, %v1575
        %1577 = vadd.xlane.f32.xlu0 %v1576
        %v1578 = vpop.xlane.xlu0 %1577
        %v1579 = vmul.f32 %v1574, %v551
        %v1580 = vmul.f32 %v1578, %v551
        %v1581 = vadd.f32 %v1579, 1e-05
        %v1582 = vadd.f32 %v1580, 1e-05
        %v1583 = vrsqrt.pop %v1581
        %v1584 = vmul.f32 %v1583, %v1581
        %v1585 = vmul.f32 %v1584, %v1583
        %v1586 = vmul.f32 0.5, %v1585
        %v1587 = vsub.f32 1.5, %v1586
        %v1588 = vmul.f32 %v1583, %v1587
        %vm1589 = vweird.f32 %v1581
        %vm1590 = vweird.f32 %v1583
        %vm1591 = vmor %vm1589, %vm1590
        %v1592 = vsel %vm1591, %v1583, %v1588
        %v1593 = vrsqrt.pop %v1582
        %v1594 = vmul.f32 %v1593, %v1582
        %v1595 = vmul.f32 %v1594, %v1593
        %v1596 = vmul.f32 0.5, %v1595
        %v1597 = vsub.f32 1.5, %v1596
        %v1598 = vmul.f32 %v1593, %v1597
        %vm1599 = vweird.f32 %v1582
        %vm1600 = vweird.f32 %v1593
        %vm1601 = vmor %vm1599, %vm1600
        %v1602 = vsel %vm1601, %v1593, %v1598
        %v1603 = vmul.f32 %v1563, %v1592
        %v1604 = vmul.f32 %v1564, %v1592
        %v1605 = vmul.f32 %v1565, %v1602
        %v1606 = vmul.f32 %v1566, %v1602
        %v1608 = vperm.slane %v1551, 0
        %v1609 = vperm.slane %v1551, 1
        %v1612 = vmul.f32 %v1603, %v1608
        %v1613 = vmul.f32 %v1604, %v1609
        %v1614 = vmul.f32 %v1605, %v1608
        %v1615 = vmul.f32 %v1606, %v1609
        %v1617 = vperm.slane %v1552, 0
        %v1618 = vperm.slane %v1552, 1
        %v1621 = vadd.f32 %v1612, %v1617
        %v1622 = vadd.f32 %v1613, %v1618
        %v1623 = vadd.f32 %v1614, %v1617
        %v1624 = vadd.f32 %v1615, %v1618
        %v1625 = vpack.c.bf16 %v1623, %v1621
        %v1626 = vpack.c.bf16 %v1624, %v1622
        %v1627 = vld [vmem:[%s4] sm:$0xff]
        %v1628 = vld [vmem:[%s4 + $0x8] sm:$0xff]
        %v1629 = vld [vmem:[%s4 + $0x10] sm:$0xf]
        %v1630 = vld [vmem:[%s4 + $0x14] sm:$0xff]
        %v1631 = vld [vmem:[%s4 + $0x1c] sm:$0xff]
        %v1632 = vld [vmem:[%s4 + $0x24] sm:$0xf]
        %v1633 = vld [vmem:[%s4 + $0x28] sm:$0xff]
        %v1634 = vld [vmem:[%s4 + $0x30] sm:$0xff]
        %v1635 = vld [vmem:[%s4 + $0x38] sm:$0xf]
        %v1636 = vld [vmem:[%s4 + $0x3c] sm:$0xff]
        %v1637 = vld [vmem:[%s4 + $0x44] sm:$0xff]
        %v1638 = vld [vmem:[%s4 + $0x4c] sm:$0xf]
        %v1639 = vld [vmem:[%s4 + $0x50] sm:$0xff]
        %v1640 = vld [vmem:[%s4 + $0x58] sm:$0xff]
        %v1641 = vld [vmem:[%s4 + $0x60] sm:$0xf]
        %v1642 = vld [vmem:[%s4 + $0x64] sm:$0xff]
        %v1643 = vld [vmem:[%s4 + $0x6c] sm:$0xff]
        %v1644 = vld [vmem:[%s4 + $0x74] sm:$0xf]
        %v1645 = vld [vmem:[%s4 + $0x78] sm:$0xff]
        %v1646 = vld [vmem:[%s4 + $0x80] sm:$0xff]
        %v1647 = vld [vmem:[%s4 + $0x88] sm:$0xf]
        %v1648 = vld [vmem:[%s4 + $0x8c] sm:$0xff]
        %v1649 = vld [vmem:[%s4 + $0x94] sm:$0xff]
        %v1650 = vld [vmem:[%s4 + $0x9c] sm:$0xf]
        %v1651 = vld [vmem:[%s4 + $0xa0] sm:$0xff]
        %v1652 = vld [vmem:[%s4 + $0xa8] sm:$0xff]
        %v1653 = vld [vmem:[%s4 + $0xb0] sm:$0xf]
        %v1654 = vld [vmem:[%s4 + $0xb4] sm:$0xff]
        %v1655 = vld [vmem:[%s4 + $0xbc] sm:$0xff]
        %v1656 = vld [vmem:[%s4 + $0xc4] sm:$0xf]
        %v1657 = vld [vmem:[%s4 + $0xc8] sm:$0xff]
        %v1658 = vld [vmem:[%s4 + $0xd0] sm:$0xff]
        %v1659 = vld [vmem:[%s4 + $0xd8] sm:$0xf]
        %v1660 = vld [vmem:[%s4 + $0xdc] sm:$0xff]
        %v1661 = vld [vmem:[%s4 + $0xe4] sm:$0xff]
        %v1662 = vld [vmem:[%s4 + $0xec] sm:$0xf]
        %v1663 = vld [vmem:[%s4 + $0xf0] sm:$0xff]
        %v1664 = vld [vmem:[%s4 + $0xf8] sm:$0xff]
        %v1665 = vld [vmem:[%s4 + $0x100] sm:$0xf]
        %v1666 = vld [vmem:[%s4 + $0x104] sm:$0xff]
        %v1667 = vld [vmem:[%s4 + $0x10c] sm:$0xff]
        %v1668 = vld [vmem:[%s4 + $0x114] sm:$0xf]
        %v1669 = vld [vmem:[%s4 + $0x118] sm:$0xff]
        %v1670 = vld [vmem:[%s4 + $0x120] sm:$0xff]
        %v1671 = vld [vmem:[%s4 + $0x128] sm:$0xf]
        %v1672 = vld [vmem:[%s4 + $0x12c] sm:$0xff]
        %v1673 = vld [vmem:[%s4 + $0x134] sm:$0xff]
        %v1674 = vld [vmem:[%s4 + $0x13c] sm:$0xf]
        %v1675 = vld [vmem:[%s4 + $0x140] sm:$0xff]
        %v1676 = vld [vmem:[%s4 + $0x148] sm:$0xff]
        %v1677 = vld [vmem:[%s4 + $0x150] sm:$0xf]
        %v1678 = vld [vmem:[%s4 + $0x154] sm:$0xff]
        %v1679 = vld [vmem:[%s4 + $0x15c] sm:$0xff]
        %v1680 = vld [vmem:[%s4 + $0x164] sm:$0xf]
        %v1681 = vld [vmem:[%s4 + $0x168] sm:$0xff]
        %v1682 = vld [vmem:[%s4 + $0x170] sm:$0xff]
        %v1683 = vld [vmem:[%s4 + $0x178] sm:$0xf]
        %v1684 = vld [vmem:[%s4 + $0x17c] sm:$0xff]
        %v1685 = vld [vmem:[%s4 + $0x184] sm:$0xff]
        %v1686 = vld [vmem:[%s4 + $0x18c] sm:$0xf]
        %v1687 = vld [vmem:[%s5] sm:$0x1f]
        %v1689 = vperm.slane %v1687, 0
        %v1690 = vperm.slane %v1687, 1
        %v1691 = vperm.slane %v1687, 2
        %v1692 = vperm.slane %v1687, 3
        %v1693 = vperm.slane %v1687, 4
        %v1759 = vunpack.c.l.b16 %v1627
        %v1760 = vunpack.c.h.b16 %v1627
        %v1761 = vunpack.c.l.b16 %v1628
        %v1762 = vunpack.c.h.b16 %v1628
        %v1763 = vunpack.c.l.b16 %v1629
        %v1764 = vunpack.c.l.b16 %v1630
        %v1765 = vunpack.c.h.b16 %v1630
        %v1766 = vunpack.c.l.b16 %v1631
        %v1767 = vunpack.c.h.b16 %v1631
        %v1768 = vunpack.c.l.b16 %v1632
        %v1769 = vunpack.c.l.b16 %v1633
        %v1770 = vunpack.c.h.b16 %v1633
        %v1771 = vunpack.c.l.b16 %v1634
        %v1772 = vunpack.c.h.b16 %v1634
        %v1773 = vunpack.c.l.b16 %v1635
        %v1774 = vunpack.c.l.b16 %v1636
        %v1775 = vunpack.c.h.b16 %v1636
        %v1776 = vunpack.c.l.b16 %v1637
        %v1777 = vunpack.c.h.b16 %v1637
        %v1778 = vunpack.c.l.b16 %v1638
        %v1779 = vunpack.c.l.b16 %v1639
        %v1780 = vunpack.c.h.b16 %v1639
        %v1781 = vunpack.c.l.b16 %v1640
        %v1782 = vunpack.c.h.b16 %v1640
        %v1783 = vunpack.c.l.b16 %v1641
        %v1784 = vunpack.c.l.b16 %v1642
        %v1785 = vunpack.c.h.b16 %v1642
        %v1786 = vunpack.c.l.b16 %v1643
        %v1787 = vunpack.c.h.b16 %v1643
        %v1788 = vunpack.c.l.b16 %v1644
        %v1789 = vunpack.c.l.b16 %v1645
        %v1790 = vunpack.c.h.b16 %v1645
        %v1791 = vunpack.c.l.b16 %v1646
        %v1792 = vunpack.c.h.b16 %v1646
        %v1793 = vunpack.c.l.b16 %v1647
        %v1794 = vunpack.c.l.b16 %v1648
        %v1795 = vunpack.c.h.b16 %v1648
        %v1796 = vunpack.c.l.b16 %v1649
        %v1797 = vunpack.c.h.b16 %v1649
        %v1798 = vunpack.c.l.b16 %v1650
        %v1799 = vunpack.c.l.b16 %v1651
        %v1800 = vunpack.c.h.b16 %v1651
        %v1801 = vunpack.c.l.b16 %v1652
        %v1802 = vunpack.c.h.b16 %v1652
        %v1803 = vunpack.c.l.b16 %v1653
        %v1804 = vunpack.c.l.b16 %v1654
        %v1805 = vunpack.c.h.b16 %v1654
        %v1806 = vunpack.c.l.b16 %v1655
        %v1807 = vunpack.c.h.b16 %v1655
        %v1808 = vunpack.c.l.b16 %v1656
        %v1809 = vunpack.c.l.b16 %v1657
        %v1810 = vunpack.c.h.b16 %v1657
        %v1811 = vunpack.c.l.b16 %v1658
        %v1812 = vunpack.c.h.b16 %v1658
        %v1813 = vunpack.c.l.b16 %v1659
        %v1814 = vunpack.c.l.b16 %v1660
        %v1815 = vunpack.c.h.b16 %v1660
        %v1816 = vunpack.c.l.b16 %v1661
        %v1817 = vunpack.c.h.b16 %v1661
        %v1818 = vunpack.c.l.b16 %v1662
        %v1819 = vunpack.c.l.b16 %v1663
        %v1820 = vunpack.c.h.b16 %v1663
        %v1821 = vunpack.c.l.b16 %v1664
        %v1822 = vunpack.c.h.b16 %v1664
        %v1823 = vunpack.c.l.b16 %v1665
        %v1824 = vunpack.c.l.b16 %v1666
        %v1825 = vunpack.c.h.b16 %v1666
        %v1826 = vunpack.c.l.b16 %v1667
        %v1827 = vunpack.c.h.b16 %v1667
        %v1828 = vunpack.c.l.b16 %v1668
        %v1829 = vunpack.c.l.b16 %v1669
        %v1830 = vunpack.c.h.b16 %v1669
        %v1831 = vunpack.c.l.b16 %v1670
        %v1832 = vunpack.c.h.b16 %v1670
        %v1833 = vunpack.c.l.b16 %v1671
        %v1834 = vunpack.c.l.b16 %v1672
        %v1835 = vunpack.c.h.b16 %v1672
        %v1836 = vunpack.c.l.b16 %v1673
        %v1837 = vunpack.c.h.b16 %v1673
        %v1838 = vunpack.c.l.b16 %v1674
        %v1839 = vunpack.c.l.b16 %v1675
        %v1840 = vunpack.c.h.b16 %v1675
        %v1841 = vunpack.c.l.b16 %v1676
        %v1842 = vunpack.c.h.b16 %v1676
        %v1843 = vunpack.c.l.b16 %v1677
        %v1844 = vunpack.c.l.b16 %v1678
        %v1845 = vunpack.c.h.b16 %v1678
        %v1846 = vunpack.c.l.b16 %v1679
        %v1847 = vunpack.c.h.b16 %v1679
        %v1848 = vunpack.c.l.b16 %v1680
        %v1849 = vunpack.c.l.b16 %v1681
        %v1850 = vunpack.c.h.b16 %v1681
        %v1851 = vunpack.c.l.b16 %v1682
        %v1852 = vunpack.c.h.b16 %v1682
        %v1853 = vunpack.c.l.b16 %v1683
        %v1854 = vunpack.c.l.b16 %v1684
        %v1855 = vunpack.c.h.b16 %v1684
        %v1856 = vunpack.c.l.b16 %v1685
        %v1857 = vunpack.c.h.b16 %v1685
        %v1858 = vunpack.c.l.b16 %v1686
        %v1859 = vpack.c.b16 %v1764, %v1759
        %v1860 = vpack.c.b16 %v1765, %v1760
        %v1861 = vpack.c.b16 %v1766, %v1761
        %v1862 = vpack.c.b16 %v1767, %v1762
        %v1863 = vpack.c.b16 %v1768, %v1763
        %v1864 = vpack.c.b16 %v1774, %v1769
        %v1865 = vpack.c.b16 %v1775, %v1770
        %v1866 = vpack.c.b16 %v1776, %v1771
        %v1867 = vpack.c.b16 %v1777, %v1772
        %v1868 = vpack.c.b16 %v1778, %v1773
        %v1869 = vpack.c.b16 %v1784, %v1779
        %v1870 = vpack.c.b16 %v1785, %v1780
        %v1871 = vpack.c.b16 %v1786, %v1781
        %v1872 = vpack.c.b16 %v1787, %v1782
        %v1873 = vpack.c.b16 %v1788, %v1783
        %v1874 = vpack.c.b16 %v1794, %v1789
        %v1875 = vpack.c.b16 %v1795, %v1790
        %v1876 = vpack.c.b16 %v1796, %v1791
        %v1877 = vpack.c.b16 %v1797, %v1792
        %v1878 = vpack.c.b16 %v1798, %v1793
        %v1879 = vpack.c.b16 %v1804, %v1799
        %v1880 = vpack.c.b16 %v1805, %v1800
        %v1881 = vpack.c.b16 %v1806, %v1801
        %v1882 = vpack.c.b16 %v1807, %v1802
        %v1883 = vpack.c.b16 %v1808, %v1803
        %v1884 = vpack.c.b16 %v1814, %v1809
        %v1885 = vpack.c.b16 %v1815, %v1810
        %v1886 = vpack.c.b16 %v1816, %v1811
        %v1887 = vpack.c.b16 %v1817, %v1812
        %v1888 = vpack.c.b16 %v1818, %v1813
        %v1889 = vpack.c.b16 %v1824, %v1819
        %v1890 = vpack.c.b16 %v1825, %v1820
        %v1891 = vpack.c.b16 %v1826, %v1821
        %v1892 = vpack.c.b16 %v1827, %v1822
        %v1893 = vpack.c.b16 %v1828, %v1823
        %v1894 = vpack.c.b16 %v1834, %v1829
        %v1895 = vpack.c.b16 %v1835, %v1830
        %v1896 = vpack.c.b16 %v1836, %v1831
        %v1897 = vpack.c.b16 %v1837, %v1832
        %v1898 = vpack.c.b16 %v1838, %v1833
        %v1899 = vpack.c.b16 %v1844, %v1839
        %v1900 = vpack.c.b16 %v1845, %v1840
        %v1901 = vpack.c.b16 %v1846, %v1841
        %v1902 = vpack.c.b16 %v1847, %v1842
        %v1903 = vpack.c.b16 %v1848, %v1843
        %v1904 = vpack.c.b16 %v1854, %v1849
        %v1905 = vpack.c.b16 %v1855, %v1850
        %v1906 = vpack.c.b16 %v1856, %v1851
        %v1907 = vpack.c.b16 %v1857, %v1852
        %v1908 = vpack.c.b16 %v1858, %v1853
        %v1960 = vsel %vm536, %v1626, 0
        %1962 = vmatpush.bf16.msra.mxu0 %v1894
        %1963 = vmatpush.bf16.msra.mxu0 %v1889
        %1964 = vmatpush.bf16.msra.mxu0 %v1884
        %1965 = vmatpush.bf16.msra.mxu0 %v1879
        %1966 = vmatpush.bf16.msra.mxu0 %v1874
        %1967 = vmatpush.bf16.msra.mxu0 %v1869
        %1968 = vmatpush.bf16.msra.mxu0 %v1864
        %1969 = vmatpush.bf16.msra.mxu0 %v1859
        %1970 = vmatmul.bf16.gmra.mxu0 %v1625
        %v1971 = vpop.f32.mrf.mxu0
        %v1972 = vadd.f32 %v1689, %v1971
        %v1973 = vpop.f32.mrf.mxu0
        %v1974 = vadd.f32 %v1689, %v1973
        %1975 = vdwg.mxu0
        %1976 = vmatpush.bf16.msra.mxu0 0
        %1977 = vmatpush.bf16.msra.mxu0 0
        %1978 = vmatpush.bf16.msra.mxu0 0
        %1979 = vmatpush.bf16.msra.mxu0 0
        %1980 = vmatpush.bf16.msra.mxu0 0
        %1981 = vmatpush.bf16.msra.mxu0 0
        %1982 = vmatpush.bf16.msra.mxu0 %v1904
        %1983 = vmatpush.bf16.msra.mxu0 %v1899
        %1984 = vmatmul.bf16.gmra.mxu0 %v1960
        %v1985 = vpop.f32.mrf.mxu0
        %v1986 = vadd.f32 %v1972, %v1985
        %v1987 = vpop.f32.mrf.mxu0
        %v1988 = vadd.f32 %v1974, %v1987
        %1989 = vdwg.mxu0
        %1990 = vmatpush.bf16.msra.mxu0 %v1895
        %1991 = vmatpush.bf16.msra.mxu0 %v1890
        %1992 = vmatpush.bf16.msra.mxu0 %v1885
        %1993 = vmatpush.bf16.msra.mxu0 %v1880
        %1994 = vmatpush.bf16.msra.mxu0 %v1875
        %1995 = vmatpush.bf16.msra.mxu0 %v1870
        %1996 = vmatpush.bf16.msra.mxu0 %v1865
        %1997 = vmatpush.bf16.msra.mxu0 %v1860
        %1998 = vmatmul.bf16.gmra.mxu0 %v1625
        %v1999 = vpop.f32.mrf.mxu0
        %v2000 = vadd.f32 %v1690, %v1999
        %v2001 = vpop.f32.mrf.mxu0
        %v2002 = vadd.f32 %v1690, %v2001
        %2003 = vdwg.mxu0
        %2004 = vmatpush.bf16.msra.mxu0 0
        %2005 = vmatpush.bf16.msra.mxu0 0
        %2006 = vmatpush.bf16.msra.mxu0 0
        %2007 = vmatpush.bf16.msra.mxu0 0
        %2008 = vmatpush.bf16.msra.mxu0 0
        %2009 = vmatpush.bf16.msra.mxu0 0
        %2010 = vmatpush.bf16.msra.mxu0 %v1905
        %2011 = vmatpush.bf16.msra.mxu0 %v1900
        %2012 = vmatmul.bf16.gmra.mxu0 %v1960
        %v2013 = vpop.f32.mrf.mxu0
        %v2014 = vadd.f32 %v2000, %v2013
        %v2015 = vpop.f32.mrf.mxu0
        %v2016 = vadd.f32 %v2002, %v2015
        %2017 = vdwg.mxu0
        %2018 = vmatpush.bf16.msra.mxu0 %v1896
        %2019 = vmatpush.bf16.msra.mxu0 %v1891
        %2020 = vmatpush.bf16.msra.mxu0 %v1886
        %2021 = vmatpush.bf16.msra.mxu0 %v1881
        %2022 = vmatpush.bf16.msra.mxu0 %v1876
        %2023 = vmatpush.bf16.msra.mxu0 %v1871
        %2024 = vmatpush.bf16.msra.mxu0 %v1866
        %2025 = vmatpush.bf16.msra.mxu0 %v1861
        %2026 = vmatmul.bf16.gmra.mxu0 %v1625
        %v2027 = vpop.f32.mrf.mxu0
        %v2028 = vadd.f32 %v1691, %v2027
        %v2029 = vpop.f32.mrf.mxu0
        %v2030 = vadd.f32 %v1691, %v2029
        %2031 = vdwg.mxu0
        %2032 = vmatpush.bf16.msra.mxu0 0
        %2033 = vmatpush.bf16.msra.mxu0 0
        %2034 = vmatpush.bf16.msra.mxu0 0
        %2035 = vmatpush.bf16.msra.mxu0 0
        %2036 = vmatpush.bf16.msra.mxu0 0
        %2037 = vmatpush.bf16.msra.mxu0 0
        %2038 = vmatpush.bf16.msra.mxu0 %v1906
        %2039 = vmatpush.bf16.msra.mxu0 %v1901
        %2040 = vmatmul.bf16.gmra.mxu0 %v1960
        %v2041 = vpop.f32.mrf.mxu0
        %v2042 = vadd.f32 %v2028, %v2041
        %v2043 = vpop.f32.mrf.mxu0
        %v2044 = vadd.f32 %v2030, %v2043
        %2045 = vdwg.mxu0
        %2046 = vmatpush.bf16.msra.mxu0 %v1897
        %2047 = vmatpush.bf16.msra.mxu0 %v1892
        %2048 = vmatpush.bf16.msra.mxu0 %v1887
        %2049 = vmatpush.bf16.msra.mxu0 %v1882
        %2050 = vmatpush.bf16.msra.mxu0 %v1877
        %2051 = vmatpush.bf16.msra.mxu0 %v1872
        %2052 = vmatpush.bf16.msra.mxu0 %v1867
        %2053 = vmatpush.bf16.msra.mxu0 %v1862
        %2054 = vmatmul.bf16.gmra.mxu0 %v1625
        %v2055 = vpop.f32.mrf.mxu0
        %v2056 = vadd.f32 %v1692, %v2055
        %v2057 = vpop.f32.mrf.mxu0
        %v2058 = vadd.f32 %v1692, %v2057
        %2059 = vdwg.mxu0
        %2060 = vmatpush.bf16.msra.mxu0 0
        %2061 = vmatpush.bf16.msra.mxu0 0
        %2062 = vmatpush.bf16.msra.mxu0 0
        %2063 = vmatpush.bf16.msra.mxu0 0
        %2064 = vmatpush.bf16.msra.mxu0 0
        %2065 = vmatpush.bf16.msra.mxu0 0
        %2066 = vmatpush.bf16.msra.mxu0 %v1907
        %2067 = vmatpush.bf16.msra.mxu0 %v1902
        %2068 = vmatmul.bf16.gmra.mxu0 %v1960
        %v2069 = vpop.f32.mrf.mxu0
        %v2070 = vadd.f32 %v2056, %v2069
        %v2071 = vpop.f32.mrf.mxu0
        %v2072 = vadd.f32 %v2058, %v2071
        %2073 = vdwg.mxu0
        %2074 = vmatpush.bf16.msra.mxu0 %v1898
        %2075 = vmatpush.bf16.msra.mxu0 %v1893
        %2076 = vmatpush.bf16.msra.mxu0 %v1888
        %2077 = vmatpush.bf16.msra.mxu0 %v1883
        %2078 = vmatpush.bf16.msra.mxu0 %v1878
        %2079 = vmatpush.bf16.msra.mxu0 %v1873
        %2080 = vmatpush.bf16.msra.mxu0 %v1868
        %2081 = vmatpush.bf16.msra.mxu0 %v1863
        %2082 = vmatmul.bf16.gmra.mxu0 %v1625
        %v2083 = vpop.f32.mrf.mxu0
        %v2084 = vadd.f32 %v1693, %v2083
        %v2085 = vpop.f32.mrf.mxu0
        %v2086 = vadd.f32 %v1693, %v2085
        %2087 = vdwg.mxu0
        %2088 = vmatpush.bf16.msra.mxu0 0
        %2089 = vmatpush.bf16.msra.mxu0 0
        %2090 = vmatpush.bf16.msra.mxu0 0
        %2091 = vmatpush.bf16.msra.mxu0 0
        %2092 = vmatpush.bf16.msra.mxu0 0
        %2093 = vmatpush.bf16.msra.mxu0 0
        %2094 = vmatpush.bf16.msra.mxu0 %v1908
        %2095 = vmatpush.bf16.msra.mxu0 %v1903
        %2096 = vmatmul.bf16.gmra.mxu0 %v1960
        %v2097 = vpop.f32.mrf.mxu0
        %v2098 = vadd.f32 %v2084, %v2097
        %v2099 = vpop.f32.mrf.mxu0
        %v2100 = vadd.f32 %v2086, %v2099
        %2101 = vdwg.mxu0
        %v2102 = vmax.f32 %v1986, 0.0
        %v2103 = vmax.f32 %v2014, 0.0
        %v2104 = vmax.f32 %v2042, 0.0
        %v2105 = vmax.f32 %v2070, 0.0
        %v2106 = vmax.f32 %v2098, 0.0
        %v2107 = vmax.f32 %v1988, 0.0
        %v2108 = vmax.f32 %v2016, 0.0
        %v2109 = vmax.f32 %v2044, 0.0
        %v2110 = vmax.f32 %v2072, 0.0
        %v2111 = vmax.f32 %v2100, 0.0
        %v2112 = vpack.c.bf16 %v2107, %v2102
        %v2113 = vpack.c.bf16 %v2108, %v2103
        %v2114 = vpack.c.bf16 %v2109, %v2104
        %v2115 = vpack.c.bf16 %v2110, %v2105
        %v2116 = vpack.c.bf16 %v2111, %v2106
        %v2117 = vld [vmem:[%s6] sm:$0xff]
        %v2118 = vld [vmem:[%s6 + $0x8] sm:$0xff]
        %v2119 = vld [vmem:[%s6 + $0x10] sm:$0xff]
        %v2120 = vld [vmem:[%s6 + $0x18] sm:$0xff]
        %v2121 = vld [vmem:[%s6 + $0x20] sm:$0xff]
        %v2122 = vld [vmem:[%s6 + $0x28] sm:$0xff]
        %v2123 = vld [vmem:[%s6 + $0x30] sm:$0xff]
        %v2124 = vld [vmem:[%s6 + $0x38] sm:$0xff]
        %v2125 = vld [vmem:[%s6 + $0x40] sm:$0xff]
        %v2126 = vld [vmem:[%s6 + $0x48] sm:$0xff]
        %v2127 = vld [vmem:[%s6 + $0x50] sm:$0xff]
        %v2128 = vld [vmem:[%s6 + $0x58] sm:$0xff]
        %v2129 = vld [vmem:[%s6 + $0x60] sm:$0xff]
        %v2130 = vld [vmem:[%s6 + $0x68] sm:$0xff]
        %v2131 = vld [vmem:[%s6 + $0x70] sm:$0xff]
        %v2132 = vld [vmem:[%s6 + $0x78] sm:$0xff]
        %v2133 = vld [vmem:[%s6 + $0x80] sm:$0xff]
        %v2134 = vld [vmem:[%s6 + $0x88] sm:$0xff]
        %v2135 = vld [vmem:[%s6 + $0x90] sm:$0xff]
        %v2136 = vld [vmem:[%s6 + $0x98] sm:$0xff]
        %v2137 = vld [vmem:[%s6 + $0xa0] sm:$0xff]
        %v2138 = vld [vmem:[%s6 + $0xa8] sm:$0xff]
        %v2139 = vld [vmem:[%s6 + $0xb0] sm:$0xff]
        %v2140 = vld [vmem:[%s6 + $0xb8] sm:$0xff]
        %v2141 = vld [vmem:[%s6 + $0xc0] sm:$0xff]
        %v2142 = vld [vmem:[%s6 + $0xc8] sm:$0xff]
        %v2143 = vld [vmem:[%s6 + $0xd0] sm:$0xff]
        %v2144 = vld [vmem:[%s6 + $0xd8] sm:$0xff]
        %v2145 = vld [vmem:[%s6 + $0xe0] sm:$0xff]
        %v2146 = vld [vmem:[%s6 + $0xe8] sm:$0xff]
        %v2147 = vld [vmem:[%s6 + $0xf0] sm:$0xff]
        %v2148 = vld [vmem:[%s6 + $0xf8] sm:$0xff]
        %v2149 = vld [vmem:[%s6 + $0x100] sm:$0xff]
        %v2150 = vld [vmem:[%s6 + $0x108] sm:$0xff]
        %v2151 = vld [vmem:[%s6 + $0x110] sm:$0xff]
        %v2152 = vld [vmem:[%s6 + $0x118] sm:$0xff]
        %v2153 = vld [vmem:[%s6 + $0x120] sm:$0xff]
        %v2154 = vld [vmem:[%s6 + $0x128] sm:$0xff]
        %v2155 = vld [vmem:[%s6 + $0x130] sm:$0xff]
        %v2156 = vld [vmem:[%s6 + $0x138] sm:$0xff]
        %v2157 = vld [vmem:[%s6 + $0x140] sm:$0xff]
        %v2158 = vld [vmem:[%s6 + $0x148] sm:$0xff]
        %v2159 = vld [vmem:[%s6 + $0x150] sm:$0xff]
        %v2160 = vld [vmem:[%s6 + $0x158] sm:$0xff]
        %v2161 = vld [vmem:[%s6 + $0x160] sm:$0xff]
        %v2162 = vld [vmem:[%s6 + $0x168] sm:$0xff]
        %v2163 = vld [vmem:[%s6 + $0x170] sm:$0xff]
        %v2164 = vld [vmem:[%s6 + $0x178] sm:$0xff]
        %v2165 = vld [vmem:[%s6 + $0x180] sm:$0xff]
        %v2166 = vld [vmem:[%s6 + $0x188] sm:$0xff]
        %v2167 = vld [vmem:[%s6 + $0x190] sm:$0xff]
        %v2168 = vld [vmem:[%s6 + $0x198] sm:$0xff]
        %v2169 = vld [vmem:[%s6 + $0x1a0] sm:$0xff]
        %v2170 = vld [vmem:[%s6 + $0x1a8] sm:$0xff]
        %v2171 = vld [vmem:[%s6 + $0x1b0] sm:$0xff]
        %v2172 = vld [vmem:[%s6 + $0x1b8] sm:$0xff]
        %v2173 = vld [vmem:[%s6 + $0x1c0] sm:$0xff]
        %v2174 = vld [vmem:[%s6 + $0x1c8] sm:$0xff]
        %v2175 = vld [vmem:[%s6 + $0x1d0] sm:$0xff]
        %v2176 = vld [vmem:[%s6 + $0x1d8] sm:$0xff]
        %v2177 = vld [vmem:[%s6 + $0x1e0] sm:$0xff]
        %v2178 = vld [vmem:[%s6 + $0x1e8] sm:$0xff]
        %v2179 = vld [vmem:[%s6 + $0x1f0] sm:$0xff]
        %v2180 = vld [vmem:[%s6 + $0x1f8] sm:$0xff]
        %v2181 = vld [vmem:[%s6 + $0x200] sm:$0xff]
        %v2182 = vld [vmem:[%s6 + $0x208] sm:$0xff]
        %v2183 = vld [vmem:[%s6 + $0x210] sm:$0xff]
        %v2184 = vld [vmem:[%s6 + $0x218] sm:$0xff]
        %v2185 = vld [vmem:[%s6 + $0x220] sm:$0xff]
        %v2186 = vld [vmem:[%s6 + $0x228] sm:$0xff]
        %v2187 = vld [vmem:[%s6 + $0x230] sm:$0xff]
        %v2188 = vld [vmem:[%s6 + $0x238] sm:$0xff]
        %v2189 = vld [vmem:[%s6 + $0x240] sm:$0xff]
        %v2190 = vld [vmem:[%s6 + $0x248] sm:$0xff]
        %v2191 = vld [vmem:[%s6 + $0x250] sm:$0xff]
        %v2192 = vld [vmem:[%s6 + $0x258] sm:$0xff]
        %v2193 = vld [vmem:[%s6 + $0x260] sm:$0xff]
        %v2194 = vld [vmem:[%s6 + $0x268] sm:$0xff]
        %v2195 = vld [vmem:[%s6 + $0x270] sm:$0xff]
        %v2196 = vld [vmem:[%s6 + $0x278] sm:$0xff]
        %v2197 = vld [vmem:[%s7] sm:$0x3]
        %v2199 = vperm.slane %v2197, 0
        %v2200 = vperm.slane %v2197, 1
        %v2283 = vunpack.c.l.b16 %v2117
        %v2284 = vunpack.c.h.b16 %v2117
        %v2285 = vunpack.c.l.b16 %v2118
        %v2286 = vunpack.c.h.b16 %v2118
        %v2287 = vunpack.c.l.b16 %v2119
        %v2288 = vunpack.c.h.b16 %v2119
        %v2289 = vunpack.c.l.b16 %v2120
        %v2290 = vunpack.c.h.b16 %v2120
        %v2291 = vunpack.c.l.b16 %v2121
        %v2292 = vunpack.c.h.b16 %v2121
        %v2293 = vunpack.c.l.b16 %v2122
        %v2294 = vunpack.c.h.b16 %v2122
        %v2295 = vunpack.c.l.b16 %v2123
        %v2296 = vunpack.c.h.b16 %v2123
        %v2297 = vunpack.c.l.b16 %v2124
        %v2298 = vunpack.c.h.b16 %v2124
        %v2299 = vunpack.c.l.b16 %v2125
        %v2300 = vunpack.c.h.b16 %v2125
        %v2301 = vunpack.c.l.b16 %v2126
        %v2302 = vunpack.c.h.b16 %v2126
        %v2303 = vunpack.c.l.b16 %v2127
        %v2304 = vunpack.c.h.b16 %v2127
        %v2305 = vunpack.c.l.b16 %v2128
        %v2306 = vunpack.c.h.b16 %v2128
        %v2307 = vunpack.c.l.b16 %v2129
        %v2308 = vunpack.c.h.b16 %v2129
        %v2309 = vunpack.c.l.b16 %v2130
        %v2310 = vunpack.c.h.b16 %v2130
        %v2311 = vunpack.c.l.b16 %v2131
        %v2312 = vunpack.c.h.b16 %v2131
        %v2313 = vunpack.c.l.b16 %v2132
        %v2314 = vunpack.c.h.b16 %v2132
        %v2315 = vunpack.c.l.b16 %v2133
        %v2316 = vunpack.c.h.b16 %v2133
        %v2317 = vunpack.c.l.b16 %v2134
        %v2318 = vunpack.c.h.b16 %v2134
        %v2319 = vunpack.c.l.b16 %v2135
        %v2320 = vunpack.c.h.b16 %v2135
        %v2321 = vunpack.c.l.b16 %v2136
        %v2322 = vunpack.c.h.b16 %v2136
        %v2323 = vunpack.c.l.b16 %v2137
        %v2324 = vunpack.c.h.b16 %v2137
        %v2325 = vunpack.c.l.b16 %v2138
        %v2326 = vunpack.c.h.b16 %v2138
        %v2327 = vunpack.c.l.b16 %v2139
        %v2328 = vunpack.c.h.b16 %v2139
        %v2329 = vunpack.c.l.b16 %v2140
        %v2330 = vunpack.c.h.b16 %v2140
        %v2331 = vunpack.c.l.b16 %v2141
        %v2332 = vunpack.c.h.b16 %v2141
        %v2333 = vunpack.c.l.b16 %v2142
        %v2334 = vunpack.c.h.b16 %v2142
        %v2335 = vunpack.c.l.b16 %v2143
        %v2336 = vunpack.c.h.b16 %v2143
        %v2337 = vunpack.c.l.b16 %v2144
        %v2338 = vunpack.c.h.b16 %v2144
        %v2339 = vunpack.c.l.b16 %v2145
        %v2340 = vunpack.c.h.b16 %v2145
        %v2341 = vunpack.c.l.b16 %v2146
        %v2342 = vunpack.c.h.b16 %v2146
        %v2343 = vunpack.c.l.b16 %v2147
        %v2344 = vunpack.c.h.b16 %v2147
        %v2345 = vunpack.c.l.b16 %v2148
        %v2346 = vunpack.c.h.b16 %v2148
        %v2347 = vunpack.c.l.b16 %v2149
        %v2348 = vunpack.c.h.b16 %v2149
        %v2349 = vunpack.c.l.b16 %v2150
        %v2350 = vunpack.c.h.b16 %v2150
        %v2351 = vunpack.c.l.b16 %v2151
        %v2352 = vunpack.c.h.b16 %v2151
        %v2353 = vunpack.c.l.b16 %v2152
        %v2354 = vunpack.c.h.b16 %v2152
        %v2355 = vunpack.c.l.b16 %v2153
        %v2356 = vunpack.c.h.b16 %v2153
        %v2357 = vunpack.c.l.b16 %v2154
        %v2358 = vunpack.c.h.b16 %v2154
        %v2359 = vunpack.c.l.b16 %v2155
        %v2360 = vunpack.c.h.b16 %v2155
        %v2361 = vunpack.c.l.b16 %v2156
        %v2362 = vunpack.c.h.b16 %v2156
        %v2363 = vunpack.c.l.b16 %v2157
        %v2364 = vunpack.c.h.b16 %v2157
        %v2365 = vunpack.c.l.b16 %v2158
        %v2366 = vunpack.c.h.b16 %v2158
        %v2367 = vunpack.c.l.b16 %v2159
        %v2368 = vunpack.c.h.b16 %v2159
        %v2369 = vunpack.c.l.b16 %v2160
        %v2370 = vunpack.c.h.b16 %v2160
        %v2371 = vunpack.c.l.b16 %v2161
        %v2372 = vunpack.c.h.b16 %v2161
        %v2373 = vunpack.c.l.b16 %v2162
        %v2374 = vunpack.c.h.b16 %v2162
        %v2375 = vunpack.c.l.b16 %v2163
        %v2376 = vunpack.c.h.b16 %v2163
        %v2377 = vunpack.c.l.b16 %v2164
        %v2378 = vunpack.c.h.b16 %v2164
        %v2379 = vunpack.c.l.b16 %v2165
        %v2380 = vunpack.c.h.b16 %v2165
        %v2381 = vunpack.c.l.b16 %v2166
        %v2382 = vunpack.c.h.b16 %v2166
        %v2383 = vunpack.c.l.b16 %v2167
        %v2384 = vunpack.c.h.b16 %v2167
        %v2385 = vunpack.c.l.b16 %v2168
        %v2386 = vunpack.c.h.b16 %v2168
        %v2387 = vunpack.c.l.b16 %v2169
        %v2388 = vunpack.c.h.b16 %v2169
        %v2389 = vunpack.c.l.b16 %v2170
        %v2390 = vunpack.c.h.b16 %v2170
        %v2391 = vunpack.c.l.b16 %v2171
        %v2392 = vunpack.c.h.b16 %v2171
        %v2393 = vunpack.c.l.b16 %v2172
        %v2394 = vunpack.c.h.b16 %v2172
        %v2395 = vunpack.c.l.b16 %v2173
        %v2396 = vunpack.c.h.b16 %v2173
        %v2397 = vunpack.c.l.b16 %v2174
        %v2398 = vunpack.c.h.b16 %v2174
        %v2399 = vunpack.c.l.b16 %v2175
        %v2400 = vunpack.c.h.b16 %v2175
        %v2401 = vunpack.c.l.b16 %v2176
        %v2402 = vunpack.c.h.b16 %v2176
        %v2403 = vunpack.c.l.b16 %v2177
        %v2404 = vunpack.c.h.b16 %v2177
        %v2405 = vunpack.c.l.b16 %v2178
        %v2406 = vunpack.c.h.b16 %v2178
        %v2407 = vunpack.c.l.b16 %v2179
        %v2408 = vunpack.c.h.b16 %v2179
        %v2409 = vunpack.c.l.b16 %v2180
        %v2410 = vunpack.c.h.b16 %v2180
        %v2411 = vunpack.c.l.b16 %v2181
        %v2412 = vunpack.c.h.b16 %v2181
        %v2413 = vunpack.c.l.b16 %v2182
        %v2414 = vunpack.c.h.b16 %v2182
        %v2415 = vunpack.c.l.b16 %v2183
        %v2416 = vunpack.c.h.b16 %v2183
        %v2417 = vunpack.c.l.b16 %v2184
        %v2418 = vunpack.c.h.b16 %v2184
        %v2419 = vunpack.c.l.b16 %v2185
        %v2420 = vunpack.c.h.b16 %v2185
        %v2421 = vunpack.c.l.b16 %v2186
        %v2422 = vunpack.c.h.b16 %v2186
        %v2423 = vunpack.c.l.b16 %v2187
        %v2424 = vunpack.c.h.b16 %v2187
        %v2425 = vunpack.c.l.b16 %v2188
        %v2426 = vunpack.c.h.b16 %v2188
        %v2427 = vunpack.c.l.b16 %v2189
        %v2428 = vunpack.c.h.b16 %v2189
        %v2429 = vunpack.c.l.b16 %v2190
        %v2430 = vunpack.c.h.b16 %v2190
        %v2431 = vunpack.c.l.b16 %v2191
        %v2432 = vunpack.c.h.b16 %v2191
        %v2433 = vunpack.c.l.b16 %v2192
        %v2434 = vunpack.c.h.b16 %v2192
        %v2435 = vunpack.c.l.b16 %v2193
        %v2436 = vunpack.c.h.b16 %v2193
        %v2437 = vunpack.c.l.b16 %v2194
        %v2438 = vunpack.c.h.b16 %v2194
        %v2439 = vunpack.c.l.b16 %v2195
        %v2440 = vunpack.c.h.b16 %v2195
        %v2441 = vunpack.c.l.b16 %v2196
        %v2442 = vunpack.c.h.b16 %v2196
        %v2443 = vpack.c.b16 %v2285, %v2283
        %v2444 = vpack.c.b16 %v2286, %v2284
        %v2445 = vpack.c.b16 %v2289, %v2287
        %v2446 = vpack.c.b16 %v2290, %v2288
        %v2447 = vpack.c.b16 %v2293, %v2291
        %v2448 = vpack.c.b16 %v2294, %v2292
        %v2449 = vpack.c.b16 %v2297, %v2295
        %v2450 = vpack.c.b16 %v2298, %v2296
        %v2451 = vpack.c.b16 %v2301, %v2299
        %v2452 = vpack.c.b16 %v2302, %v2300
        %v2453 = vpack.c.b16 %v2305, %v2303
        %v2454 = vpack.c.b16 %v2306, %v2304
        %v2455 = vpack.c.b16 %v2309, %v2307
        %v2456 = vpack.c.b16 %v2310, %v2308
        %v2457 = vpack.c.b16 %v2313, %v2311
        %v2458 = vpack.c.b16 %v2314, %v2312
        %v2459 = vpack.c.b16 %v2317, %v2315
        %v2460 = vpack.c.b16 %v2318, %v2316
        %v2461 = vpack.c.b16 %v2321, %v2319
        %v2462 = vpack.c.b16 %v2322, %v2320
        %v2463 = vpack.c.b16 %v2325, %v2323
        %v2464 = vpack.c.b16 %v2326, %v2324
        %v2465 = vpack.c.b16 %v2329, %v2327
        %v2466 = vpack.c.b16 %v2330, %v2328
        %v2467 = vpack.c.b16 %v2333, %v2331
        %v2468 = vpack.c.b16 %v2334, %v2332
        %v2469 = vpack.c.b16 %v2337, %v2335
        %v2470 = vpack.c.b16 %v2338, %v2336
        %v2471 = vpack.c.b16 %v2341, %v2339
        %v2472 = vpack.c.b16 %v2342, %v2340
        %v2473 = vpack.c.b16 %v2345, %v2343
        %v2474 = vpack.c.b16 %v2346, %v2344
        %v2475 = vpack.c.b16 %v2349, %v2347
        %v2476 = vpack.c.b16 %v2350, %v2348
        %v2477 = vpack.c.b16 %v2353, %v2351
        %v2478 = vpack.c.b16 %v2354, %v2352
        %v2479 = vpack.c.b16 %v2357, %v2355
        %v2480 = vpack.c.b16 %v2358, %v2356
        %v2481 = vpack.c.b16 %v2361, %v2359
        %v2482 = vpack.c.b16 %v2362, %v2360
        %v2483 = vpack.c.b16 %v2365, %v2363
        %v2484 = vpack.c.b16 %v2366, %v2364
        %v2485 = vpack.c.b16 %v2369, %v2367
        %v2486 = vpack.c.b16 %v2370, %v2368
        %v2487 = vpack.c.b16 %v2373, %v2371
        %v2488 = vpack.c.b16 %v2374, %v2372
        %v2489 = vpack.c.b16 %v2377, %v2375
        %v2490 = vpack.c.b16 %v2378, %v2376
        %v2491 = vpack.c.b16 %v2381, %v2379
        %v2492 = vpack.c.b16 %v2382, %v2380
        %v2493 = vpack.c.b16 %v2385, %v2383
        %v2494 = vpack.c.b16 %v2386, %v2384
        %v2495 = vpack.c.b16 %v2389, %v2387
        %v2496 = vpack.c.b16 %v2390, %v2388
        %v2497 = vpack.c.b16 %v2393, %v2391
        %v2498 = vpack.c.b16 %v2394, %v2392
        %v2499 = vpack.c.b16 %v2397, %v2395
        %v2500 = vpack.c.b16 %v2398, %v2396
        %v2501 = vpack.c.b16 %v2401, %v2399
        %v2502 = vpack.c.b16 %v2402, %v2400
        %v2503 = vpack.c.b16 %v2405, %v2403
        %v2504 = vpack.c.b16 %v2406, %v2404
        %v2505 = vpack.c.b16 %v2409, %v2407
        %v2506 = vpack.c.b16 %v2410, %v2408
        %v2507 = vpack.c.b16 %v2413, %v2411
        %v2508 = vpack.c.b16 %v2414, %v2412
        %v2509 = vpack.c.b16 %v2417, %v2415
        %v2510 = vpack.c.b16 %v2418, %v2416
        %v2511 = vpack.c.b16 %v2421, %v2419
        %v2512 = vpack.c.b16 %v2422, %v2420
        %v2513 = vpack.c.b16 %v2425, %v2423
        %v2514 = vpack.c.b16 %v2426, %v2424
        %v2515 = vpack.c.b16 %v2429, %v2427
        %v2516 = vpack.c.b16 %v2430, %v2428
        %v2517 = vpack.c.b16 %v2433, %v2431
        %v2518 = vpack.c.b16 %v2434, %v2432
        %v2519 = vpack.c.b16 %v2437, %v2435
        %v2520 = vpack.c.b16 %v2438, %v2436
        %v2521 = vpack.c.b16 %v2441, %v2439
        %v2522 = vpack.c.b16 %v2442, %v2440
        %2603 = vmatpush.bf16.msra.mxu0 %v2457
        %2604 = vmatpush.bf16.msra.mxu0 %v2455
        %2605 = vmatpush.bf16.msra.mxu0 %v2453
        %2606 = vmatpush.bf16.msra.mxu0 %v2451
        %2607 = vmatpush.bf16.msra.mxu0 %v2449
        %2608 = vmatpush.bf16.msra.mxu0 %v2447
        %2609 = vmatpush.bf16.msra.mxu0 %v2445
        %2610 = vmatpush.bf16.msra.mxu0 %v2443
        %2611 = vmatmul.bf16.gmra.mxu0 %v2112
        %v2612 = vpop.f32.mrf.mxu0
        %v2613 = vadd.f32 %v2199, %v2612
        %v2614 = vpop.f32.mrf.mxu0
        %v2615 = vadd.f32 %v2199, %v2614
        %2616 = vdwg.mxu0
        %2617 = vmatpush.bf16.msra.mxu0 %v2473
        %2618 = vmatpush.bf16.msra.mxu0 %v2471
        %2619 = vmatpush.bf16.msra.mxu0 %v2469
        %2620 = vmatpush.bf16.msra.mxu0 %v2467
        %2621 = vmatpush.bf16.msra.mxu0 %v2465
        %2622 = vmatpush.bf16.msra.mxu0 %v2463
        %2623 = vmatpush.bf16.msra.mxu0 %v2461
        %2624 = vmatpush.bf16.msra.mxu0 %v2459
        %2625 = vmatmul.bf16.gmra.mxu0 %v2113
        %v2626 = vpop.f32.mrf.mxu0
        %v2627 = vadd.f32 %v2613, %v2626
        %v2628 = vpop.f32.mrf.mxu0
        %v2629 = vadd.f32 %v2615, %v2628
        %2630 = vdwg.mxu0
        %2631 = vmatpush.bf16.msra.mxu0 %v2489
        %2632 = vmatpush.bf16.msra.mxu0 %v2487
        %2633 = vmatpush.bf16.msra.mxu0 %v2485
        %2634 = vmatpush.bf16.msra.mxu0 %v2483
        %2635 = vmatpush.bf16.msra.mxu0 %v2481
        %2636 = vmatpush.bf16.msra.mxu0 %v2479
        %2637 = vmatpush.bf16.msra.mxu0 %v2477
        %2638 = vmatpush.bf16.msra.mxu0 %v2475
        %2639 = vmatmul.bf16.gmra.mxu0 %v2114
        %v2640 = vpop.f32.mrf.mxu0
        %v2641 = vadd.f32 %v2627, %v2640
        %v2642 = vpop.f32.mrf.mxu0
        %v2643 = vadd.f32 %v2629, %v2642
        %2644 = vdwg.mxu0
        %2645 = vmatpush.bf16.msra.mxu0 %v2505
        %2646 = vmatpush.bf16.msra.mxu0 %v2503
        %2647 = vmatpush.bf16.msra.mxu0 %v2501
        %2648 = vmatpush.bf16.msra.mxu0 %v2499
        %2649 = vmatpush.bf16.msra.mxu0 %v2497
        %2650 = vmatpush.bf16.msra.mxu0 %v2495
        %2651 = vmatpush.bf16.msra.mxu0 %v2493
        %2652 = vmatpush.bf16.msra.mxu0 %v2491
        %2653 = vmatmul.bf16.gmra.mxu0 %v2115
        %v2654 = vpop.f32.mrf.mxu0
        %v2655 = vadd.f32 %v2641, %v2654
        %v2656 = vpop.f32.mrf.mxu0
        %v2657 = vadd.f32 %v2643, %v2656
        %2658 = vdwg.mxu0
        %2659 = vmatpush.bf16.msra.mxu0 %v2521
        %2660 = vmatpush.bf16.msra.mxu0 %v2519
        %2661 = vmatpush.bf16.msra.mxu0 %v2517
        %2662 = vmatpush.bf16.msra.mxu0 %v2515
        %2663 = vmatpush.bf16.msra.mxu0 %v2513
        %2664 = vmatpush.bf16.msra.mxu0 %v2511
        %2665 = vmatpush.bf16.msra.mxu0 %v2509
        %2666 = vmatpush.bf16.msra.mxu0 %v2507
        %2667 = vmatmul.bf16.gmra.mxu0 %v2116
        %v2668 = vpop.f32.mrf.mxu0
        %v2669 = vadd.f32 %v2655, %v2668
        %v2670 = vpop.f32.mrf.mxu0
        %v2671 = vadd.f32 %v2657, %v2670
        %2672 = vdwg.mxu0
        %2673 = vmatpush.bf16.msra.mxu0 %v2458
        %2674 = vmatpush.bf16.msra.mxu0 %v2456
        %2675 = vmatpush.bf16.msra.mxu0 %v2454
        %2676 = vmatpush.bf16.msra.mxu0 %v2452
        %2677 = vmatpush.bf16.msra.mxu0 %v2450
        %2678 = vmatpush.bf16.msra.mxu0 %v2448
        %2679 = vmatpush.bf16.msra.mxu0 %v2446
        %2680 = vmatpush.bf16.msra.mxu0 %v2444
        %2681 = vmatmul.bf16.gmra.mxu0 %v2112
        %v2682 = vpop.f32.mrf.mxu0
        %v2683 = vadd.f32 %v2200, %v2682
        %v2684 = vpop.f32.mrf.mxu0
        %v2685 = vadd.f32 %v2200, %v2684
        %2686 = vdwg.mxu0
        %2687 = vmatpush.bf16.msra.mxu0 %v2474
        %2688 = vmatpush.bf16.msra.mxu0 %v2472
        %2689 = vmatpush.bf16.msra.mxu0 %v2470
        %2690 = vmatpush.bf16.msra.mxu0 %v2468
        %2691 = vmatpush.bf16.msra.mxu0 %v2466
        %2692 = vmatpush.bf16.msra.mxu0 %v2464
        %2693 = vmatpush.bf16.msra.mxu0 %v2462
        %2694 = vmatpush.bf16.msra.mxu0 %v2460
        %2695 = vmatmul.bf16.gmra.mxu0 %v2113
        %v2696 = vpop.f32.mrf.mxu0
        %v2697 = vadd.f32 %v2683, %v2696
        %v2698 = vpop.f32.mrf.mxu0
        %v2699 = vadd.f32 %v2685, %v2698
        %2700 = vdwg.mxu0
        %2701 = vmatpush.bf16.msra.mxu0 %v2490
        %2702 = vmatpush.bf16.msra.mxu0 %v2488
        %2703 = vmatpush.bf16.msra.mxu0 %v2486
        %2704 = vmatpush.bf16.msra.mxu0 %v2484
        %2705 = vmatpush.bf16.msra.mxu0 %v2482
        %2706 = vmatpush.bf16.msra.mxu0 %v2480
        %2707 = vmatpush.bf16.msra.mxu0 %v2478
        %2708 = vmatpush.bf16.msra.mxu0 %v2476
        %2709 = vmatmul.bf16.gmra.mxu0 %v2114
        %v2710 = vpop.f32.mrf.mxu0
        %v2711 = vadd.f32 %v2697, %v2710
        %v2712 = vpop.f32.mrf.mxu0
        %v2713 = vadd.f32 %v2699, %v2712
        %2714 = vdwg.mxu0
        %2715 = vmatpush.bf16.msra.mxu0 %v2506
        %2716 = vmatpush.bf16.msra.mxu0 %v2504
        %2717 = vmatpush.bf16.msra.mxu0 %v2502
        %2718 = vmatpush.bf16.msra.mxu0 %v2500
        %2719 = vmatpush.bf16.msra.mxu0 %v2498
        %2720 = vmatpush.bf16.msra.mxu0 %v2496
        %2721 = vmatpush.bf16.msra.mxu0 %v2494
        %2722 = vmatpush.bf16.msra.mxu0 %v2492
        %2723 = vmatmul.bf16.gmra.mxu0 %v2115
        %v2724 = vpop.f32.mrf.mxu0
        %v2725 = vadd.f32 %v2711, %v2724
        %v2726 = vpop.f32.mrf.mxu0
        %v2727 = vadd.f32 %v2713, %v2726
        %2728 = vdwg.mxu0
        %2729 = vmatpush.bf16.msra.mxu0 %v2522
        %2730 = vmatpush.bf16.msra.mxu0 %v2520
        %2731 = vmatpush.bf16.msra.mxu0 %v2518
        %2732 = vmatpush.bf16.msra.mxu0 %v2516
        %2733 = vmatpush.bf16.msra.mxu0 %v2514
        %2734 = vmatpush.bf16.msra.mxu0 %v2512
        %2735 = vmatpush.bf16.msra.mxu0 %v2510
        %2736 = vmatpush.bf16.msra.mxu0 %v2508
        %2737 = vmatmul.bf16.gmra.mxu0 %v2116
        %v2738 = vpop.f32.mrf.mxu0
        %v2739 = vadd.f32 %v2725, %v2738
        %v2740 = vpop.f32.mrf.mxu0
        %v2741 = vadd.f32 %v2727, %v2740
        %2742 = vdwg.mxu0
        %v2743 = vadd.f32 %v1621, %v2669
        %v2744 = vadd.f32 %v1622, %v2739
        %v2745 = vadd.f32 %v1623, %v2671
        %v2746 = vadd.f32 %v1624, %v2741
        %s2747 = scalar_lea.vmem %s8, 2
        %v2748 = vld [vmem:[%s2747] sm:$0x3]
        %s2749 = scalar_lea.vmem %s9, 2
        %v2750 = vld [vmem:[%s2749] sm:$0x3]
        %v2751 = vsel %vm536, %v2744, 0.0
        %v2752 = vadd.f32 %v2743, %v2751
        %2753 = vadd.xlane.f32.xlu0 %v2752
        %v2754 = vpop.xlane.xlu0 %2753
        %v2755 = vsel %vm536, %v2746, 0.0
        %v2756 = vadd.f32 %v2745, %v2755
        %2757 = vadd.xlane.f32.xlu0 %v2756
        %v2758 = vpop.xlane.xlu0 %2757
        %v2759 = vmul.f32 %v2754, %v551
        %v2760 = vmul.f32 %v2758, %v551
        %v2761 = vsub.f32 %v2743, %v2759
        %v2762 = vsub.f32 %v2744, %v2759
        %v2763 = vsub.f32 %v2745, %v2760
        %v2764 = vsub.f32 %v2746, %v2760
        %v2765 = vmul.f32 %v2761, %v2761
        %v2766 = vmul.f32 %v2762, %v2762
        %v2767 = vmul.f32 %v2763, %v2763
        %v2768 = vmul.f32 %v2764, %v2764
        %v2769 = vsel %vm536, %v2766, 0.0
        %v2770 = vadd.f32 %v2765, %v2769
        %2771 = vadd.xlane.f32.xlu0 %v2770
        %v2772 = vpop.xlane.xlu0 %2771
        %v2773 = vsel %vm536, %v2768, 0.0
        %v2774 = vadd.f32 %v2767, %v2773
        %2775 = vadd.xlane.f32.xlu0 %v2774
        %v2776 = vpop.xlane.xlu0 %2775
        %v2777 = vmul.f32 %v2772, %v551
        %v2778 = vmul.f32 %v2776, %v551
        %v2779 = vadd.f32 %v2777, 1e-05
        %v2780 = vadd.f32 %v2778, 1e-05
        %v2781 = vrsqrt.pop %v2779
        %v2782 = vmul.f32 %v2781, %v2779
        %v2783 = vmul.f32 %v2782, %v2781
        %v2784 = vmul.f32 0.5, %v2783
        %v2785 = vsub.f32 1.5, %v2784
        %v2786 = vmul.f32 %v2781, %v2785
        %vm2787 = vweird.f32 %v2779
        %vm2788 = vweird.f32 %v2781
        %vm2789 = vmor %vm2787, %vm2788
        %v2790 = vsel %vm2789, %v2781, %v2786
        %v2791 = vrsqrt.pop %v2780
        %v2792 = vmul.f32 %v2791, %v2780
        %v2793 = vmul.f32 %v2792, %v2791
        %v2794 = vmul.f32 0.5, %v2793
        %v2795 = vsub.f32 1.5, %v2794
        %v2796 = vmul.f32 %v2791, %v2795
        %vm2797 = vweird.f32 %v2780
        %vm2798 = vweird.f32 %v2791
        %vm2799 = vmor %vm2797, %vm2798
        %v2800 = vsel %vm2799, %v2791, %v2796
        %v2801 = vmul.f32 %v2761, %v2790
        %v2802 = vmul.f32 %v2762, %v2790
        %v2803 = vmul.f32 %v2763, %v2800
        %v2804 = vmul.f32 %v2764, %v2800
        %v2806 = vperm.slane %v2748, 0
        %v2807 = vperm.slane %v2748, 1
        %v2810 = vmul.f32 %v2801, %v2806
        %v2811 = vmul.f32 %v2802, %v2807
        %v2812 = vmul.f32 %v2803, %v2806
        %v2813 = vmul.f32 %v2804, %v2807
        %v2815 = vperm.slane %v2750, 0
        %v2816 = vperm.slane %v2750, 1
        %v2819 = vadd.f32 %v2810, %v2815
        %v2820 = vadd.f32 %v2811, %v2816
        %v2821 = vadd.f32 %v2812, %v2815
        %v2822 = vadd.f32 %v2813, %v2816
        %v2823 = vpack.c.bf16 %v2821, %v2819
        %v2824 = vpack.c.bf16 %v2822, %v2820
        %s2825 = scalar_lea.vmem %s1, 320
        %v2826 = vld [vmem:[%s2825] sm:$0xff]
        %v2827 = vld [vmem:[%s2825 + $0x8] sm:$0xff]
        %v2828 = vld [vmem:[%s2825 + $0x10] sm:$0xff]
        %v2829 = vld [vmem:[%s2825 + $0x18] sm:$0xff]
        %v2830 = vld [vmem:[%s2825 + $0x20] sm:$0xff]
        %v2831 = vld [vmem:[%s2825 + $0x28] sm:$0xff]
        %v2832 = vld [vmem:[%s2825 + $0x30] sm:$0xff]
        %v2833 = vld [vmem:[%s2825 + $0x38] sm:$0xff]
        %v2834 = vld [vmem:[%s2825 + $0x40] sm:$0xff]
        %v2835 = vld [vmem:[%s2825 + $0x48] sm:$0xff]
        %v2836 = vld [vmem:[%s2825 + $0x50] sm:$0xff]
        %v2837 = vld [vmem:[%s2825 + $0x58] sm:$0xff]
        %v2838 = vld [vmem:[%s2825 + $0x60] sm:$0xff]
        %v2839 = vld [vmem:[%s2825 + $0x68] sm:$0xff]
        %v2840 = vld [vmem:[%s2825 + $0x70] sm:$0xff]
        %v2841 = vld [vmem:[%s2825 + $0x78] sm:$0xff]
        %v2842 = vld [vmem:[%s2825 + $0x80] sm:$0xff]
        %v2843 = vld [vmem:[%s2825 + $0x88] sm:$0xff]
        %v2844 = vld [vmem:[%s2825 + $0x90] sm:$0xff]
        %v2845 = vld [vmem:[%s2825 + $0x98] sm:$0xff]
        %v2846 = vld [vmem:[%s2825 + $0xa0] sm:$0xff]
        %v2847 = vld [vmem:[%s2825 + $0xa8] sm:$0xff]
        %v2848 = vld [vmem:[%s2825 + $0xb0] sm:$0xff]
        %v2849 = vld [vmem:[%s2825 + $0xb8] sm:$0xff]
        %v2850 = vld [vmem:[%s2825 + $0xc0] sm:$0xff]
        %v2851 = vld [vmem:[%s2825 + $0xc8] sm:$0xff]
        %v2852 = vld [vmem:[%s2825 + $0xd0] sm:$0xff]
        %v2853 = vld [vmem:[%s2825 + $0xd8] sm:$0xff]
        %v2854 = vld [vmem:[%s2825 + $0xe0] sm:$0xff]
        %v2855 = vld [vmem:[%s2825 + $0xe8] sm:$0xff]
        %v2856 = vld [vmem:[%s2825 + $0xf0] sm:$0xff]
        %v2857 = vld [vmem:[%s2825 + $0xf8] sm:$0xff]
        %v2858 = vld [vmem:[%s2825 + $0x100] sm:$0xff]
        %v2859 = vld [vmem:[%s2825 + $0x108] sm:$0xff]
        %v2860 = vld [vmem:[%s2825 + $0x110] sm:$0xff]
        %v2861 = vld [vmem:[%s2825 + $0x118] sm:$0xff]
        %v2862 = vld [vmem:[%s2825 + $0x120] sm:$0xff]
        %v2863 = vld [vmem:[%s2825 + $0x128] sm:$0xff]
        %v2864 = vld [vmem:[%s2825 + $0x130] sm:$0xff]
        %v2865 = vld [vmem:[%s2825 + $0x138] sm:$0xff]
        %v2906 = vunpack.c.l.b16 %v2826
        %v2907 = vunpack.c.h.b16 %v2826
        %v2908 = vunpack.c.l.b16 %v2827
        %v2909 = vunpack.c.h.b16 %v2827
        %v2910 = vunpack.c.l.b16 %v2828
        %v2911 = vunpack.c.h.b16 %v2828
        %v2912 = vunpack.c.l.b16 %v2829
        %v2913 = vunpack.c.h.b16 %v2829
        %v2914 = vunpack.c.l.b16 %v2830
        %v2915 = vunpack.c.h.b16 %v2830
        %v2916 = vunpack.c.l.b16 %v2831
        %v2917 = vunpack.c.h.b16 %v2831
        %v2918 = vunpack.c.l.b16 %v2832
        %v2919 = vunpack.c.h.b16 %v2832
        %v2920 = vunpack.c.l.b16 %v2833
        %v2921 = vunpack.c.h.b16 %v2833
        %v2922 = vunpack.c.l.b16 %v2834
        %v2923 = vunpack.c.h.b16 %v2834
        %v2924 = vunpack.c.l.b16 %v2835
        %v2925 = vunpack.c.h.b16 %v2835
        %v2926 = vunpack.c.l.b16 %v2836
        %v2927 = vunpack.c.h.b16 %v2836
        %v2928 = vunpack.c.l.b16 %v2837
        %v2929 = vunpack.c.h.b16 %v2837
        %v2930 = vunpack.c.l.b16 %v2838
        %v2931 = vunpack.c.h.b16 %v2838
        %v2932 = vunpack.c.l.b16 %v2839
        %v2933 = vunpack.c.h.b16 %v2839
        %v2934 = vunpack.c.l.b16 %v2840
        %v2935 = vunpack.c.h.b16 %v2840
        %v2936 = vunpack.c.l.b16 %v2841
        %v2937 = vunpack.c.h.b16 %v2841
        %v2938 = vunpack.c.l.b16 %v2842
        %v2939 = vunpack.c.h.b16 %v2842
        %v2940 = vunpack.c.l.b16 %v2843
        %v2941 = vunpack.c.h.b16 %v2843
        %v2942 = vunpack.c.l.b16 %v2844
        %v2943 = vunpack.c.h.b16 %v2844
        %v2944 = vunpack.c.l.b16 %v2845
        %v2945 = vunpack.c.h.b16 %v2845
        %v2946 = vunpack.c.l.b16 %v2846
        %v2947 = vunpack.c.h.b16 %v2846
        %v2948 = vunpack.c.l.b16 %v2847
        %v2949 = vunpack.c.h.b16 %v2847
        %v2950 = vunpack.c.l.b16 %v2848
        %v2951 = vunpack.c.h.b16 %v2848
        %v2952 = vunpack.c.l.b16 %v2849
        %v2953 = vunpack.c.h.b16 %v2849
        %v2954 = vunpack.c.l.b16 %v2850
        %v2955 = vunpack.c.h.b16 %v2850
        %v2956 = vunpack.c.l.b16 %v2851
        %v2957 = vunpack.c.h.b16 %v2851
        %v2958 = vunpack.c.l.b16 %v2852
        %v2959 = vunpack.c.h.b16 %v2852
        %v2960 = vunpack.c.l.b16 %v2853
        %v2961 = vunpack.c.h.b16 %v2853
        %v2962 = vunpack.c.l.b16 %v2854
        %v2963 = vunpack.c.h.b16 %v2854
        %v2964 = vunpack.c.l.b16 %v2855
        %v2965 = vunpack.c.h.b16 %v2855
        %v2966 = vunpack.c.l.b16 %v2856
        %v2967 = vunpack.c.h.b16 %v2856
        %v2968 = vunpack.c.l.b16 %v2857
        %v2969 = vunpack.c.h.b16 %v2857
        %v2970 = vunpack.c.l.b16 %v2858
        %v2971 = vunpack.c.h.b16 %v2858
        %v2972 = vunpack.c.l.b16 %v2859
        %v2973 = vunpack.c.h.b16 %v2859
        %v2974 = vunpack.c.l.b16 %v2860
        %v2975 = vunpack.c.h.b16 %v2860
        %v2976 = vunpack.c.l.b16 %v2861
        %v2977 = vunpack.c.h.b16 %v2861
        %v2978 = vunpack.c.l.b16 %v2862
        %v2979 = vunpack.c.h.b16 %v2862
        %v2980 = vunpack.c.l.b16 %v2863
        %v2981 = vunpack.c.h.b16 %v2863
        %v2982 = vunpack.c.l.b16 %v2864
        %v2983 = vunpack.c.h.b16 %v2864
        %v2984 = vunpack.c.l.b16 %v2865
        %v2985 = vunpack.c.h.b16 %v2865
        %v2986 = vpack.c.b16 %v2910, %v2906
        %v2987 = vpack.c.b16 %v2911, %v2907
        %v2988 = vpack.c.b16 %v2912, %v2908
        %v2989 = vpack.c.b16 %v2913, %v2909
        %v2990 = vpack.c.b16 %v2918, %v2914
        %v2991 = vpack.c.b16 %v2919, %v2915
        %v2992 = vpack.c.b16 %v2920, %v2916
        %v2993 = vpack.c.b16 %v2921, %v2917
        %v2994 = vpack.c.b16 %v2926, %v2922
        %v2995 = vpack.c.b16 %v2927, %v2923
        %v2996 = vpack.c.b16 %v2928, %v2924
        %v2997 = vpack.c.b16 %v2929, %v2925
        %v2998 = vpack.c.b16 %v2934, %v2930
        %v2999 = vpack.c.b16 %v2935, %v2931
        %v3000 = vpack.c.b16 %v2936, %v2932
        %v3001 = vpack.c.b16 %v2937, %v2933
        %v3002 = vpack.c.b16 %v2942, %v2938
        %v3003 = vpack.c.b16 %v2943, %v2939
        %v3004 = vpack.c.b16 %v2944, %v2940
        %v3005 = vpack.c.b16 %v2945, %v2941
        %v3006 = vpack.c.b16 %v2950, %v2946
        %v3007 = vpack.c.b16 %v2951, %v2947
        %v3008 = vpack.c.b16 %v2952, %v2948
        %v3009 = vpack.c.b16 %v2953, %v2949
        %v3010 = vpack.c.b16 %v2958, %v2954
        %v3011 = vpack.c.b16 %v2959, %v2955
        %v3012 = vpack.c.b16 %v2960, %v2956
        %v3013 = vpack.c.b16 %v2961, %v2957
        %v3014 = vpack.c.b16 %v2966, %v2962
        %v3015 = vpack.c.b16 %v2967, %v2963
        %v3016 = vpack.c.b16 %v2968, %v2964
        %v3017 = vpack.c.b16 %v2969, %v2965
        %v3018 = vpack.c.b16 %v2974, %v2970
        %v3019 = vpack.c.b16 %v2975, %v2971
        %v3020 = vpack.c.b16 %v2976, %v2972
        %v3021 = vpack.c.b16 %v2977, %v2973
        %v3022 = vpack.c.b16 %v2982, %v2978
        %v3023 = vpack.c.b16 %v2983, %v2979
        %v3024 = vpack.c.b16 %v2984, %v2980
        %v3025 = vpack.c.b16 %v2985, %v2981
        %v3067 = vsel %vm536, %v2824, 0
        %3069 = vmatpush.bf16.msra.mxu0 %v3014
        %3070 = vmatpush.bf16.msra.mxu0 %v3010
        %3071 = vmatpush.bf16.msra.mxu0 %v3006
        %3072 = vmatpush.bf16.msra.mxu0 %v3002
        %3073 = vmatpush.bf16.msra.mxu0 %v2998
        %3074 = vmatpush.bf16.msra.mxu0 %v2994
        %3075 = vmatpush.bf16.msra.mxu0 %v2990
        %3076 = vmatpush.bf16.msra.mxu0 %v2986
        %3077 = vmatmul.bf16.gmra.mxu0 %v2823
        %v3078 = vpop.f32.mrf.mxu0
        %v3079 = vadd.f32 0.0, %v3078
        %v3080 = vpop.f32.mrf.mxu0
        %v3081 = vadd.f32 0.0, %v3080
        %3082 = vdwg.mxu0
        %3083 = vmatpush.bf16.msra.mxu0 0
        %3084 = vmatpush.bf16.msra.mxu0 0
        %3085 = vmatpush.bf16.msra.mxu0 0
        %3086 = vmatpush.bf16.msra.mxu0 0
        %3087 = vmatpush.bf16.msra.mxu0 0
        %3088 = vmatpush.bf16.msra.mxu0 0
        %3089 = vmatpush.bf16.msra.mxu0 %v3022
        %3090 = vmatpush.bf16.msra.mxu0 %v3018
        %3091 = vmatmul.bf16.gmra.mxu0 %v3067
        %v3092 = vpop.f32.mrf.mxu0
        %v3093 = vadd.f32 %v3079, %v3092
        %v3094 = vpop.f32.mrf.mxu0
        %v3095 = vadd.f32 %v3081, %v3094
        %3096 = vdwg.mxu0
        %3097 = vmatpush.bf16.msra.mxu0 %v3015
        %3098 = vmatpush.bf16.msra.mxu0 %v3011
        %3099 = vmatpush.bf16.msra.mxu0 %v3007
        %3100 = vmatpush.bf16.msra.mxu0 %v3003
        %3101 = vmatpush.bf16.msra.mxu0 %v2999
        %3102 = vmatpush.bf16.msra.mxu0 %v2995
        %3103 = vmatpush.bf16.msra.mxu0 %v2991
        %3104 = vmatpush.bf16.msra.mxu0 %v2987
        %3105 = vmatmul.bf16.gmra.mxu0 %v2823
        %v3106 = vpop.f32.mrf.mxu0
        %v3107 = vadd.f32 0.0, %v3106
        %v3108 = vpop.f32.mrf.mxu0
        %v3109 = vadd.f32 0.0, %v3108
        %3110 = vdwg.mxu0
        %3111 = vmatpush.bf16.msra.mxu0 0
        %3112 = vmatpush.bf16.msra.mxu0 0
        %3113 = vmatpush.bf16.msra.mxu0 0
        %3114 = vmatpush.bf16.msra.mxu0 0
        %3115 = vmatpush.bf16.msra.mxu0 0
        %3116 = vmatpush.bf16.msra.mxu0 0
        %3117 = vmatpush.bf16.msra.mxu0 %v3023
        %3118 = vmatpush.bf16.msra.mxu0 %v3019
        %3119 = vmatmul.bf16.gmra.mxu0 %v3067
        %v3120 = vpop.f32.mrf.mxu0
        %v3121 = vadd.f32 %v3107, %v3120
        %v3122 = vpop.f32.mrf.mxu0
        %v3123 = vadd.f32 %v3109, %v3122
        %3124 = vdwg.mxu0
        %3125 = vmatpush.bf16.msra.mxu0 %v3016
        %3126 = vmatpush.bf16.msra.mxu0 %v3012
        %3127 = vmatpush.bf16.msra.mxu0 %v3008
        %3128 = vmatpush.bf16.msra.mxu0 %v3004
        %3129 = vmatpush.bf16.msra.mxu0 %v3000
        %3130 = vmatpush.bf16.msra.mxu0 %v2996
        %3131 = vmatpush.bf16.msra.mxu0 %v2992
        %3132 = vmatpush.bf16.msra.mxu0 %v2988
        %3133 = vmatmul.bf16.gmra.mxu0 %v2823
        %v3134 = vpop.f32.mrf.mxu0
        %v3135 = vadd.f32 0.0, %v3134
        %v3136 = vpop.f32.mrf.mxu0
        %v3137 = vadd.f32 0.0, %v3136
        %3138 = vdwg.mxu0
        %3139 = vmatpush.bf16.msra.mxu0 0
        %3140 = vmatpush.bf16.msra.mxu0 0
        %3141 = vmatpush.bf16.msra.mxu0 0
        %3142 = vmatpush.bf16.msra.mxu0 0
        %3143 = vmatpush.bf16.msra.mxu0 0
        %3144 = vmatpush.bf16.msra.mxu0 0
        %3145 = vmatpush.bf16.msra.mxu0 %v3024
        %3146 = vmatpush.bf16.msra.mxu0 %v3020
        %3147 = vmatmul.bf16.gmra.mxu0 %v3067
        %v3148 = vpop.f32.mrf.mxu0
        %v3149 = vadd.f32 %v3135, %v3148
        %v3150 = vpop.f32.mrf.mxu0
        %v3151 = vadd.f32 %v3137, %v3150
        %3152 = vdwg.mxu0
        %3153 = vmatpush.bf16.msra.mxu0 %v3017
        %3154 = vmatpush.bf16.msra.mxu0 %v3013
        %3155 = vmatpush.bf16.msra.mxu0 %v3009
        %3156 = vmatpush.bf16.msra.mxu0 %v3005
        %3157 = vmatpush.bf16.msra.mxu0 %v3001
        %3158 = vmatpush.bf16.msra.mxu0 %v2997
        %3159 = vmatpush.bf16.msra.mxu0 %v2993
        %3160 = vmatpush.bf16.msra.mxu0 %v2989
        %3161 = vmatmul.bf16.gmra.mxu0 %v2823
        %v3162 = vpop.f32.mrf.mxu0
        %v3163 = vadd.f32 0.0, %v3162
        %v3164 = vpop.f32.mrf.mxu0
        %v3165 = vadd.f32 0.0, %v3164
        %3166 = vdwg.mxu0
        %3167 = vmatpush.bf16.msra.mxu0 0
        %3168 = vmatpush.bf16.msra.mxu0 0
        %3169 = vmatpush.bf16.msra.mxu0 0
        %3170 = vmatpush.bf16.msra.mxu0 0
        %3171 = vmatpush.bf16.msra.mxu0 0
        %3172 = vmatpush.bf16.msra.mxu0 0
        %3173 = vmatpush.bf16.msra.mxu0 %v3025
        %3174 = vmatpush.bf16.msra.mxu0 %v3021
        %3175 = vmatmul.bf16.gmra.mxu0 %v3067
        %v3176 = vpop.f32.mrf.mxu0
        %v3177 = vadd.f32 %v3163, %v3176
        %v3178 = vpop.f32.mrf.mxu0
        %v3179 = vadd.f32 %v3165, %v3178
        %3180 = vdwg.mxu0
        %v3181 = vpack.c.bf16 %v3095, %v3093
        %v3182 = vpack.c.bf16 %v3123, %v3121
        %v3183 = vpack.c.bf16 %v3151, %v3149
        %3185 = vrot.lane.b32.xlu0 %v3182, 96
        %v3186 = vpop.permute.xlu0 %3185
        %v3188 = vsel %vm536, %v3181, 0
        %v3191 = vsel %vm536, %v3186, 0
        %3193 = vmatpush.bf16.xpose.msra.mxu0 0
        %3194 = vmatpush.bf16.xpose.msra.mxu0 0
        %3195 = vmatpush.bf16.xpose.msra.mxu0 0
        %3196 = vmatpush.bf16.xpose.msra.mxu0 0
        %3197 = vmatpush.bf16.xpose.msra.mxu0 0
        %3198 = vmatpush.bf16.xpose.msra.mxu0 0
        %3199 = vmatpush.bf16.xpose.msra.mxu0 0
        %3200 = vmatpush.bf16.xpose.msra.mxu0 %v3191
        %3201 = vmatmul.bf16.gmra.mxu0 %v3188
        %v3202 = vpop.f32.mrf.mxu0
        %v3203 = vadd.f32 0.0, %v3202
        %v3204 = vpop.f32.mrf.mxu0
        %v3205 = vadd.f32 0.0, %v3204
        %3206 = vdwg.mxu0
        %v3207 = vmul.f32 %v3203, 0.07905694
        %v3208 = vmul.f32 %v3205, 0.07905694
        %v3209 = vadd.f32 %v3207, %v532
        %v3210 = vadd.f32 %v3208, %v533
        %v3211 = vsel %vm1003, %v3209, -inf
        %3212 = vmax.xlane.f32.xlu0 %v3211
        %v3213 = vpop.xlane.xlu0 %3212
        %v3214 = vsel %vm1003, %v3210, -inf
        %3215 = vmax.xlane.f32.xlu0 %v3214
        %v3216 = vpop.xlane.xlu0 %3215
        %v3217 = vsub.f32 %v3209, %v3213
        %v3218 = vsub.f32 %v3210, %v3216
        %v3219 = vmul.f32 %v3217, 1.442695
        %v3220 = vpow.pop %v3219
        %v3221 = vmul.f32 %v3218, 1.442695
        %v3222 = vpow.pop %v3221
        %v3223 = vsel %vm1003, %v3220, 0.0
        %3224 = vadd.xlane.f32.xlu0 %v3223
        %v3225 = vpop.xlane.xlu0 %3224
        %v3226 = vsel %vm1003, %v3222, 0.0
        %3227 = vadd.xlane.f32.xlu0 %v3226
        %v3228 = vpop.xlane.xlu0 %3227
        %v3229 = vrcp.pop %v3225
        %v3230 = vrcp.pop %v3228
        %v3231 = vmul.f32 %v3220, %v3229
        %v3232 = vmul.f32 %v3222, %v3230
        %v3233 = vpack.c.bf16 %v3232, %v3231
        %3235 = vrot.lane.b32.xlu0 %v3183, 64
        %v3236 = vpop.permute.xlu0 %3235
        %v3239 = vsel %vm1003, %v3233, 0
        %3241 = vmatpush.bf16.msra.mxu0 0
        %3242 = vmatpush.bf16.msra.mxu0 0
        %3243 = vmatpush.bf16.msra.mxu0 0
        %3244 = vmatpush.bf16.msra.mxu0 0
        %3245 = vmatpush.bf16.msra.mxu0 0
        %3246 = vmatpush.bf16.msra.mxu0 0
        %3247 = vmatpush.bf16.msra.mxu0 0
        %3248 = vmatpush.bf16.msra.mxu0 %v3236
        %3249 = vmatmul.bf16.gmra.mxu0 %v3239
        %v3250 = vpop.f32.mrf.mxu0
        %v3251 = vadd.f32 0.0, %v3250
        %v3252 = vpop.f32.mrf.mxu0
        %v3253 = vadd.f32 0.0, %v3252
        %3254 = vdwg.mxu0
        %3256 = vrot.lane.b32.xlu0 %v3181, 96
        %v3257 = vpop.permute.xlu0 %3256
        %3258 = vrot.lane.b32.xlu0 %v3182, 64
        %v3259 = vpop.permute.xlu0 %3258
        %v3261 = vsel %vm536, %v3257, 0
        %v3264 = vsel %vm536, %v3259, 0
        %3266 = vmatpush.bf16.xpose.msra.mxu0 0
        %3267 = vmatpush.bf16.xpose.msra.mxu0 0
        %3268 = vmatpush.bf16.xpose.msra.mxu0 0
        %3269 = vmatpush.bf16.xpose.msra.mxu0 0
        %3270 = vmatpush.bf16.xpose.msra.mxu0 0
        %3271 = vmatpush.bf16.xpose.msra.mxu0 0
        %3272 = vmatpush.bf16.xpose.msra.mxu0 0
        %3273 = vmatpush.bf16.xpose.msra.mxu0 %v3264
        %3274 = vmatmul.bf16.gmra.mxu0 %v3261
        %v3275 = vpop.f32.mrf.mxu0
        %v3276 = vadd.f32 0.0, %v3275
        %v3277 = vpop.f32.mrf.mxu0
        %v3278 = vadd.f32 0.0, %v3277
        %3279 = vdwg.mxu0
        %v3280 = vmul.f32 %v3276, 0.07905694
        %v3281 = vmul.f32 %v3278, 0.07905694
        %v3282 = vadd.f32 %v3280, %v532
        %v3283 = vadd.f32 %v3281, %v533
        %v3284 = vsel %vm1003, %v3282, -inf
        %3285 = vmax.xlane.f32.xlu0 %v3284
        %v3286 = vpop.xlane.xlu0 %3285
        %v3287 = vsel %vm1003, %v3283, -inf
        %3288 = vmax.xlane.f32.xlu0 %v3287
        %v3289 = vpop.xlane.xlu0 %3288
        %v3290 = vsub.f32 %v3282, %v3286
        %v3291 = vsub.f32 %v3283, %v3289
        %v3292 = vmul.f32 %v3290, 1.442695
        %v3293 = vpow.pop %v3292
        %v3294 = vmul.f32 %v3291, 1.442695
        %v3295 = vpow.pop %v3294
        %v3296 = vsel %vm1003, %v3293, 0.0
        %3297 = vadd.xlane.f32.xlu0 %v3296
        %v3298 = vpop.xlane.xlu0 %3297
        %v3299 = vsel %vm1003, %v3295, 0.0
        %3300 = vadd.xlane.f32.xlu0 %v3299
        %v3301 = vpop.xlane.xlu0 %3300
        %v3302 = vrcp.pop %v3298
        %v3303 = vrcp.pop %v3301
        %v3304 = vmul.f32 %v3293, %v3302
        %v3305 = vmul.f32 %v3295, %v3303
        %v3306 = vpack.c.bf16 %v3305, %v3304
        %3307 = vrot.lane.b32.xlu0 %v3183, 32
        %v3308 = vpop.permute.xlu0 %3307
        %v3311 = vsel %vm1003, %v3306, 0
        %3313 = vmatpush.bf16.msra.mxu0 0
        %3314 = vmatpush.bf16.msra.mxu0 0
        %3315 = vmatpush.bf16.msra.mxu0 0
        %3316 = vmatpush.bf16.msra.mxu0 0
        %3317 = vmatpush.bf16.msra.mxu0 0
        %3318 = vmatpush.bf16.msra.mxu0 0
        %3319 = vmatpush.bf16.msra.mxu0 0
        %3320 = vmatpush.bf16.msra.mxu0 %v3308
        %3321 = vmatmul.bf16.gmra.mxu0 %v3311
        %v3322 = vpop.f32.mrf.mxu0
        %v3323 = vadd.f32 0.0, %v3322
        %v3324 = vpop.f32.mrf.mxu0
        %v3325 = vadd.f32 0.0, %v3324
        %3326 = vdwg.mxu0
        %v3327 = vpack.c.bf16 %v3179, %v3177
        %3328 = vrot.lane.b32.xlu0 %v3181, 64
        %v3329 = vpop.permute.xlu0 %3328
        %3330 = vrot.lane.b32.xlu0 %v3182, 32
        %v3331 = vpop.permute.xlu0 %3330
        %v3333 = vsel %vm536, %v3329, 0
        %v3336 = vsel %vm536, %v3331, 0
        %3338 = vmatpush.bf16.xpose.msra.mxu0 0
        %3339 = vmatpush.bf16.xpose.msra.mxu0 0
        %3340 = vmatpush.bf16.xpose.msra.mxu0 0
        %3341 = vmatpush.bf16.xpose.msra.mxu0 0
        %3342 = vmatpush.bf16.xpose.msra.mxu0 0
        %3343 = vmatpush.bf16.xpose.msra.mxu0 0
        %3344 = vmatpush.bf16.xpose.msra.mxu0 0
        %3345 = vmatpush.bf16.xpose.msra.mxu0 %v3336
        %3346 = vmatmul.bf16.gmra.mxu0 %v3333
        %v3347 = vpop.f32.mrf.mxu0
        %v3348 = vadd.f32 0.0, %v3347
        %v3349 = vpop.f32.mrf.mxu0
        %v3350 = vadd.f32 0.0, %v3349
        %3351 = vdwg.mxu0
        %v3352 = vmul.f32 %v3348, 0.07905694
        %v3353 = vmul.f32 %v3350, 0.07905694
        %v3354 = vadd.f32 %v3352, %v532
        %v3355 = vadd.f32 %v3353, %v533
        %v3356 = vsel %vm1003, %v3354, -inf
        %3357 = vmax.xlane.f32.xlu0 %v3356
        %v3358 = vpop.xlane.xlu0 %3357
        %v3359 = vsel %vm1003, %v3355, -inf
        %3360 = vmax.xlane.f32.xlu0 %v3359
        %v3361 = vpop.xlane.xlu0 %3360
        %v3362 = vsub.f32 %v3354, %v3358
        %v3363 = vsub.f32 %v3355, %v3361
        %v3364 = vmul.f32 %v3362, 1.442695
        %v3365 = vpow.pop %v3364
        %v3366 = vmul.f32 %v3363, 1.442695
        %v3367 = vpow.pop %v3366
        %v3368 = vsel %vm1003, %v3365, 0.0
        %3369 = vadd.xlane.f32.xlu0 %v3368
        %v3370 = vpop.xlane.xlu0 %3369
        %v3371 = vsel %vm1003, %v3367, 0.0
        %3372 = vadd.xlane.f32.xlu0 %v3371
        %v3373 = vpop.xlane.xlu0 %3372
        %v3374 = vrcp.pop %v3370
        %v3375 = vrcp.pop %v3373
        %v3376 = vmul.f32 %v3365, %v3374
        %v3377 = vmul.f32 %v3367, %v3375
        %v3378 = vpack.c.bf16 %v3377, %v3376
        %v3380 = vsel %vm1003, %v3378, 0
        %3382 = vmatpush.bf16.msra.mxu0 0
        %3383 = vmatpush.bf16.msra.mxu0 0
        %3384 = vmatpush.bf16.msra.mxu0 0
        %3385 = vmatpush.bf16.msra.mxu0 0
        %3386 = vmatpush.bf16.msra.mxu0 0
        %3387 = vmatpush.bf16.msra.mxu0 0
        %3388 = vmatpush.bf16.msra.mxu0 0
        %3389 = vmatpush.bf16.msra.mxu0 %v3327
        %3390 = vmatmul.bf16.gmra.mxu0 %v3380
        %v3391 = vpop.f32.mrf.mxu0
        %v3392 = vadd.f32 0.0, %v3391
        %v3393 = vpop.f32.mrf.mxu0
        %v3394 = vadd.f32 0.0, %v3393
        %3395 = vdwg.mxu0
        %3396 = vrot.lane.b32.xlu0 %v3181, 32
        %v3397 = vpop.permute.xlu0 %3396
        %v3399 = vsel %vm536, %v3397, 0
        %v3402 = vsel %vm536, %v3183, 0
        %3404 = vmatpush.bf16.xpose.msra.mxu0 0
        %3405 = vmatpush.bf16.xpose.msra.mxu0 0
        %3406 = vmatpush.bf16.xpose.msra.mxu0 0
        %3407 = vmatpush.bf16.xpose.msra.mxu0 0
        %3408 = vmatpush.bf16.xpose.msra.mxu0 0
        %3409 = vmatpush.bf16.xpose.msra.mxu0 0
        %3410 = vmatpush.bf16.xpose.msra.mxu0 0
        %3411 = vmatpush.bf16.xpose.msra.mxu0 %v3402
        %3412 = vmatmul.bf16.gmra.mxu0 %v3399
        %v3413 = vpop.f32.mrf.mxu0
        %v3414 = vadd.f32 0.0, %v3413
        %v3415 = vpop.f32.mrf.mxu0
        %v3416 = vadd.f32 0.0, %v3415
        %3417 = vdwg.mxu0
        %v3418 = vmul.f32 %v3414, 0.07905694
        %v3419 = vmul.f32 %v3416, 0.07905694
        %v3420 = vadd.f32 %v3418, %v532
        %v3421 = vadd.f32 %v3419, %v533
        %v3422 = vsel %vm1003, %v3420, -inf
        %3423 = vmax.xlane.f32.xlu0 %v3422
        %v3424 = vpop.xlane.xlu0 %3423
        %v3425 = vsel %vm1003, %v3421, -inf
        %3426 = vmax.xlane.f32.xlu0 %v3425
        %v3427 = vpop.xlane.xlu0 %3426
        %v3428 = vsub.f32 %v3420, %v3424
        %v3429 = vsub.f32 %v3421, %v3427
        %v3430 = vmul.f32 %v3428, 1.442695
        %v3431 = vpow.pop %v3430
        %v3432 = vmul.f32 %v3429, 1.442695
        %v3433 = vpow.pop %v3432
        %v3434 = vsel %vm1003, %v3431, 0.0
        %3435 = vadd.xlane.f32.xlu0 %v3434
        %v3436 = vpop.xlane.xlu0 %3435
        %v3437 = vsel %vm1003, %v3433, 0.0
        %3438 = vadd.xlane.f32.xlu0 %v3437
        %v3439 = vpop.xlane.xlu0 %3438
        %v3440 = vrcp.pop %v3436
        %v3441 = vrcp.pop %v3439
        %v3442 = vmul.f32 %v3431, %v3440
        %v3443 = vmul.f32 %v3433, %v3441
        %v3444 = vpack.c.bf16 %v3443, %v3442
        %3446 = vrot.lane.b32.xlu0 %v3327, 96
        %v3447 = vpop.permute.xlu0 %3446
        %v3450 = vsel %vm1003, %v3444, 0
        %3452 = vmatpush.bf16.msra.mxu0 0
        %3453 = vmatpush.bf16.msra.mxu0 0
        %3454 = vmatpush.bf16.msra.mxu0 0
        %3455 = vmatpush.bf16.msra.mxu0 0
        %3456 = vmatpush.bf16.msra.mxu0 0
        %3457 = vmatpush.bf16.msra.mxu0 0
        %3458 = vmatpush.bf16.msra.mxu0 0
        %3459 = vmatpush.bf16.msra.mxu0 %v3447
        %3460 = vmatmul.bf16.gmra.mxu0 %v3450
        %v3461 = vpop.f32.mrf.mxu0
        %v3462 = vadd.f32 0.0, %v3461
        %v3463 = vpop.f32.mrf.mxu0
        %v3464 = vadd.f32 0.0, %v3463
        %3465 = vdwg.mxu0
        %3466 = vrot.lane.b32.xlu0 %v3183, 96
        %v3467 = vpop.permute.xlu0 %3466
        %v3469 = vsel %vm536, %v3182, 0
        %v3472 = vsel %vm536, %v3467, 0
        %3474 = vmatpush.bf16.xpose.msra.mxu0 0
        %3475 = vmatpush.bf16.xpose.msra.mxu0 0
        %3476 = vmatpush.bf16.xpose.msra.mxu0 0
        %3477 = vmatpush.bf16.xpose.msra.mxu0 0
        %3478 = vmatpush.bf16.xpose.msra.mxu0 0
        %3479 = vmatpush.bf16.xpose.msra.mxu0 0
        %3480 = vmatpush.bf16.xpose.msra.mxu0 0
        %3481 = vmatpush.bf16.xpose.msra.mxu0 %v3472
        %3482 = vmatmul.bf16.gmra.mxu0 %v3469
        %v3483 = vpop.f32.mrf.mxu0
        %v3484 = vadd.f32 0.0, %v3483
        %v3485 = vpop.f32.mrf.mxu0
        %v3486 = vadd.f32 0.0, %v3485
        %3487 = vdwg.mxu0
        %v3488 = vmul.f32 %v3484, 0.07905694
        %v3489 = vmul.f32 %v3486, 0.07905694
        %v3490 = vadd.f32 %v3488, %v532
        %v3491 = vadd.f32 %v3489, %v533
        %v3492 = vsel %vm1003, %v3490, -inf
        %3493 = vmax.xlane.f32.xlu0 %v3492
        %v3494 = vpop.xlane.xlu0 %3493
        %v3495 = vsel %vm1003, %v3491, -inf
        %3496 = vmax.xlane.f32.xlu0 %v3495
        %v3497 = vpop.xlane.xlu0 %3496
        %v3498 = vsub.f32 %v3490, %v3494
        %v3499 = vsub.f32 %v3491, %v3497
        %v3500 = vmul.f32 %v3498, 1.442695
        %v3501 = vpow.pop %v3500
        %v3502 = vmul.f32 %v3499, 1.442695
        %v3503 = vpow.pop %v3502
        %v3504 = vsel %vm1003, %v3501, 0.0
        %3505 = vadd.xlane.f32.xlu0 %v3504
        %v3506 = vpop.xlane.xlu0 %3505
        %v3507 = vsel %vm1003, %v3503, 0.0
        %3508 = vadd.xlane.f32.xlu0 %v3507
        %v3509 = vpop.xlane.xlu0 %3508
        %v3510 = vrcp.pop %v3506
        %v3511 = vrcp.pop %v3509
        %v3512 = vmul.f32 %v3501, %v3510
        %v3513 = vmul.f32 %v3503, %v3511
        %v3514 = vpack.c.bf16 %v3513, %v3512
        %3515 = vrot.lane.b32.xlu0 %v3327, 64
        %v3516 = vpop.permute.xlu0 %3515
        %v3519 = vsel %vm1003, %v3514, 0
        %3521 = vmatpush.bf16.msra.mxu0 0
        %3522 = vmatpush.bf16.msra.mxu0 0
        %3523 = vmatpush.bf16.msra.mxu0 0
        %3524 = vmatpush.bf16.msra.mxu0 0
        %3525 = vmatpush.bf16.msra.mxu0 0
        %3526 = vmatpush.bf16.msra.mxu0 0
        %3527 = vmatpush.bf16.msra.mxu0 0
        %3528 = vmatpush.bf16.msra.mxu0 %v3516
        %3529 = vmatmul.bf16.gmra.mxu0 %v3519
        %v3530 = vpop.f32.mrf.mxu0
        %v3531 = vadd.f32 0.0, %v3530
        %v3532 = vpop.f32.mrf.mxu0
        %v3533 = vadd.f32 0.0, %v3532
        %3534 = vdwg.mxu0
        %3537 = vrot.lane.b32.xlu0 %v3323, 32
        %v3538 = vpop.permute.xlu0 %3537
        %3539 = vrot.lane.b32.xlu0 %v3325, 32
        %v3540 = vpop.permute.xlu0 %3539
        %3545 = vrot.lane.b32.xlu0 %v3392, 64
        %v3546 = vpop.permute.xlu0 %3545
        %3547 = vrot.lane.b32.xlu0 %v3394, 64
        %v3548 = vpop.permute.xlu0 %3547
        %3553 = vrot.lane.b32.xlu0 %v3462, 96
        %v3554 = vpop.permute.xlu0 %3553
        %3555 = vrot.lane.b32.xlu0 %v3464, 96
        %v3556 = vpop.permute.xlu0 %3555
        %v3559 = vsel %vm536, %v3251, %v3538
        %v3560 = vsel %vm536, %v3253, %v3540
        %v3561 = vsel %vm1354, %v3559, %v3546
        %v3562 = vsel %vm1354, %v3560, %v3548
        %v3563 = vsel %vm1357, %v3561, %v3554
        %v3564 = vsel %vm1357, %v3562, %v3556
        %v3565 = vpack.c.bf16 %v3564, %v3563
        %v3566 = vpack.c.bf16 %v3533, %v3531
        %s3567 = scalar_lea.vmem %s2, 160
        %v3568 = vld [vmem:[%s3567] sm:$0xff]
        %v3569 = vld [vmem:[%s3567 + $0x8] sm:$0xff]
        %v3570 = vld [vmem:[%s3567 + $0x10] sm:$0xff]
        %v3571 = vld [vmem:[%s3567 + $0x18] sm:$0xff]
        %v3572 = vld [vmem:[%s3567 + $0x20] sm:$0xff]
        %v3573 = vld [vmem:[%s3567 + $0x28] sm:$0xff]
        %v3574 = vld [vmem:[%s3567 + $0x30] sm:$0xff]
        %v3575 = vld [vmem:[%s3567 + $0x38] sm:$0xff]
        %v3576 = vld [vmem:[%s3567 + $0x40] sm:$0xff]
        %v3577 = vld [vmem:[%s3567 + $0x48] sm:$0xff]
        %v3578 = vld [vmem:[%s3567 + $0x50] sm:$0xff]
        %v3579 = vld [vmem:[%s3567 + $0x58] sm:$0xff]
        %v3580 = vld [vmem:[%s3567 + $0x60] sm:$0xff]
        %v3581 = vld [vmem:[%s3567 + $0x68] sm:$0xff]
        %v3582 = vld [vmem:[%s3567 + $0x70] sm:$0xff]
        %v3583 = vld [vmem:[%s3567 + $0x78] sm:$0xff]
        %v3584 = vld [vmem:[%s3567 + $0x80] sm:$0xff]
        %v3585 = vld [vmem:[%s3567 + $0x88] sm:$0xff]
        %v3586 = vld [vmem:[%s3567 + $0x90] sm:$0xff]
        %v3587 = vld [vmem:[%s3567 + $0x98] sm:$0xff]
        %s3588 = scalar_lea.vmem %s3, 2
        %v3589 = vld [vmem:[%s3588] sm:$0x3]
        %v3591 = vperm.slane %v3589, 0
        %v3592 = vperm.slane %v3589, 1
        %v3615 = vunpack.c.l.b16 %v3568
        %v3616 = vunpack.c.h.b16 %v3568
        %v3617 = vunpack.c.l.b16 %v3569
        %v3618 = vunpack.c.h.b16 %v3569
        %v3619 = vunpack.c.l.b16 %v3570
        %v3620 = vunpack.c.h.b16 %v3570
        %v3621 = vunpack.c.l.b16 %v3571
        %v3622 = vunpack.c.h.b16 %v3571
        %v3623 = vunpack.c.l.b16 %v3572
        %v3624 = vunpack.c.h.b16 %v3572
        %v3625 = vunpack.c.l.b16 %v3573
        %v3626 = vunpack.c.h.b16 %v3573
        %v3627 = vunpack.c.l.b16 %v3574
        %v3628 = vunpack.c.h.b16 %v3574
        %v3629 = vunpack.c.l.b16 %v3575
        %v3630 = vunpack.c.h.b16 %v3575
        %v3631 = vunpack.c.l.b16 %v3576
        %v3632 = vunpack.c.h.b16 %v3576
        %v3633 = vunpack.c.l.b16 %v3577
        %v3634 = vunpack.c.h.b16 %v3577
        %v3635 = vunpack.c.l.b16 %v3578
        %v3636 = vunpack.c.h.b16 %v3578
        %v3637 = vunpack.c.l.b16 %v3579
        %v3638 = vunpack.c.h.b16 %v3579
        %v3639 = vunpack.c.l.b16 %v3580
        %v3640 = vunpack.c.h.b16 %v3580
        %v3641 = vunpack.c.l.b16 %v3581
        %v3642 = vunpack.c.h.b16 %v3581
        %v3643 = vunpack.c.l.b16 %v3582
        %v3644 = vunpack.c.h.b16 %v3582
        %v3645 = vunpack.c.l.b16 %v3583
        %v3646 = vunpack.c.h.b16 %v3583
        %v3647 = vunpack.c.l.b16 %v3584
        %v3648 = vunpack.c.h.b16 %v3584
        %v3649 = vunpack.c.l.b16 %v3585
        %v3650 = vunpack.c.h.b16 %v3585
        %v3651 = vunpack.c.l.b16 %v3586
        %v3652 = vunpack.c.h.b16 %v3586
        %v3653 = vunpack.c.l.b16 %v3587
        %v3654 = vunpack.c.h.b16 %v3587
        %v3655 = vpack.c.b16 %v3617, %v3615
        %v3656 = vpack.c.b16 %v3618, %v3616
        %v3657 = vpack.c.b16 %v3621, %v3619
        %v3658 = vpack.c.b16 %v3622, %v3620
        %v3659 = vpack.c.b16 %v3625, %v3623
        %v3660 = vpack.c.b16 %v3626, %v3624
        %v3661 = vpack.c.b16 %v3629, %v3627
        %v3662 = vpack.c.b16 %v3630, %v3628
        %v3663 = vpack.c.b16 %v3633, %v3631
        %v3664 = vpack.c.b16 %v3634, %v3632
        %v3665 = vpack.c.b16 %v3637, %v3635
        %v3666 = vpack.c.b16 %v3638, %v3636
        %v3667 = vpack.c.b16 %v3641, %v3639
        %v3668 = vpack.c.b16 %v3642, %v3640
        %v3669 = vpack.c.b16 %v3645, %v3643
        %v3670 = vpack.c.b16 %v3646, %v3644
        %v3671 = vpack.c.b16 %v3649, %v3647
        %v3672 = vpack.c.b16 %v3650, %v3648
        %v3673 = vpack.c.b16 %v3653, %v3651
        %v3674 = vpack.c.b16 %v3654, %v3652
        %v3696 = vsel %vm536, %v3566, 0
        %3698 = vmatpush.bf16.msra.mxu0 %v3669
        %3699 = vmatpush.bf16.msra.mxu0 %v3667
        %3700 = vmatpush.bf16.msra.mxu0 %v3665
        %3701 = vmatpush.bf16.msra.mxu0 %v3663
        %3702 = vmatpush.bf16.msra.mxu0 %v3661
        %3703 = vmatpush.bf16.msra.mxu0 %v3659
        %3704 = vmatpush.bf16.msra.mxu0 %v3657
        %3705 = vmatpush.bf16.msra.mxu0 %v3655
        %3706 = vmatmul.bf16.gmra.mxu0 %v3565
        %v3707 = vpop.f32.mrf.mxu0
        %v3708 = vadd.f32 %v3591, %v3707
        %v3709 = vpop.f32.mrf.mxu0
        %v3710 = vadd.f32 %v3591, %v3709
        %3711 = vdwg.mxu0
        %3712 = vmatpush.bf16.msra.mxu0 0
        %3713 = vmatpush.bf16.msra.mxu0 0
        %3714 = vmatpush.bf16.msra.mxu0 0
        %3715 = vmatpush.bf16.msra.mxu0 0
        %3716 = vmatpush.bf16.msra.mxu0 0
        %3717 = vmatpush.bf16.msra.mxu0 0
        %3718 = vmatpush.bf16.msra.mxu0 %v3673
        %3719 = vmatpush.bf16.msra.mxu0 %v3671
        %3720 = vmatmul.bf16.gmra.mxu0 %v3696
        %v3721 = vpop.f32.mrf.mxu0
        %v3722 = vadd.f32 %v3708, %v3721
        %v3723 = vpop.f32.mrf.mxu0
        %v3724 = vadd.f32 %v3710, %v3723
        %3725 = vdwg.mxu0
        %3726 = vmatpush.bf16.msra.mxu0 %v3670
        %3727 = vmatpush.bf16.msra.mxu0 %v3668
        %3728 = vmatpush.bf16.msra.mxu0 %v3666
        %3729 = vmatpush.bf16.msra.mxu0 %v3664
        %3730 = vmatpush.bf16.msra.mxu0 %v3662
        %3731 = vmatpush.bf16.msra.mxu0 %v3660
        %3732 = vmatpush.bf16.msra.mxu0 %v3658
        %3733 = vmatpush.bf16.msra.mxu0 %v3656
        %3734 = vmatmul.bf16.gmra.mxu0 %v3565
        %v3735 = vpop.f32.mrf.mxu0
        %v3736 = vadd.f32 %v3592, %v3735
        %v3737 = vpop.f32.mrf.mxu0
        %v3738 = vadd.f32 %v3592, %v3737
        %3739 = vdwg.mxu0
        %3740 = vmatpush.bf16.msra.mxu0 0
        %3741 = vmatpush.bf16.msra.mxu0 0
        %3742 = vmatpush.bf16.msra.mxu0 0
        %3743 = vmatpush.bf16.msra.mxu0 0
        %3744 = vmatpush.bf16.msra.mxu0 0
        %3745 = vmatpush.bf16.msra.mxu0 0
        %3746 = vmatpush.bf16.msra.mxu0 %v3674
        %3747 = vmatpush.bf16.msra.mxu0 %v3672
        %3748 = vmatmul.bf16.gmra.mxu0 %v3696
        %v3749 = vpop.f32.mrf.mxu0
        %v3750 = vadd.f32 %v3736, %v3749
        %v3751 = vpop.f32.mrf.mxu0
        %v3752 = vadd.f32 %v3738, %v3751
        %3753 = vdwg.mxu0
        %v3754 = vadd.f32 %v2819, %v3722
        %v3755 = vadd.f32 %v2820, %v3750
        %v3756 = vadd.f32 %v2821, %v3724
        %v3757 = vadd.f32 %v2822, %v3752
        %s3758 = scalar_lea.vmem %s10, 2
        %v3759 = vld [vmem:[%s3758] sm:$0x3]
        %s3760 = scalar_lea.vmem %s11, 2
        %v3761 = vld [vmem:[%s3760] sm:$0x3]
        %v3762 = vsel %vm536, %v3755, 0.0
        %v3763 = vadd.f32 %v3754, %v3762
        %3764 = vadd.xlane.f32.xlu0 %v3763
        %v3765 = vpop.xlane.xlu0 %3764
        %v3766 = vsel %vm536, %v3757, 0.0
        %v3767 = vadd.f32 %v3756, %v3766
        %3768 = vadd.xlane.f32.xlu0 %v3767
        %v3769 = vpop.xlane.xlu0 %3768
        %v3770 = vmul.f32 %v3765, %v551
        %v3771 = vmul.f32 %v3769, %v551
        %v3772 = vsub.f32 %v3754, %v3770
        %v3773 = vsub.f32 %v3755, %v3770
        %v3774 = vsub.f32 %v3756, %v3771
        %v3775 = vsub.f32 %v3757, %v3771
        %v3776 = vmul.f32 %v3772, %v3772
        %v3777 = vmul.f32 %v3773, %v3773
        %v3778 = vmul.f32 %v3774, %v3774
        %v3779 = vmul.f32 %v3775, %v3775
        %v3780 = vsel %vm536, %v3777, 0.0
        %v3781 = vadd.f32 %v3776, %v3780
        %3782 = vadd.xlane.f32.xlu0 %v3781
        %v3783 = vpop.xlane.xlu0 %3782
        %v3784 = vsel %vm536, %v3779, 0.0
        %v3785 = vadd.f32 %v3778, %v3784
        %3786 = vadd.xlane.f32.xlu0 %v3785
        %v3787 = vpop.xlane.xlu0 %3786
        %v3788 = vmul.f32 %v3783, %v551
        %v3789 = vmul.f32 %v3787, %v551
        %v3790 = vadd.f32 %v3788, 1e-05
        %v3791 = vadd.f32 %v3789, 1e-05
        %v3792 = vrsqrt.pop %v3790
        %v3793 = vmul.f32 %v3792, %v3790
        %v3794 = vmul.f32 %v3793, %v3792
        %v3795 = vmul.f32 0.5, %v3794
        %v3796 = vsub.f32 1.5, %v3795
        %v3797 = vmul.f32 %v3792, %v3796
        %vm3798 = vweird.f32 %v3790
        %vm3799 = vweird.f32 %v3792
        %vm3800 = vmor %vm3798, %vm3799
        %v3801 = vsel %vm3800, %v3792, %v3797
        %v3802 = vrsqrt.pop %v3791
        %v3803 = vmul.f32 %v3802, %v3791
        %v3804 = vmul.f32 %v3803, %v3802
        %v3805 = vmul.f32 0.5, %v3804
        %v3806 = vsub.f32 1.5, %v3805
        %v3807 = vmul.f32 %v3802, %v3806
        %vm3808 = vweird.f32 %v3791
        %vm3809 = vweird.f32 %v3802
        %vm3810 = vmor %vm3808, %vm3809
        %v3811 = vsel %vm3810, %v3802, %v3807
        %v3812 = vmul.f32 %v3772, %v3801
        %v3813 = vmul.f32 %v3773, %v3801
        %v3814 = vmul.f32 %v3774, %v3811
        %v3815 = vmul.f32 %v3775, %v3811
        %v3817 = vperm.slane %v3759, 0
        %v3818 = vperm.slane %v3759, 1
        %v3821 = vmul.f32 %v3812, %v3817
        %v3822 = vmul.f32 %v3813, %v3818
        %v3823 = vmul.f32 %v3814, %v3817
        %v3824 = vmul.f32 %v3815, %v3818
        %v3826 = vperm.slane %v3761, 0
        %v3827 = vperm.slane %v3761, 1
        %v3830 = vadd.f32 %v3821, %v3826
        %v3831 = vadd.f32 %v3822, %v3827
        %v3832 = vadd.f32 %v3823, %v3826
        %v3833 = vadd.f32 %v3824, %v3827
        %v3834 = vpack.c.bf16 %v3832, %v3830
        %v3835 = vpack.c.bf16 %v3833, %v3831
        %s3836 = scalar_lea.vmem %s4, 400
        %v3837 = vld [vmem:[%s3836] sm:$0xff]
        %v3838 = vld [vmem:[%s3836 + $0x8] sm:$0xff]
        %v3839 = vld [vmem:[%s3836 + $0x10] sm:$0xf]
        %v3840 = vld [vmem:[%s3836 + $0x14] sm:$0xff]
        %v3841 = vld [vmem:[%s3836 + $0x1c] sm:$0xff]
        %v3842 = vld [vmem:[%s3836 + $0x24] sm:$0xf]
        %v3843 = vld [vmem:[%s3836 + $0x28] sm:$0xff]
        %v3844 = vld [vmem:[%s3836 + $0x30] sm:$0xff]
        %v3845 = vld [vmem:[%s3836 + $0x38] sm:$0xf]
        %v3846 = vld [vmem:[%s3836 + $0x3c] sm:$0xff]
        %v3847 = vld [vmem:[%s3836 + $0x44] sm:$0xff]
        %v3848 = vld [vmem:[%s3836 + $0x4c] sm:$0xf]
        %v3849 = vld [vmem:[%s3836 + $0x50] sm:$0xff]
        %v3850 = vld [vmem:[%s3836 + $0x58] sm:$0xff]
        %v3851 = vld [vmem:[%s3836 + $0x60] sm:$0xf]
        %v3852 = vld [vmem:[%s3836 + $0x64] sm:$0xff]
        %v3853 = vld [vmem:[%s3836 + $0x6c] sm:$0xff]
        %v3854 = vld [vmem:[%s3836 + $0x74] sm:$0xf]
        %v3855 = vld [vmem:[%s3836 + $0x78] sm:$0xff]
        %v3856 = vld [vmem:[%s3836 + $0x80] sm:$0xff]
        %v3857 = vld [vmem:[%s3836 + $0x88] sm:$0xf]
        %v3858 = vld [vmem:[%s3836 + $0x8c] sm:$0xff]
        %v3859 = vld [vmem:[%s3836 + $0x94] sm:$0xff]
        %v3860 = vld [vmem:[%s3836 + $0x9c] sm:$0xf]
        %v3861 = vld [vmem:[%s3836 + $0xa0] sm:$0xff]
        %v3862 = vld [vmem:[%s3836 + $0xa8] sm:$0xff]
        %v3863 = vld [vmem:[%s3836 + $0xb0] sm:$0xf]
        %v3864 = vld [vmem:[%s3836 + $0xb4] sm:$0xff]
        %v3865 = vld [vmem:[%s3836 + $0xbc] sm:$0xff]
        %v3866 = vld [vmem:[%s3836 + $0xc4] sm:$0xf]
        %v3867 = vld [vmem:[%s3836 + $0xc8] sm:$0xff]
        %v3868 = vld [vmem:[%s3836 + $0xd0] sm:$0xff]
        %v3869 = vld [vmem:[%s3836 + $0xd8] sm:$0xf]
        %v3870 = vld [vmem:[%s3836 + $0xdc] sm:$0xff]
        %v3871 = vld [vmem:[%s3836 + $0xe4] sm:$0xff]
        %v3872 = vld [vmem:[%s3836 + $0xec] sm:$0xf]
        %v3873 = vld [vmem:[%s3836 + $0xf0] sm:$0xff]
        %v3874 = vld [vmem:[%s3836 + $0xf8] sm:$0xff]
        %v3875 = vld [vmem:[%s3836 + $0x100] sm:$0xf]
        %v3876 = vld [vmem:[%s3836 + $0x104] sm:$0xff]
        %v3877 = vld [vmem:[%s3836 + $0x10c] sm:$0xff]
        %v3878 = vld [vmem:[%s3836 + $0x114] sm:$0xf]
        %v3879 = vld [vmem:[%s3836 + $0x118] sm:$0xff]
        %v3880 = vld [vmem:[%s3836 + $0x120] sm:$0xff]
        %v3881 = vld [vmem:[%s3836 + $0x128] sm:$0xf]
        %v3882 = vld [vmem:[%s3836 + $0x12c] sm:$0xff]
        %v3883 = vld [vmem:[%s3836 + $0x134] sm:$0xff]
        %v3884 = vld [vmem:[%s3836 + $0x13c] sm:$0xf]
        %v3885 = vld [vmem:[%s3836 + $0x140] sm:$0xff]
        %v3886 = vld [vmem:[%s3836 + $0x148] sm:$0xff]
        %v3887 = vld [vmem:[%s3836 + $0x150] sm:$0xf]
        %v3888 = vld [vmem:[%s3836 + $0x154] sm:$0xff]
        %v3889 = vld [vmem:[%s3836 + $0x15c] sm:$0xff]
        %v3890 = vld [vmem:[%s3836 + $0x164] sm:$0xf]
        %v3891 = vld [vmem:[%s3836 + $0x168] sm:$0xff]
        %v3892 = vld [vmem:[%s3836 + $0x170] sm:$0xff]
        %v3893 = vld [vmem:[%s3836 + $0x178] sm:$0xf]
        %v3894 = vld [vmem:[%s3836 + $0x17c] sm:$0xff]
        %v3895 = vld [vmem:[%s3836 + $0x184] sm:$0xff]
        %v3896 = vld [vmem:[%s3836 + $0x18c] sm:$0xf]
        %s3897 = scalar_lea.vmem %s5, 5
        %v3898 = vld [vmem:[%s3897] sm:$0x1f]
        %v3900 = vperm.slane %v3898, 0
        %v3901 = vperm.slane %v3898, 1
        %v3902 = vperm.slane %v3898, 2
        %v3903 = vperm.slane %v3898, 3
        %v3904 = vperm.slane %v3898, 4
        %v3970 = vunpack.c.l.b16 %v3837
        %v3971 = vunpack.c.h.b16 %v3837
        %v3972 = vunpack.c.l.b16 %v3838
        %v3973 = vunpack.c.h.b16 %v3838
        %v3974 = vunpack.c.l.b16 %v3839
        %v3975 = vunpack.c.l.b16 %v3840
        %v3976 = vunpack.c.h.b16 %v3840
        %v3977 = vunpack.c.l.b16 %v3841
        %v3978 = vunpack.c.h.b16 %v3841
        %v3979 = vunpack.c.l.b16 %v3842
        %v3980 = vunpack.c.l.b16 %v3843
        %v3981 = vunpack.c.h.b16 %v3843
        %v3982 = vunpack.c.l.b16 %v3844
        %v3983 = vunpack.c.h.b16 %v3844
        %v3984 = vunpack.c.l.b16 %v3845
        %v3985 = vunpack.c.l.b16 %v3846
        %v3986 = vunpack.c.h.b16 %v3846
        %v3987 = vunpack.c.l.b16 %v3847
        %v3988 = vunpack.c.h.b16 %v3847
        %v3989 = vunpack.c.l.b16 %v3848
        %v3990 = vunpack.c.l.b16 %v3849
        %v3991 = vunpack.c.h.b16 %v3849
        %v3992 = vunpack.c.l.b16 %v3850
        %v3993 = vunpack.c.h.b16 %v3850
        %v3994 = vunpack.c.l.b16 %v3851
        %v3995 = vunpack.c.l.b16 %v3852
        %v3996 = vunpack.c.h.b16 %v3852
        %v3997 = vunpack.c.l.b16 %v3853
        %v3998 = vunpack.c.h.b16 %v3853
        %v3999 = vunpack.c.l.b16 %v3854
        %v4000 = vunpack.c.l.b16 %v3855
        %v4001 = vunpack.c.h.b16 %v3855
        %v4002 = vunpack.c.l.b16 %v3856
        %v4003 = vunpack.c.h.b16 %v3856
        %v4004 = vunpack.c.l.b16 %v3857
        %v4005 = vunpack.c.l.b16 %v3858
        %v4006 = vunpack.c.h.b16 %v3858
        %v4007 = vunpack.c.l.b16 %v3859
        %v4008 = vunpack.c.h.b16 %v3859
        %v4009 = vunpack.c.l.b16 %v3860
        %v4010 = vunpack.c.l.b16 %v3861
        %v4011 = vunpack.c.h.b16 %v3861
        %v4012 = vunpack.c.l.b16 %v3862
        %v4013 = vunpack.c.h.b16 %v3862
        %v4014 = vunpack.c.l.b16 %v3863
        %v4015 = vunpack.c.l.b16 %v3864
        %v4016 = vunpack.c.h.b16 %v3864
        %v4017 = vunpack.c.l.b16 %v3865
        %v4018 = vunpack.c.h.b16 %v3865
        %v4019 = vunpack.c.l.b16 %v3866
        %v4020 = vunpack.c.l.b16 %v3867
        %v4021 = vunpack.c.h.b16 %v3867
        %v4022 = vunpack.c.l.b16 %v3868
        %v4023 = vunpack.c.h.b16 %v3868
        %v4024 = vunpack.c.l.b16 %v3869
        %v4025 = vunpack.c.l.b16 %v3870
        %v4026 = vunpack.c.h.b16 %v3870
        %v4027 = vunpack.c.l.b16 %v3871
        %v4028 = vunpack.c.h.b16 %v3871
        %v4029 = vunpack.c.l.b16 %v3872
        %v4030 = vunpack.c.l.b16 %v3873
        %v4031 = vunpack.c.h.b16 %v3873
        %v4032 = vunpack.c.l.b16 %v3874
        %v4033 = vunpack.c.h.b16 %v3874
        %v4034 = vunpack.c.l.b16 %v3875
        %v4035 = vunpack.c.l.b16 %v3876
        %v4036 = vunpack.c.h.b16 %v3876
        %v4037 = vunpack.c.l.b16 %v3877
        %v4038 = vunpack.c.h.b16 %v3877
        %v4039 = vunpack.c.l.b16 %v3878
        %v4040 = vunpack.c.l.b16 %v3879
        %v4041 = vunpack.c.h.b16 %v3879
        %v4042 = vunpack.c.l.b16 %v3880
        %v4043 = vunpack.c.h.b16 %v3880
        %v4044 = vunpack.c.l.b16 %v3881
        %v4045 = vunpack.c.l.b16 %v3882
        %v4046 = vunpack.c.h.b16 %v3882
        %v4047 = vunpack.c.l.b16 %v3883
        %v4048 = vunpack.c.h.b16 %v3883
        %v4049 = vunpack.c.l.b16 %v3884
        %v4050 = vunpack.c.l.b16 %v3885
        %v4051 = vunpack.c.h.b16 %v3885
        %v4052 = vunpack.c.l.b16 %v3886
        %v4053 = vunpack.c.h.b16 %v3886
        %v4054 = vunpack.c.l.b16 %v3887
        %v4055 = vunpack.c.l.b16 %v3888
        %v4056 = vunpack.c.h.b16 %v3888
        %v4057 = vunpack.c.l.b16 %v3889
        %v4058 = vunpack.c.h.b16 %v3889
        %v4059 = vunpack.c.l.b16 %v3890
        %v4060 = vunpack.c.l.b16 %v3891
        %v4061 = vunpack.c.h.b16 %v3891
        %v4062 = vunpack.c.l.b16 %v3892
        %v4063 = vunpack.c.h.b16 %v3892
        %v4064 = vunpack.c.l.b16 %v3893
        %v4065 = vunpack.c.l.b16 %v3894
        %v4066 = vunpack.c.h.b16 %v3894
        %v4067 = vunpack.c.l.b16 %v3895
        %v4068 = vunpack.c.h.b16 %v3895
        %v4069 = vunpack.c.l.b16 %v3896
        %v4070 = vpack.c.b16 %v3975, %v3970
        %v4071 = vpack.c.b16 %v3976, %v3971
        %v4072 = vpack.c.b16 %v3977, %v3972
        %v4073 = vpack.c.b16 %v3978, %v3973
        %v4074 = vpack.c.b16 %v3979, %v3974
        %v4075 = vpack.c.b16 %v3985, %v3980
        %v4076 = vpack.c.b16 %v3986, %v3981
        %v4077 = vpack.c.b16 %v3987, %v3982
        %v4078 = vpack.c.b16 %v3988, %v3983
        %v4079 = vpack.c.b16 %v3989, %v3984
        %v4080 = vpack.c.b16 %v3995, %v3990
        %v4081 = vpack.c.b16 %v3996, %v3991
        %v4082 = vpack.c.b16 %v3997, %v3992
        %v4083 = vpack.c.b16 %v3998, %v3993
        %v4084 = vpack.c.b16 %v3999, %v3994
        %v4085 = vpack.c.b16 %v4005, %v4000
        %v4086 = vpack.c.b16 %v4006, %v4001
        %v4087 = vpack.c.b16 %v4007, %v4002
        %v4088 = vpack.c.b16 %v4008, %v4003
        %v4089 = vpack.c.b16 %v4009, %v4004
        %v4090 = vpack.c.b16 %v4015, %v4010
        %v4091 = vpack.c.b16 %v4016, %v4011
        %v4092 = vpack.c.b16 %v4017, %v4012
        %v4093 = vpack.c.b16 %v4018, %v4013
        %v4094 = vpack.c.b16 %v4019, %v4014
        %v4095 = vpack.c.b16 %v4025, %v4020
        %v4096 = vpack.c.b16 %v4026, %v4021
        %v4097 = vpack.c.b16 %v4027, %v4022
        %v4098 = vpack.c.b16 %v4028, %v4023
        %v4099 = vpack.c.b16 %v4029, %v4024
        %v4100 = vpack.c.b16 %v4035, %v4030
        %v4101 = vpack.c.b16 %v4036, %v4031
        %v4102 = vpack.c.b16 %v4037, %v4032
        %v4103 = vpack.c.b16 %v4038, %v4033
        %v4104 = vpack.c.b16 %v4039, %v4034
        %v4105 = vpack.c.b16 %v4045, %v4040
        %v4106 = vpack.c.b16 %v4046, %v4041
        %v4107 = vpack.c.b16 %v4047, %v4042
        %v4108 = vpack.c.b16 %v4048, %v4043
        %v4109 = vpack.c.b16 %v4049, %v4044
        %v4110 = vpack.c.b16 %v4055, %v4050
        %v4111 = vpack.c.b16 %v4056, %v4051
        %v4112 = vpack.c.b16 %v4057, %v4052
        %v4113 = vpack.c.b16 %v4058, %v4053
        %v4114 = vpack.c.b16 %v4059, %v4054
        %v4115 = vpack.c.b16 %v4065, %v4060
        %v4116 = vpack.c.b16 %v4066, %v4061
        %v4117 = vpack.c.b16 %v4067, %v4062
        %v4118 = vpack.c.b16 %v4068, %v4063
        %v4119 = vpack.c.b16 %v4069, %v4064
        %v4171 = vsel %vm536, %v3835, 0
        %4173 = vmatpush.bf16.msra.mxu0 %v4105
        %4174 = vmatpush.bf16.msra.mxu0 %v4100
        %4175 = vmatpush.bf16.msra.mxu0 %v4095
        %4176 = vmatpush.bf16.msra.mxu0 %v4090
        %4177 = vmatpush.bf16.msra.mxu0 %v4085
        %4178 = vmatpush.bf16.msra.mxu0 %v4080
        %4179 = vmatpush.bf16.msra.mxu0 %v4075
        %4180 = vmatpush.bf16.msra.mxu0 %v4070
        %4181 = vmatmul.bf16.gmra.mxu0 %v3834
        %v4182 = vpop.f32.mrf.mxu0
        %v4183 = vadd.f32 %v3900, %v4182
        %v4184 = vpop.f32.mrf.mxu0
        %v4185 = vadd.f32 %v3900, %v4184
        %4186 = vdwg.mxu0
        %4187 = vmatpush.bf16.msra.mxu0 0
        %4188 = vmatpush.bf16.msra.mxu0 0
        %4189 = vmatpush.bf16.msra.mxu0 0
        %4190 = vmatpush.bf16.msra.mxu0 0
        %4191 = vmatpush.bf16.msra.mxu0 0
        %4192 = vmatpush.bf16.msra.mxu0 0
        %4193 = vmatpush.bf16.msra.mxu0 %v4115
        %4194 = vmatpush.bf16.msra.mxu0 %v4110
        %4195 = vmatmul.bf16.gmra.mxu0 %v4171
        %v4196 = vpop.f32.mrf.mxu0
        %v4197 = vadd.f32 %v4183, %v4196
        %v4198 = vpop.f32.mrf.mxu0
        %v4199 = vadd.f32 %v4185, %v4198
        %4200 = vdwg.mxu0
        %4201 = vmatpush.bf16.msra.mxu0 %v4106
        %4202 = vmatpush.bf16.msra.mxu0 %v4101
        %4203 = vmatpush.bf16.msra.mxu0 %v4096
        %4204 = vmatpush.bf16.msra.mxu0 %v4091
        %4205 = vmatpush.bf16.msra.mxu0 %v4086
        %4206 = vmatpush.bf16.msra.mxu0 %v4081
        %4207 = vmatpush.bf16.msra.mxu0 %v4076
        %4208 = vmatpush.bf16.msra.mxu0 %v4071
        %4209 = vmatmul.bf16.gmra.mxu0 %v3834
        %v4210 = vpop.f32.mrf.mxu0
        %v4211 = vadd.f32 %v3901, %v4210
        %v4212 = vpop.f32.mrf.mxu0
        %v4213 = vadd.f32 %v3901, %v4212
        %4214 = vdwg.mxu0
        %4215 = vmatpush.bf16.msra.mxu0 0
        %4216 = vmatpush.bf16.msra.mxu0 0
        %4217 = vmatpush.bf16.msra.mxu0 0
        %4218 = vmatpush.bf16.msra.mxu0 0
        %4219 = vmatpush.bf16.msra.mxu0 0
        %4220 = vmatpush.bf16.msra.mxu0 0
        %4221 = vmatpush.bf16.msra.mxu0 %v4116
        %4222 = vmatpush.bf16.msra.mxu0 %v4111
        %4223 = vmatmul.bf16.gmra.mxu0 %v4171
        %v4224 = vpop.f32.mrf.mxu0
        %v4225 = vadd.f32 %v4211, %v4224
        %v4226 = vpop.f32.mrf.mxu0
        %v4227 = vadd.f32 %v4213, %v4226
        %4228 = vdwg.mxu0
        %4229 = vmatpush.bf16.msra.mxu0 %v4107
        %4230 = vmatpush.bf16.msra.mxu0 %v4102
        %4231 = vmatpush.bf16.msra.mxu0 %v4097
        %4232 = vmatpush.bf16.msra.mxu0 %v4092
        %4233 = vmatpush.bf16.msra.mxu0 %v4087
        %4234 = vmatpush.bf16.msra.mxu0 %v4082
        %4235 = vmatpush.bf16.msra.mxu0 %v4077
        %4236 = vmatpush.bf16.msra.mxu0 %v4072
        %4237 = vmatmul.bf16.gmra.mxu0 %v3834
        %v4238 = vpop.f32.mrf.mxu0
        %v4239 = vadd.f32 %v3902, %v4238
        %v4240 = vpop.f32.mrf.mxu0
        %v4241 = vadd.f32 %v3902, %v4240
        %4242 = vdwg.mxu0
        %4243 = vmatpush.bf16.msra.mxu0 0
        %4244 = vmatpush.bf16.msra.mxu0 0
        %4245 = vmatpush.bf16.msra.mxu0 0
        %4246 = vmatpush.bf16.msra.mxu0 0
        %4247 = vmatpush.bf16.msra.mxu0 0
        %4248 = vmatpush.bf16.msra.mxu0 0
        %4249 = vmatpush.bf16.msra.mxu0 %v4117
        %4250 = vmatpush.bf16.msra.mxu0 %v4112
        %4251 = vmatmul.bf16.gmra.mxu0 %v4171
        %v4252 = vpop.f32.mrf.mxu0
        %v4253 = vadd.f32 %v4239, %v4252
        %v4254 = vpop.f32.mrf.mxu0
        %v4255 = vadd.f32 %v4241, %v4254
        %4256 = vdwg.mxu0
        %4257 = vmatpush.bf16.msra.mxu0 %v4108
        %4258 = vmatpush.bf16.msra.mxu0 %v4103
        %4259 = vmatpush.bf16.msra.mxu0 %v4098
        %4260 = vmatpush.bf16.msra.mxu0 %v4093
        %4261 = vmatpush.bf16.msra.mxu0 %v4088
        %4262 = vmatpush.bf16.msra.mxu0 %v4083
        %4263 = vmatpush.bf16.msra.mxu0 %v4078
        %4264 = vmatpush.bf16.msra.mxu0 %v4073
        %4265 = vmatmul.bf16.gmra.mxu0 %v3834
        %v4266 = vpop.f32.mrf.mxu0
        %v4267 = vadd.f32 %v3903, %v4266
        %v4268 = vpop.f32.mrf.mxu0
        %v4269 = vadd.f32 %v3903, %v4268
        %4270 = vdwg.mxu0
        %4271 = vmatpush.bf16.msra.mxu0 0
        %4272 = vmatpush.bf16.msra.mxu0 0
        %4273 = vmatpush.bf16.msra.mxu0 0
        %4274 = vmatpush.bf16.msra.mxu0 0
        %4275 = vmatpush.bf16.msra.mxu0 0
        %4276 = vmatpush.bf16.msra.mxu0 0
        %4277 = vmatpush.bf16.msra.mxu0 %v4118
        %4278 = vmatpush.bf16.msra.mxu0 %v4113
        %4279 = vmatmul.bf16.gmra.mxu0 %v4171
        %v4280 = vpop.f32.mrf.mxu0
        %v4281 = vadd.f32 %v4267, %v4280
        %v4282 = vpop.f32.mrf.mxu0
        %v4283 = vadd.f32 %v4269, %v4282
        %4284 = vdwg.mxu0
        %4285 = vmatpush.bf16.msra.mxu0 %v4109
        %4286 = vmatpush.bf16.msra.mxu0 %v4104
        %4287 = vmatpush.bf16.msra.mxu0 %v4099
        %4288 = vmatpush.bf16.msra.mxu0 %v4094
        %4289 = vmatpush.bf16.msra.mxu0 %v4089
        %4290 = vmatpush.bf16.msra.mxu0 %v4084
        %4291 = vmatpush.bf16.msra.mxu0 %v4079
        %4292 = vmatpush.bf16.msra.mxu0 %v4074
        %4293 = vmatmul.bf16.gmra.mxu0 %v3834
        %v4294 = vpop.f32.mrf.mxu0
        %v4295 = vadd.f32 %v3904, %v4294
        %v4296 = vpop.f32.mrf.mxu0
        %v4297 = vadd.f32 %v3904, %v4296
        %4298 = vdwg.mxu0
        %4299 = vmatpush.bf16.msra.mxu0 0
        %4300 = vmatpush.bf16.msra.mxu0 0
        %4301 = vmatpush.bf16.msra.mxu0 0
        %4302 = vmatpush.bf16.msra.mxu0 0
        %4303 = vmatpush.bf16.msra.mxu0 0
        %4304 = vmatpush.bf16.msra.mxu0 0
        %4305 = vmatpush.bf16.msra.mxu0 %v4119
        %4306 = vmatpush.bf16.msra.mxu0 %v4114
        %4307 = vmatmul.bf16.gmra.mxu0 %v4171
        %v4308 = vpop.f32.mrf.mxu0
        %v4309 = vadd.f32 %v4295, %v4308
        %v4310 = vpop.f32.mrf.mxu0
        %v4311 = vadd.f32 %v4297, %v4310
        %4312 = vdwg.mxu0
        %v4313 = vmax.f32 %v4197, 0.0
        %v4314 = vmax.f32 %v4225, 0.0
        %v4315 = vmax.f32 %v4253, 0.0
        %v4316 = vmax.f32 %v4281, 0.0
        %v4317 = vmax.f32 %v4309, 0.0
        %v4318 = vmax.f32 %v4199, 0.0
        %v4319 = vmax.f32 %v4227, 0.0
        %v4320 = vmax.f32 %v4255, 0.0
        %v4321 = vmax.f32 %v4283, 0.0
        %v4322 = vmax.f32 %v4311, 0.0
        %v4323 = vpack.c.bf16 %v4318, %v4313
        %v4324 = vpack.c.bf16 %v4319, %v4314
        %v4325 = vpack.c.bf16 %v4320, %v4315
        %v4326 = vpack.c.bf16 %v4321, %v4316
        %v4327 = vpack.c.bf16 %v4322, %v4317
        %s4328 = scalar_lea.vmem %s6, 640
        %v4329 = vld [vmem:[%s4328] sm:$0xff]
        %v4330 = vld [vmem:[%s4328 + $0x8] sm:$0xff]
        %v4331 = vld [vmem:[%s4328 + $0x10] sm:$0xff]
        %v4332 = vld [vmem:[%s4328 + $0x18] sm:$0xff]
        %v4333 = vld [vmem:[%s4328 + $0x20] sm:$0xff]
        %v4334 = vld [vmem:[%s4328 + $0x28] sm:$0xff]
        %v4335 = vld [vmem:[%s4328 + $0x30] sm:$0xff]
        %v4336 = vld [vmem:[%s4328 + $0x38] sm:$0xff]
        %v4337 = vld [vmem:[%s4328 + $0x40] sm:$0xff]
        %v4338 = vld [vmem:[%s4328 + $0x48] sm:$0xff]
        %v4339 = vld [vmem:[%s4328 + $0x50] sm:$0xff]
        %v4340 = vld [vmem:[%s4328 + $0x58] sm:$0xff]
        %v4341 = vld [vmem:[%s4328 + $0x60] sm:$0xff]
        %v4342 = vld [vmem:[%s4328 + $0x68] sm:$0xff]
        %v4343 = vld [vmem:[%s4328 + $0x70] sm:$0xff]
        %v4344 = vld [vmem:[%s4328 + $0x78] sm:$0xff]
        %v4345 = vld [vmem:[%s4328 + $0x80] sm:$0xff]
        %v4346 = vld [vmem:[%s4328 + $0x88] sm:$0xff]
        %v4347 = vld [vmem:[%s4328 + $0x90] sm:$0xff]
        %v4348 = vld [vmem:[%s4328 + $0x98] sm:$0xff]
        %v4349 = vld [vmem:[%s4328 + $0xa0] sm:$0xff]
        %v4350 = vld [vmem:[%s4328 + $0xa8] sm:$0xff]
        %v4351 = vld [vmem:[%s4328 + $0xb0] sm:$0xff]
        %v4352 = vld [vmem:[%s4328 + $0xb8] sm:$0xff]
        %v4353 = vld [vmem:[%s4328 + $0xc0] sm:$0xff]
        %v4354 = vld [vmem:[%s4328 + $0xc8] sm:$0xff]
        %v4355 = vld [vmem:[%s4328 + $0xd0] sm:$0xff]
        %v4356 = vld [vmem:[%s4328 + $0xd8] sm:$0xff]
        %v4357 = vld [vmem:[%s4328 + $0xe0] sm:$0xff]
        %v4358 = vld [vmem:[%s4328 + $0xe8] sm:$0xff]
        %v4359 = vld [vmem:[%s4328 + $0xf0] sm:$0xff]
        %v4360 = vld [vmem:[%s4328 + $0xf8] sm:$0xff]
        %v4361 = vld [vmem:[%s4328 + $0x100] sm:$0xff]
        %v4362 = vld [vmem:[%s4328 + $0x108] sm:$0xff]
        %v4363 = vld [vmem:[%s4328 + $0x110] sm:$0xff]
        %v4364 = vld [vmem:[%s4328 + $0x118] sm:$0xff]
        %v4365 = vld [vmem:[%s4328 + $0x120] sm:$0xff]
        %v4366 = vld [vmem:[%s4328 + $0x128] sm:$0xff]
        %v4367 = vld [vmem:[%s4328 + $0x130] sm:$0xff]
        %v4368 = vld [vmem:[%s4328 + $0x138] sm:$0xff]
        %v4369 = vld [vmem:[%s4328 + $0x140] sm:$0xff]
        %v4370 = vld [vmem:[%s4328 + $0x148] sm:$0xff]
        %v4371 = vld [vmem:[%s4328 + $0x150] sm:$0xff]
        %v4372 = vld [vmem:[%s4328 + $0x158] sm:$0xff]
        %v4373 = vld [vmem:[%s4328 + $0x160] sm:$0xff]
        %v4374 = vld [vmem:[%s4328 + $0x168] sm:$0xff]
        %v4375 = vld [vmem:[%s4328 + $0x170] sm:$0xff]
        %v4376 = vld [vmem:[%s4328 + $0x178] sm:$0xff]
        %v4377 = vld [vmem:[%s4328 + $0x180] sm:$0xff]
        %v4378 = vld [vmem:[%s4328 + $0x188] sm:$0xff]
        %v4379 = vld [vmem:[%s4328 + $0x190] sm:$0xff]
        %v4380 = vld [vmem:[%s4328 + $0x198] sm:$0xff]
        %v4381 = vld [vmem:[%s4328 + $0x1a0] sm:$0xff]
        %v4382 = vld [vmem:[%s4328 + $0x1a8] sm:$0xff]
        %v4383 = vld [vmem:[%s4328 + $0x1b0] sm:$0xff]
        %v4384 = vld [vmem:[%s4328 + $0x1b8] sm:$0xff]
        %v4385 = vld [vmem:[%s4328 + $0x1c0] sm:$0xff]
        %v4386 = vld [vmem:[%s4328 + $0x1c8] sm:$0xff]
        %v4387 = vld [vmem:[%s4328 + $0x1d0] sm:$0xff]
        %v4388 = vld [vmem:[%s4328 + $0x1d8] sm:$0xff]
        %v4389 = vld [vmem:[%s4328 + $0x1e0] sm:$0xff]
        %v4390 = vld [vmem:[%s4328 + $0x1e8] sm:$0xff]
        %v4391 = vld [vmem:[%s4328 + $0x1f0] sm:$0xff]
        %v4392 = vld [vmem:[%s4328 + $0x1f8] sm:$0xff]
        %v4393 = vld [vmem:[%s4328 + $0x200] sm:$0xff]
        %v4394 = vld [vmem:[%s4328 + $0x208] sm:$0xff]
        %v4395 = vld [vmem:[%s4328 + $0x210] sm:$0xff]
        %v4396 = vld [vmem:[%s4328 + $0x218] sm:$0xff]
        %v4397 = vld [vmem:[%s4328 + $0x220] sm:$0xff]
        %v4398 = vld [vmem:[%s4328 + $0x228] sm:$0xff]
        %v4399 = vld [vmem:[%s4328 + $0x230] sm:$0xff]
        %v4400 = vld [vmem:[%s4328 + $0x238] sm:$0xff]
        %v4401 = vld [vmem:[%s4328 + $0x240] sm:$0xff]
        %v4402 = vld [vmem:[%s4328 + $0x248] sm:$0xff]
        %v4403 = vld [vmem:[%s4328 + $0x250] sm:$0xff]
        %v4404 = vld [vmem:[%s4328 + $0x258] sm:$0xff]
        %v4405 = vld [vmem:[%s4328 + $0x260] sm:$0xff]
        %v4406 = vld [vmem:[%s4328 + $0x268] sm:$0xff]
        %v4407 = vld [vmem:[%s4328 + $0x270] sm:$0xff]
        %v4408 = vld [vmem:[%s4328 + $0x278] sm:$0xff]
        %s4409 = scalar_lea.vmem %s7, 2
        %v4410 = vld [vmem:[%s4409] sm:$0x3]
        %v4412 = vperm.slane %v4410, 0
        %v4413 = vperm.slane %v4410, 1
        %v4496 = vunpack.c.l.b16 %v4329
        %v4497 = vunpack.c.h.b16 %v4329
        %v4498 = vunpack.c.l.b16 %v4330
        %v4499 = vunpack.c.h.b16 %v4330
        %v4500 = vunpack.c.l.b16 %v4331
        %v4501 = vunpack.c.h.b16 %v4331
        %v4502 = vunpack.c.l.b16 %v4332
        %v4503 = vunpack.c.h.b16 %v4332
        %v4504 = vunpack.c.l.b16 %v4333
        %v4505 = vunpack.c.h.b16 %v4333
        %v4506 = vunpack.c.l.b16 %v4334
        %v4507 = vunpack.c.h.b16 %v4334
        %v4508 = vunpack.c.l.b16 %v4335
        %v4509 = vunpack.c.h.b16 %v4335
        %v4510 = vunpack.c.l.b16 %v4336
        %v4511 = vunpack.c.h.b16 %v4336
        %v4512 = vunpack.c.l.b16 %v4337
        %v4513 = vunpack.c.h.b16 %v4337
        %v4514 = vunpack.c.l.b16 %v4338
        %v4515 = vunpack.c.h.b16 %v4338
        %v4516 = vunpack.c.l.b16 %v4339
        %v4517 = vunpack.c.h.b16 %v4339
        %v4518 = vunpack.c.l.b16 %v4340
        %v4519 = vunpack.c.h.b16 %v4340
        %v4520 = vunpack.c.l.b16 %v4341
        %v4521 = vunpack.c.h.b16 %v4341
        %v4522 = vunpack.c.l.b16 %v4342
        %v4523 = vunpack.c.h.b16 %v4342
        %v4524 = vunpack.c.l.b16 %v4343
        %v4525 = vunpack.c.h.b16 %v4343
        %v4526 = vunpack.c.l.b16 %v4344
        %v4527 = vunpack.c.h.b16 %v4344
        %v4528 = vunpack.c.l.b16 %v4345
        %v4529 = vunpack.c.h.b16 %v4345
        %v4530 = vunpack.c.l.b16 %v4346
        %v4531 = vunpack.c.h.b16 %v4346
        %v4532 = vunpack.c.l.b16 %v4347
        %v4533 = vunpack.c.h.b16 %v4347
        %v4534 = vunpack.c.l.b16 %v4348
        %v4535 = vunpack.c.h.b16 %v4348
        %v4536 = vunpack.c.l.b16 %v4349
        %v4537 = vunpack.c.h.b16 %v4349
        %v4538 = vunpack.c.l.b16 %v4350
        %v4539 = vunpack.c.h.b16 %v4350
        %v4540 = vunpack.c.l.b16 %v4351
        %v4541 = vunpack.c.h.b16 %v4351
        %v4542 = vunpack.c.l.b16 %v4352
        %v4543 = vunpack.c.h.b16 %v4352
        %v4544 = vunpack.c.l.b16 %v4353
        %v4545 = vunpack.c.h.b16 %v4353
        %v4546 = vunpack.c.l.b16 %v4354
        %v4547 = vunpack.c.h.b16 %v4354
        %v4548 = vunpack.c.l.b16 %v4355
        %v4549 = vunpack.c.h.b16 %v4355
        %v4550 = vunpack.c.l.b16 %v4356
        %v4551 = vunpack.c.h.b16 %v4356
        %v4552 = vunpack.c.l.b16 %v4357
        %v4553 = vunpack.c.h.b16 %v4357
        %v4554 = vunpack.c.l.b16 %v4358
        %v4555 = vunpack.c.h.b16 %v4358
        %v4556 = vunpack.c.l.b16 %v4359
        %v4557 = vunpack.c.h.b16 %v4359
        %v4558 = vunpack.c.l.b16 %v4360
        %v4559 = vunpack.c.h.b16 %v4360
        %v4560 = vunpack.c.l.b16 %v4361
        %v4561 = vunpack.c.h.b16 %v4361
        %v4562 = vunpack.c.l.b16 %v4362
        %v4563 = vunpack.c.h.b16 %v4362
        %v4564 = vunpack.c.l.b16 %v4363
        %v4565 = vunpack.c.h.b16 %v4363
        %v4566 = vunpack.c.l.b16 %v4364
        %v4567 = vunpack.c.h.b16 %v4364
        %v4568 = vunpack.c.l.b16 %v4365
        %v4569 = vunpack.c.h.b16 %v4365
        %v4570 = vunpack.c.l.b16 %v4366
        %v4571 = vunpack.c.h.b16 %v4366
        %v4572 = vunpack.c.l.b16 %v4367
        %v4573 = vunpack.c.h.b16 %v4367
        %v4574 = vunpack.c.l.b16 %v4368
        %v4575 = vunpack.c.h.b16 %v4368
        %v4576 = vunpack.c.l.b16 %v4369
        %v4577 = vunpack.c.h.b16 %v4369
        %v4578 = vunpack.c.l.b16 %v4370
        %v4579 = vunpack.c.h.b16 %v4370
        %v4580 = vunpack.c.l.b16 %v4371
        %v4581 = vunpack.c.h.b16 %v4371
        %v4582 = vunpack.c.l.b16 %v4372
        %v4583 = vunpack.c.h.b16 %v4372
        %v4584 = vunpack.c.l.b16 %v4373
        %v4585 = vunpack.c.h.b16 %v4373
        %v4586 = vunpack.c.l.b16 %v4374
        %v4587 = vunpack.c.h.b16 %v4374
        %v4588 = vunpack.c.l.b16 %v4375
        %v4589 = vunpack.c.h.b16 %v4375
        %v4590 = vunpack.c.l.b16 %v4376
        %v4591 = vunpack.c.h.b16 %v4376
        %v4592 = vunpack.c.l.b16 %v4377
        %v4593 = vunpack.c.h.b16 %v4377
        %v4594 = vunpack.c.l.b16 %v4378
        %v4595 = vunpack.c.h.b16 %v4378
        %v4596 = vunpack.c.l.b16 %v4379
        %v4597 = vunpack.c.h.b16 %v4379
        %v4598 = vunpack.c.l.b16 %v4380
        %v4599 = vunpack.c.h.b16 %v4380
        %v4600 = vunpack.c.l.b16 %v4381
        %v4601 = vunpack.c.h.b16 %v4381
        %v4602 = vunpack.c.l.b16 %v4382
        %v4603 = vunpack.c.h.b16 %v4382
        %v4604 = vunpack.c.l.b16 %v4383
        %v4605 = vunpack.c.h.b16 %v4383
        %v4606 = vunpack.c.l.b16 %v4384
        %v4607 = vunpack.c.h.b16 %v4384
        %v4608 = vunpack.c.l.b16 %v4385
        %v4609 = vunpack.c.h.b16 %v4385
        %v4610 = vunpack.c.l.b16 %v4386
        %v4611 = vunpack.c.h.b16 %v4386
        %v4612 = vunpack.c.l.b16 %v4387
        %v4613 = vunpack.c.h.b16 %v4387
        %v4614 = vunpack.c.l.b16 %v4388
        %v4615 = vunpack.c.h.b16 %v4388
        %v4616 = vunpack.c.l.b16 %v4389
        %v4617 = vunpack.c.h.b16 %v4389
        %v4618 = vunpack.c.l.b16 %v4390
        %v4619 = vunpack.c.h.b16 %v4390
        %v4620 = vunpack.c.l.b16 %v4391
        %v4621 = vunpack.c.h.b16 %v4391
        %v4622 = vunpack.c.l.b16 %v4392
        %v4623 = vunpack.c.h.b16 %v4392
        %v4624 = vunpack.c.l.b16 %v4393
        %v4625 = vunpack.c.h.b16 %v4393
        %v4626 = vunpack.c.l.b16 %v4394
        %v4627 = vunpack.c.h.b16 %v4394
        %v4628 = vunpack.c.l.b16 %v4395
        %v4629 = vunpack.c.h.b16 %v4395
        %v4630 = vunpack.c.l.b16 %v4396
        %v4631 = vunpack.c.h.b16 %v4396
        %v4632 = vunpack.c.l.b16 %v4397
        %v4633 = vunpack.c.h.b16 %v4397
        %v4634 = vunpack.c.l.b16 %v4398
        %v4635 = vunpack.c.h.b16 %v4398
        %v4636 = vunpack.c.l.b16 %v4399
        %v4637 = vunpack.c.h.b16 %v4399
        %v4638 = vunpack.c.l.b16 %v4400
        %v4639 = vunpack.c.h.b16 %v4400
        %v4640 = vunpack.c.l.b16 %v4401
        %v4641 = vunpack.c.h.b16 %v4401
        %v4642 = vunpack.c.l.b16 %v4402
        %v4643 = vunpack.c.h.b16 %v4402
        %v4644 = vunpack.c.l.b16 %v4403
        %v4645 = vunpack.c.h.b16 %v4403
        %v4646 = vunpack.c.l.b16 %v4404
        %v4647 = vunpack.c.h.b16 %v4404
        %v4648 = vunpack.c.l.b16 %v4405
        %v4649 = vunpack.c.h.b16 %v4405
        %v4650 = vunpack.c.l.b16 %v4406
        %v4651 = vunpack.c.h.b16 %v4406
        %v4652 = vunpack.c.l.b16 %v4407
        %v4653 = vunpack.c.h.b16 %v4407
        %v4654 = vunpack.c.l.b16 %v4408
        %v4655 = vunpack.c.h.b16 %v4408
        %v4656 = vpack.c.b16 %v4498, %v4496
        %v4657 = vpack.c.b16 %v4499, %v4497
        %v4658 = vpack.c.b16 %v4502, %v4500
        %v4659 = vpack.c.b16 %v4503, %v4501
        %v4660 = vpack.c.b16 %v4506, %v4504
        %v4661 = vpack.c.b16 %v4507, %v4505
        %v4662 = vpack.c.b16 %v4510, %v4508
        %v4663 = vpack.c.b16 %v4511, %v4509
        %v4664 = vpack.c.b16 %v4514, %v4512
        %v4665 = vpack.c.b16 %v4515, %v4513
        %v4666 = vpack.c.b16 %v4518, %v4516
        %v4667 = vpack.c.b16 %v4519, %v4517
        %v4668 = vpack.c.b16 %v4522, %v4520
        %v4669 = vpack.c.b16 %v4523, %v4521
        %v4670 = vpack.c.b16 %v4526, %v4524
        %v4671 = vpack.c.b16 %v4527, %v4525
        %v4672 = vpack.c.b16 %v4530, %v4528
        %v4673 = vpack.c.b16 %v4531, %v4529
        %v4674 = vpack.c.b16 %v4534, %v4532
        %v4675 = vpack.c.b16 %v4535, %v4533
        %v4676 = vpack.c.b16 %v4538, %v4536
        %v4677 = vpack.c.b16 %v4539, %v4537
        %v4678 = vpack.c.b16 %v4542, %v4540
        %v4679 = vpack.c.b16 %v4543, %v4541
        %v4680 = vpack.c.b16 %v4546, %v4544
        %v4681 = vpack.c.b16 %v4547, %v4545
        %v4682 = vpack.c.b16 %v4550, %v4548
        %v4683 = vpack.c.b16 %v4551, %v4549
        %v4684 = vpack.c.b16 %v4554, %v4552
        %v4685 = vpack.c.b16 %v4555, %v4553
        %v4686 = vpack.c.b16 %v4558, %v4556
        %v4687 = vpack.c.b16 %v4559, %v4557
        %v4688 = vpack.c.b16 %v4562, %v4560
        %v4689 = vpack.c.b16 %v4563, %v4561
        %v4690 = vpack.c.b16 %v4566, %v4564
        %v4691 = vpack.c.b16 %v4567, %v4565
        %v4692 = vpack.c.b16 %v4570, %v4568
        %v4693 = vpack.c.b16 %v4571, %v4569
        %v4694 = vpack.c.b16 %v4574, %v4572
        %v4695 = vpack.c.b16 %v4575, %v4573
        %v4696 = vpack.c.b16 %v4578, %v4576
        %v4697 = vpack.c.b16 %v4579, %v4577
        %v4698 = vpack.c.b16 %v4582, %v4580
        %v4699 = vpack.c.b16 %v4583, %v4581
        %v4700 = vpack.c.b16 %v4586, %v4584
        %v4701 = vpack.c.b16 %v4587, %v4585
        %v4702 = vpack.c.b16 %v4590, %v4588
        %v4703 = vpack.c.b16 %v4591, %v4589
        %v4704 = vpack.c.b16 %v4594, %v4592
        %v4705 = vpack.c.b16 %v4595, %v4593
        %v4706 = vpack.c.b16 %v4598, %v4596
        %v4707 = vpack.c.b16 %v4599, %v4597
        %v4708 = vpack.c.b16 %v4602, %v4600
        %v4709 = vpack.c.b16 %v4603, %v4601
        %v4710 = vpack.c.b16 %v4606, %v4604
        %v4711 = vpack.c.b16 %v4607, %v4605
        %v4712 = vpack.c.b16 %v4610, %v4608
        %v4713 = vpack.c.b16 %v4611, %v4609
        %v4714 = vpack.c.b16 %v4614, %v4612
        %v4715 = vpack.c.b16 %v4615, %v4613
        %v4716 = vpack.c.b16 %v4618, %v4616
        %v4717 = vpack.c.b16 %v4619, %v4617
        %v4718 = vpack.c.b16 %v4622, %v4620
        %v4719 = vpack.c.b16 %v4623, %v4621
        %v4720 = vpack.c.b16 %v4626, %v4624
        %v4721 = vpack.c.b16 %v4627, %v4625
        %v4722 = vpack.c.b16 %v4630, %v4628
        %v4723 = vpack.c.b16 %v4631, %v4629
        %v4724 = vpack.c.b16 %v4634, %v4632
        %v4725 = vpack.c.b16 %v4635, %v4633
        %v4726 = vpack.c.b16 %v4638, %v4636
        %v4727 = vpack.c.b16 %v4639, %v4637
        %v4728 = vpack.c.b16 %v4642, %v4640
        %v4729 = vpack.c.b16 %v4643, %v4641
        %v4730 = vpack.c.b16 %v4646, %v4644
        %v4731 = vpack.c.b16 %v4647, %v4645
        %v4732 = vpack.c.b16 %v4650, %v4648
        %v4733 = vpack.c.b16 %v4651, %v4649
        %v4734 = vpack.c.b16 %v4654, %v4652
        %v4735 = vpack.c.b16 %v4655, %v4653
        %4816 = vmatpush.bf16.msra.mxu0 %v4670
        %4817 = vmatpush.bf16.msra.mxu0 %v4668
        %4818 = vmatpush.bf16.msra.mxu0 %v4666
        %4819 = vmatpush.bf16.msra.mxu0 %v4664
        %4820 = vmatpush.bf16.msra.mxu0 %v4662
        %4821 = vmatpush.bf16.msra.mxu0 %v4660
        %4822 = vmatpush.bf16.msra.mxu0 %v4658
        %4823 = vmatpush.bf16.msra.mxu0 %v4656
        %4824 = vmatmul.bf16.gmra.mxu0 %v4323
        %v4825 = vpop.f32.mrf.mxu0
        %v4826 = vadd.f32 %v4412, %v4825
        %v4827 = vpop.f32.mrf.mxu0
        %v4828 = vadd.f32 %v4412, %v4827
        %4829 = vdwg.mxu0
        %4830 = vmatpush.bf16.msra.mxu0 %v4686
        %4831 = vmatpush.bf16.msra.mxu0 %v4684
        %4832 = vmatpush.bf16.msra.mxu0 %v4682
        %4833 = vmatpush.bf16.msra.mxu0 %v4680
        %4834 = vmatpush.bf16.msra.mxu0 %v4678
        %4835 = vmatpush.bf16.msra.mxu0 %v4676
        %4836 = vmatpush.bf16.msra.mxu0 %v4674
        %4837 = vmatpush.bf16.msra.mxu0 %v4672
        %4838 = vmatmul.bf16.gmra.mxu0 %v4324
        %v4839 = vpop.f32.mrf.mxu0
        %v4840 = vadd.f32 %v4826, %v4839
        %v4841 = vpop.f32.mrf.mxu0
        %v4842 = vadd.f32 %v4828, %v4841
        %4843 = vdwg.mxu0
        %4844 = vmatpush.bf16.msra.mxu0 %v4702
        %4845 = vmatpush.bf16.msra.mxu0 %v4700
        %4846 = vmatpush.bf16.msra.mxu0 %v4698
        %4847 = vmatpush.bf16.msra.mxu0 %v4696
        %4848 = vmatpush.bf16.msra.mxu0 %v4694
        %4849 = vmatpush.bf16.msra.mxu0 %v4692
        %4850 = vmatpush.bf16.msra.mxu0 %v4690
        %4851 = vmatpush.bf16.msra.mxu0 %v4688
        %4852 = vmatmul.bf16.gmra.mxu0 %v4325
        %v4853 = vpop.f32.mrf.mxu0
        %v4854 = vadd.f32 %v4840, %v4853
        %v4855 = vpop.f32.mrf.mxu0
        %v4856 = vadd.f32 %v4842, %v4855
        %4857 = vdwg.mxu0
        %4858 = vmatpush.bf16.msra.mxu0 %v4718
        %4859 = vmatpush.bf16.msra.mxu0 %v4716
        %4860 = vmatpush.bf16.msra.mxu0 %v4714
        %4861 = vmatpush.bf16.msra.mxu0 %v4712
        %4862 = vmatpush.bf16.msra.mxu0 %v4710
        %4863 = vmatpush.bf16.msra.mxu0 %v4708
        %4864 = vmatpush.bf16.msra.mxu0 %v4706
        %4865 = vmatpush.bf16.msra.mxu0 %v4704
        %4866 = vmatmul.bf16.gmra.mxu0 %v4326
        %v4867 = vpop.f32.mrf.mxu0
        %v4868 = vadd.f32 %v4854, %v4867
        %v4869 = vpop.f32.mrf.mxu0
        %v4870 = vadd.f32 %v4856, %v4869
        %4871 = vdwg.mxu0
        %4872 = vmatpush.bf16.msra.mxu0 %v4734
        %4873 = vmatpush.bf16.msra.mxu0 %v4732
        %4874 = vmatpush.bf16.msra.mxu0 %v4730
        %4875 = vmatpush.bf16.msra.mxu0 %v4728
        %4876 = vmatpush.bf16.msra.mxu0 %v4726
        %4877 = vmatpush.bf16.msra.mxu0 %v4724
        %4878 = vmatpush.bf16.msra.mxu0 %v4722
        %4879 = vmatpush.bf16.msra.mxu0 %v4720
        %4880 = vmatmul.bf16.gmra.mxu0 %v4327
        %v4881 = vpop.f32.mrf.mxu0
        %v4882 = vadd.f32 %v4868, %v4881
        %v4883 = vpop.f32.mrf.mxu0
        %v4884 = vadd.f32 %v4870, %v4883
        %4885 = vdwg.mxu0
        %4886 = vmatpush.bf16.msra.mxu0 %v4671
        %4887 = vmatpush.bf16.msra.mxu0 %v4669
        %4888 = vmatpush.bf16.msra.mxu0 %v4667
        %4889 = vmatpush.bf16.msra.mxu0 %v4665
        %4890 = vmatpush.bf16.msra.mxu0 %v4663
        %4891 = vmatpush.bf16.msra.mxu0 %v4661
        %4892 = vmatpush.bf16.msra.mxu0 %v4659
        %4893 = vmatpush.bf16.msra.mxu0 %v4657
        %4894 = vmatmul.bf16.gmra.mxu0 %v4323
        %v4895 = vpop.f32.mrf.mxu0
        %v4896 = vadd.f32 %v4413, %v4895
        %v4897 = vpop.f32.mrf.mxu0
        %v4898 = vadd.f32 %v4413, %v4897
        %4899 = vdwg.mxu0
        %4900 = vmatpush.bf16.msra.mxu0 %v4687
        %4901 = vmatpush.bf16.msra.mxu0 %v4685
        %4902 = vmatpush.bf16.msra.mxu0 %v4683
        %4903 = vmatpush.bf16.msra.mxu0 %v4681
        %4904 = vmatpush.bf16.msra.mxu0 %v4679
        %4905 = vmatpush.bf16.msra.mxu0 %v4677
        %4906 = vmatpush.bf16.msra.mxu0 %v4675
        %4907 = vmatpush.bf16.msra.mxu0 %v4673
        %4908 = vmatmul.bf16.gmra.mxu0 %v4324
        %v4909 = vpop.f32.mrf.mxu0
        %v4910 = vadd.f32 %v4896, %v4909
        %v4911 = vpop.f32.mrf.mxu0
        %v4912 = vadd.f32 %v4898, %v4911
        %4913 = vdwg.mxu0
        %4914 = vmatpush.bf16.msra.mxu0 %v4703
        %4915 = vmatpush.bf16.msra.mxu0 %v4701
        %4916 = vmatpush.bf16.msra.mxu0 %v4699
        %4917 = vmatpush.bf16.msra.mxu0 %v4697
        %4918 = vmatpush.bf16.msra.mxu0 %v4695
        %4919 = vmatpush.bf16.msra.mxu0 %v4693
        %4920 = vmatpush.bf16.msra.mxu0 %v4691
        %4921 = vmatpush.bf16.msra.mxu0 %v4689
        %4922 = vmatmul.bf16.gmra.mxu0 %v4325
        %v4923 = vpop.f32.mrf.mxu0
        %v4924 = vadd.f32 %v4910, %v4923
        %v4925 = vpop.f32.mrf.mxu0
        %v4926 = vadd.f32 %v4912, %v4925
        %4927 = vdwg.mxu0
        %4928 = vmatpush.bf16.msra.mxu0 %v4719
        %4929 = vmatpush.bf16.msra.mxu0 %v4717
        %4930 = vmatpush.bf16.msra.mxu0 %v4715
        %4931 = vmatpush.bf16.msra.mxu0 %v4713
        %4932 = vmatpush.bf16.msra.mxu0 %v4711
        %4933 = vmatpush.bf16.msra.mxu0 %v4709
        %4934 = vmatpush.bf16.msra.mxu0 %v4707
        %4935 = vmatpush.bf16.msra.mxu0 %v4705
        %4936 = vmatmul.bf16.gmra.mxu0 %v4326
        %v4937 = vpop.f32.mrf.mxu0
        %v4938 = vadd.f32 %v4924, %v4937
        %v4939 = vpop.f32.mrf.mxu0
        %v4940 = vadd.f32 %v4926, %v4939
        %4941 = vdwg.mxu0
        %4942 = vmatpush.bf16.msra.mxu0 %v4735
        %4943 = vmatpush.bf16.msra.mxu0 %v4733
        %4944 = vmatpush.bf16.msra.mxu0 %v4731
        %4945 = vmatpush.bf16.msra.mxu0 %v4729
        %4946 = vmatpush.bf16.msra.mxu0 %v4727
        %4947 = vmatpush.bf16.msra.mxu0 %v4725
        %4948 = vmatpush.bf16.msra.mxu0 %v4723
        %4949 = vmatpush.bf16.msra.mxu0 %v4721
        %4950 = vmatmul.bf16.gmra.mxu0 %v4327
        %v4951 = vpop.f32.mrf.mxu0
        %v4952 = vadd.f32 %v4938, %v4951
        %v4953 = vpop.f32.mrf.mxu0
        %v4954 = vadd.f32 %v4940, %v4953
        %4955 = vdwg.mxu0
        %v4956 = vadd.f32 %v3830, %v4882
        %v4957 = vadd.f32 %v3831, %v4952
        %v4958 = vadd.f32 %v3832, %v4884
        %v4959 = vadd.f32 %v3833, %v4954
        %v4960 = vld [vmem:[%s12] sm:$0x3]
        %v4961 = vld [vmem:[%s13] sm:$0x3]
        %v4962 = vsel %vm536, %v4957, 0.0
        %v4963 = vadd.f32 %v4956, %v4962
        %4964 = vadd.xlane.f32.xlu0 %v4963
        %v4965 = vpop.xlane.xlu0 %4964
        %v4966 = vsel %vm536, %v4959, 0.0
        %v4967 = vadd.f32 %v4958, %v4966
        %4968 = vadd.xlane.f32.xlu0 %v4967
        %v4969 = vpop.xlane.xlu0 %4968
        %v4970 = vmul.f32 %v4965, %v551
        %v4971 = vmul.f32 %v4969, %v551
        %v4972 = vsub.f32 %v4956, %v4970
        %v4973 = vsub.f32 %v4957, %v4970
        %v4974 = vsub.f32 %v4958, %v4971
        %v4975 = vsub.f32 %v4959, %v4971
        %v4976 = vmul.f32 %v4972, %v4972
        %v4977 = vmul.f32 %v4973, %v4973
        %v4978 = vmul.f32 %v4974, %v4974
        %v4979 = vmul.f32 %v4975, %v4975
        %v4980 = vsel %vm536, %v4977, 0.0
        %v4981 = vadd.f32 %v4976, %v4980
        %4982 = vadd.xlane.f32.xlu0 %v4981
        %v4983 = vpop.xlane.xlu0 %4982
        %v4984 = vsel %vm536, %v4979, 0.0
        %v4985 = vadd.f32 %v4978, %v4984
        %4986 = vadd.xlane.f32.xlu0 %v4985
        %v4987 = vpop.xlane.xlu0 %4986
        %v4988 = vmul.f32 %v4983, %v551
        %v4989 = vmul.f32 %v4987, %v551
        %v4990 = vadd.f32 %v4988, 1e-05
        %v4991 = vadd.f32 %v4989, 1e-05
        %v4992 = vrsqrt.pop %v4990
        %v4993 = vmul.f32 %v4992, %v4990
        %v4994 = vmul.f32 %v4993, %v4992
        %v4995 = vmul.f32 0.5, %v4994
        %v4996 = vsub.f32 1.5, %v4995
        %v4997 = vmul.f32 %v4992, %v4996
        %vm4998 = vweird.f32 %v4990
        %vm4999 = vweird.f32 %v4992
        %vm5000 = vmor %vm4998, %vm4999
        %v5001 = vsel %vm5000, %v4992, %v4997
        %v5002 = vrsqrt.pop %v4991
        %v5003 = vmul.f32 %v5002, %v4991
        %v5004 = vmul.f32 %v5003, %v5002
        %v5005 = vmul.f32 0.5, %v5004
        %v5006 = vsub.f32 1.5, %v5005
        %v5007 = vmul.f32 %v5002, %v5006
        %vm5008 = vweird.f32 %v4991
        %vm5009 = vweird.f32 %v5002
        %vm5010 = vmor %vm5008, %vm5009
        %v5011 = vsel %vm5010, %v5002, %v5007
        %v5012 = vmul.f32 %v4972, %v5001
        %v5013 = vmul.f32 %v4973, %v5001
        %v5014 = vmul.f32 %v4974, %v5011
        %v5015 = vmul.f32 %v4975, %v5011
        %v5017 = vperm.slane %v4960, 0
        %v5018 = vperm.slane %v4960, 1
        %v5021 = vmul.f32 %v5012, %v5017
        %v5022 = vmul.f32 %v5013, %v5018
        %v5023 = vmul.f32 %v5014, %v5017
        %v5024 = vmul.f32 %v5015, %v5018
        %v5026 = vperm.slane %v4961, 0
        %v5027 = vperm.slane %v4961, 1
        %v5030 = vadd.f32 %v5021, %v5026
        %v5031 = vadd.f32 %v5022, %v5027
        %v5032 = vadd.f32 %v5023, %v5026
        %v5033 = vadd.f32 %v5024, %v5027
        %v5034 = vpack.c.bf16 %v5032, %v5030
        %v5035 = vpack.c.bf16 %v5033, %v5031
        %v5036 = vld [vmem:[%s14] sm:$0xf]
        %v5037 = vld [vmem:[%s14 + $0x4] sm:$0xf]
        %v5038 = vld [vmem:[%s14 + $0x8] sm:$0xf]
        %v5039 = vld [vmem:[%s14 + $0xc] sm:$0xf]
        %v5040 = vld [vmem:[%s14 + $0x10] sm:$0xf]
        %v5041 = vld [vmem:[%s14 + $0x14] sm:$0xf]
        %v5042 = vld [vmem:[%s14 + $0x18] sm:$0xf]
        %v5043 = vld [vmem:[%s14 + $0x1c] sm:$0xf]
        %v5044 = vld [vmem:[%s14 + $0x20] sm:$0xf]
        %v5045 = vld [vmem:[%s14 + $0x24] sm:$0xf]
        %v5046 = vld [vmem:[%s14 + $0x28] sm:$0xf]
        %v5047 = vld [vmem:[%s14 + $0x2c] sm:$0xf]
        %v5048 = vld [vmem:[%s14 + $0x30] sm:$0xf]
        %v5049 = vld [vmem:[%s14 + $0x34] sm:$0xf]
        %v5050 = vld [vmem:[%s14 + $0x38] sm:$0xf]
        %v5051 = vld [vmem:[%s14 + $0x3c] sm:$0xf]
        %v5052 = vld [vmem:[%s14 + $0x40] sm:$0xf]
        %v5053 = vld [vmem:[%s14 + $0x44] sm:$0xf]
        %v5054 = vld [vmem:[%s14 + $0x48] sm:$0xf]
        %v5055 = vld [vmem:[%s14 + $0x4c] sm:$0xf]
        %v5056 = vld [vmem:[%s15] sm:$0x1]
        %v5058 = vperm.slane %v5056, 0
        %v5080 = vunpack.c.l.b16 %v5036
        %v5081 = vunpack.c.l.b16 %v5037
        %v5082 = vunpack.c.l.b16 %v5038
        %v5083 = vunpack.c.l.b16 %v5039
        %v5084 = vunpack.c.l.b16 %v5040
        %v5085 = vunpack.c.l.b16 %v5041
        %v5086 = vunpack.c.l.b16 %v5042
        %v5087 = vunpack.c.l.b16 %v5043
        %v5088 = vunpack.c.l.b16 %v5044
        %v5089 = vunpack.c.l.b16 %v5045
        %v5090 = vunpack.c.l.b16 %v5046
        %v5091 = vunpack.c.l.b16 %v5047
        %v5092 = vunpack.c.l.b16 %v5048
        %v5093 = vunpack.c.l.b16 %v5049
        %v5094 = vunpack.c.l.b16 %v5050
        %v5095 = vunpack.c.l.b16 %v5051
        %v5096 = vunpack.c.l.b16 %v5052
        %v5097 = vunpack.c.l.b16 %v5053
        %v5098 = vunpack.c.l.b16 %v5054
        %v5099 = vunpack.c.l.b16 %v5055
        %v5100 = vpack.c.b16 %v5081, %v5080
        %v5101 = vpack.c.b16 %v5083, %v5082
        %v5102 = vpack.c.b16 %v5085, %v5084
        %v5103 = vpack.c.b16 %v5087, %v5086
        %v5104 = vpack.c.b16 %v5089, %v5088
        %v5105 = vpack.c.b16 %v5091, %v5090
        %v5106 = vpack.c.b16 %v5093, %v5092
        %v5107 = vpack.c.b16 %v5095, %v5094
        %v5108 = vpack.c.b16 %v5097, %v5096
        %v5109 = vpack.c.b16 %v5099, %v5098
        %v5121 = vsel %vm536, %v5035, 0
        %5123 = vmatpush.bf16.msra.mxu0 %v5107
        %5124 = vmatpush.bf16.msra.mxu0 %v5106
        %5125 = vmatpush.bf16.msra.mxu0 %v5105
        %5126 = vmatpush.bf16.msra.mxu0 %v5104
        %5127 = vmatpush.bf16.msra.mxu0 %v5103
        %5128 = vmatpush.bf16.msra.mxu0 %v5102
        %5129 = vmatpush.bf16.msra.mxu0 %v5101
        %5130 = vmatpush.bf16.msra.mxu0 %v5100
        %5131 = vmatmul.bf16.gmra.mxu0 %v5034
        %v5132 = vpop.f32.mrf.mxu0
        %v5133 = vadd.f32 %v5058, %v5132
        %v5134 = vpop.f32.mrf.mxu0
        %v5135 = vadd.f32 %v5058, %v5134
        %5136 = vdwg.mxu0
        %5137 = vmatpush.bf16.msra.mxu0 0
        %5138 = vmatpush.bf16.msra.mxu0 0
        %5139 = vmatpush.bf16.msra.mxu0 0
        %5140 = vmatpush.bf16.msra.mxu0 0
        %5141 = vmatpush.bf16.msra.mxu0 0
        %5142 = vmatpush.bf16.msra.mxu0 0
        %5143 = vmatpush.bf16.msra.mxu0 %v5109
        %5144 = vmatpush.bf16.msra.mxu0 %v5108
        %5145 = vmatmul.bf16.gmra.mxu0 %v5121
        %v5146 = vpop.f32.mrf.mxu0
        %v5147 = vadd.f32 %v5133, %v5146
        %v5148 = vpop.f32.mrf.mxu0
        %v5149 = vadd.f32 %v5135, %v5148
        %5150 = vdwg.mxu0
        %5151 = vst [vmem:[%s514] sm:$0xff] %v5147
        %5152 = vst [vmem:[%s514 + $0x8] sm:$0xff] %v5149
        %s5153 = sand.u32 %s379, 1
        %s5154 = scalar_lea.sflag [#allocation3], %s5153
        %s5155 = sand.u32 %s379, 1
        %s5156 = smul.addr %s5155, 16
        %s5157 = scalar_lea.vmem [#allocation2], %s5156
        // Predicated region
        $region85: #{transformer_decoder.1} parent=83 // pred_check
          %p5158 = pneg %p389
        $region86: #{transformer_decoder.1} parent=83 // pred_check_branch
          %5160 = sbr.rel (%p5158) target = $region88
        $region87: #{transformer_decoder.1} parent=83 // pred_region
          %5162 = vsyncadd %s5154, 0
          %s5163 = smul.addr %s30, 2
          %s5164 = smul.addr %s5163, 8
          %s5165 = scalar_lea.hbm %s16, %s5164
          %s5166 = sshll.u32 %s5157, 4
          %s5167 = int_to_ptr.vmem [resolvable:$true] %s5166
          %s5168 = sshll.u32 %s5165, 4
          %s5169 = int_to_ptr.hbm [resolvable:$true] %s5168
          %5174 = dma.vmem_to_hbm [thread:$0]  %s5167, 256, %s5169, %s5154, 128, 128, 8
        $region88: #{transformer_decoder.1} parent=83 // pred_fallthru
          _
      $region84: #{transformer_decoder.1} parent=5 // pred_fallthru
        _
      %p5175 = scmp.le.s32.totalorder 2, %s25
      // Predicated region
      $region89: #{transformer_decoder.1} parent=5 // pred_check
        %p5176 = pneg %p5175
      $region90: #{transformer_decoder.1} parent=5 // pred_check_branch
        %5178 = sbr.rel (%p5176) target = $region92
      $region91: #{transformer_decoder.1} parent=5 // pred_region
        %s5179 = ssub.s32 %s25, 2
        // Predicated region
        $region93: #{transformer_decoder.1} parent=91 // pred_check
          %p5180 = pneg %p395
        $region94: #{transformer_decoder.1} parent=91 // pred_check_branch
          %5182 = sbr.rel (%p5180) target = $region96
        $region95: #{transformer_decoder.1} parent=91 // pred_region
          %s5183 = sand.u32 %s380, 1
          %s5184 = scalar_lea.sflag [#allocation3], %s5183
          %s5185 = sand.u32 %s380, 1
          %s5186 = smul.addr %s5185, 16
          %s5187 = scalar_lea.vmem [#allocation2], %s5186
          %5189 = dma.done %s5184, 256
        $region96: #{transformer_decoder.1} parent=91 // pred_fallthru
          _
      $region92: #{transformer_decoder.1} parent=5 // pred_fallthru
        _
    $region6: #{transformer_decoder.1} parent=1 // loop_footer
      %s29 = sadd.s32 1, %s25
    $region7: #{transformer_decoder.1} parent=1 // loop_footer_branch
      %24 = sbr.rel target = $region3
    $region8: #{transformer_decoder.1} parent=1 // loop_exit
      _
    %5190 = vsyncpa [#allocation3], 1
    %s5191 = scalar_lea.sflag [#allocation3], 1
    %5192 = vsyncpa %s5191, 1

</llo_original>
